<compile_context>
chip_gen: v7x
topology: tpu7x:2x2x1
jax: 0.10.0
libtpu: 0.0.40
codegen_flags: <defaults>
</compile_context>

<pallas_src>
import numpy as np

import jax
import jax.numpy as jnp
from jax.experimental import pallas as pl
from jax.experimental.pallas import tpu as pltpu


MATMUL_DTYPE = jnp.bfloat16      # MXU operand dtype (accumulation is always f32)


# ------------------------------- fused kernel ------------------------------ #

def _cnn_mnist_kernel(x_ref, w1m_ref, b1_ref, w2m_ref, b2_ref,
                      gf1_ref, bf1_ref, wf2_ref, bf2_ref,
                      o_ref,
                      acc1_ref, acc2_ref, sc1_ref, sa1_ref, sc2_ref):
    f32 = jnp.float32
    mm = x_ref.dtype                       # bf16 MXU operand dtype
    K = w1m_ref.shape[0]                   # 5
    bt = x_ref.shape[0]                    # images per grid step
    h_in = x_ref.shape[1]                  # 28
    k1 = x_ref.shape[2]                    # Ci*28
    ho1 = h_in - K + 1                     # 24
    hp1 = ho1 // 2                         # 12
    ho2 = hp1 - K + 1                      # 8
    hp2 = ho2 // 2                         # 4

    # ---- conv1 (+bias) -> 2x2 maxpool -> relu ------------------------------
    # K banded matmuls; even/odd output-column parities live in the two 128-lane
    # halves of the merged weight, so the width half of the pool is a vreg max.
    acc1_ref[...] = jnp.zeros_like(acc1_ref)
    for dy in range(K):
        xs = x_ref[:, dy:dy + ho1, :].reshape(bt * ho1, k1)        # (bt*24, Ci*28)
        acc1_ref[...] += jnp.dot(xs, w1m_ref[dy], preferred_element_type=f32)
    sc1_ref[...] = (jnp.maximum(acc1_ref[:, 0:128], acc1_ref[:, 128:256])
                    + b1_ref[...])                                  # (bt*24, 128) f32

    # height half of the pool + relu via sublane-strided reads (2:1 row reduce);
    # 24 rows/image is even, so global row pairs never straddle images.
    a1 = jnp.maximum(
        jnp.maximum(sc1_ref[pl.ds(0, bt * hp1, stride=2), :],
                    sc1_ref[pl.ds(1, bt * hp1, stride=2), :]),
        0.0).astype(mm)                                             # (bt*12, 128) bf16
    sa1_ref[pl.ds(0, bt * hp1), :] = a1
    pad_rows = sa1_ref.shape[0] - bt * hp1
    sa1_ref[pl.ds(bt * hp1, pad_rows), :] = jnp.zeros((pad_rows, 128), mm)

    # ---- conv2 (+bias) -> Dropout2d(eval: identity) -> 2x2 maxpool ----------
    # Per-dy slabs are single contiguous slices of the 12-row-per-image layout;
    # rows oy >= 8 of each image are computed and simply never read again.
    acc2_ref[...] = jnp.zeros_like(acc2_ref)
    for dy in range(K):
        slab = sa1_ref[pl.ds(dy, bt * hp1), :]                      # (bt*12, 128)
        acc2_ref[...] += jnp.dot(slab, w2m_ref[dy], preferred_element_type=f32)
    sc2_ref[...] = (jnp.maximum(acc2_ref[:, 0:128], acc2_ref[:, 128:256])
                    + b2_ref[...])                                  # (bt*12, 128) f32

    # ---- height pool of conv2 + relu + fc1 (torch NCHW flatten folded into gf1)
    hacc = jnp.zeros((bt, 128), f32)
    for h in range(hp2):
        re = sc2_ref[pl.ds(2 * h, bt, stride=hp1), :]               # rows 12b + 2h
        ro = sc2_ref[pl.ds(2 * h + 1, bt, stride=hp1), :]           # rows 12b + 2h+1
        r = jnp.maximum(jnp.maximum(re, ro), 0.0).astype(mm)        # (bt, 128) bf16
        hacc = hacc + jnp.dot(r, gf1_ref[h], preferred_element_type=f32)
    h1 = jnp.maximum(hacc + bf1_ref[...], 0.0)                      # (bt, 128) f32
    # TODO(synk): Dropout2d / F.dropout run as identity (inference mode only).

    # ---- fc2 (f32 operands) + log_softmax ----------------------------------
    # pad-class lanes of bf2 hold -1e30 so they vanish from max/exp-sum.
    logits = jnp.dot(h1, wf2_ref[...], preferred_element_type=f32) + bf2_ref[...]
    m = jnp.max(logits, axis=1, keepdims=True)
    sh = logits - m
    logp = sh - jnp.log(jnp.sum(jnp.exp(sh), axis=1, keepdims=True))
    o_ref[...] = logp                                               # lane-dense store


# --------------------------- parameter preparation ------------------------- #

def _banded_conv_weights_merged(w, w_in, k_pad):
    """torch conv weight (Co,Ci,K,K) -> merged banded matmul weights (K, k_pad, 256):
    lane j       (j < 128) -> even output cols (ox = 2*px),
    lane 128 + j           -> odd  output cols (ox = 2*px + 1),
    with j = co*(Wo//2) + px, input lane = ci*w_in + ix (valid conv, stride 1)."""
    w = np.asarray(w, np.float32)
    co_n, ci_n, K, _ = w.shape
    w_out = w_in - K + 1
    wh = w_out // 2
    assert co_n * wh <= 128 and ci_n * w_in <= k_pad
    mat = np.zeros((K, k_pad, 256), np.float32)
    for parity, base in ((0, 0), (1, 128)):
        for dy in range(K):
            for ci in range(ci_n):
                for co in range(co_n):
                    for px in range(wh):
                        ox = 2 * px + parity
                        for dx in range(K):
                            mat[dy, ci * w_in + ox + dx, base + co * wh + px] = \
                                w[co, ci, dy, dx]
    return mat


def prepare_params(w1, b1, w2, b2, wf1, bf1, wf2, bf2, *, in_hw=28):
    w1 = np.asarray(w1, np.float32)
    w2 = np.asarray(w2, np.float32)
    K = w1.shape[-1]
    co1, ci1 = w1.shape[0], w1.shape[1]
    co2 = w2.shape[0]
    wo1 = in_hw - K + 1          # 24
    wp1 = wo1 // 2               # 12
    wo2 = wp1 - K + 1            # 8
    wp2 = wo2 // 2               # 4
    wf1np = np.asarray(wf1, np.float32)
    wf2np = np.asarray(wf2, np.float32)
    nf1 = wf1np.shape[0]         # 50
    ncls = wf2np.shape[0]

    w1m = _banded_conv_weights_merged(w1, in_hw, ci1 * in_hw)   # (5, Ci*28, 256)
    w2m = _banded_conv_weights_merged(w2, wp1, 128)             # (5, 128, 256)

    b1p = np.zeros((1, 128), np.float32)
    b1p[0, :co1 * wp1] = np.repeat(np.asarray(b1, np.float32), wp1)
    b2p = np.zeros((1, 128), np.float32)
    b2p[0, :co2 * wp2] = np.repeat(np.asarray(b2, np.float32), wp2)

    # fc1: torch NCHW flatten (c*hp*wp + h*wp + w) regrouped per pooled row h.
    gf1 = np.zeros((wp2, 128, 128), np.float32)
    for h in range(wp2):
        for c in range(co2):
            for x in range(wp2):
                gf1[h, c * wp2 + x, :nf1] = wf1np[:, c * (wp2 * wp2) + h * wp2 + x]
    bf1p = np.zeros((1, 128), np.float32)
    bf1p[0, :nf1] = np.asarray(bf1, np.float32)

    wf2p = np.zeros((128, 128), np.float32)
    wf2p[:nf1, :ncls] = wf2np.T
    bf2p = np.full((1, 128), -1e30, np.float32)   # pad-class lanes -> ignored in softmax
    bf2p[0, :ncls] = np.asarray(bf2, np.float32)

    return {
        "w1m": jnp.asarray(w1m, MATMUL_DTYPE),
        "b1":  jnp.asarray(b1p),
        "w2m": jnp.asarray(w2m, MATMUL_DTYPE),
        "b2":  jnp.asarray(b2p),
        "gf1": jnp.asarray(gf1, MATMUL_DTYPE),
        "bf1": jnp.asarray(bf1p),
        "wf2": jnp.asarray(wf2p),                 # f32 for a tighter fc2
        "bf2": jnp.asarray(bf2p),
    }


# ------------------------------ forward wrapper ----------------------------- #

def cnn_mnist_forward(x_nchw, p, *, num_classes=10, b_tile=8):
    """Matches CNNMnist.forward (inference mode) on NCHW input."""
    B, Ci, H, W = x_nchw.shape
    K = int(p["w1m"].shape[0])
    ho1 = H - K + 1              # 24
    hp1 = ho1 // 2               # 12

    # per-image channel-major 2-D layout: rows = y, lanes = ci*W + x
    x2 = jnp.transpose(x_nchw, (0, 2, 1, 3)).reshape(B, H, Ci * W).astype(MATMUL_DTYPE)
    Bp = ((B + b_tile - 1) // b_tile) * b_tile
    if Bp != B:
        x2 = jnp.pad(x2, ((0, Bp - B), (0, 0), (0, 0)))

    weight_args = (p["w1m"], p["b1"], p["w2m"], p["b2"],
                   p["gf1"], p["bf1"], p["wf2"], p["bf2"])

    def _const_spec(a):
        nd = a.ndim
        return pl.BlockSpec(a.shape, lambda b, _n=nd: (0,) * _n)

    in_specs = [pl.BlockSpec((b_tile, H, Ci * W), lambda b: (b, 0, 0))]
    in_specs += [_const_spec(a) for a in weight_args]

    out = pl.pallas_call(
        _cnn_mnist_kernel,
        out_shape=jax.ShapeDtypeStruct((Bp, 128), jnp.float32),
        grid_spec=pltpu.PrefetchScalarGridSpec(
            num_scalar_prefetch=0,
            grid=(Bp // b_tile,),
            in_specs=in_specs,
            out_specs=pl.BlockSpec((b_tile, 128), lambda b: (b, 0)),
            scratch_shapes=[
                pltpu.VMEM((b_tile * ho1, 256), jnp.float32),       # acc1
                pltpu.VMEM((b_tile * hp1, 256), jnp.float32),       # acc2
                pltpu.VMEM((b_tile * ho1, 128), jnp.float32),       # conv1 pre-pool
                pltpu.VMEM((b_tile * hp1 + 8, 128), MATMUL_DTYPE),  # pooled a1 (+pad)
                pltpu.VMEM((b_tile * hp1, 128), jnp.float32),       # conv2 pre-pool
            ],
        ),
        compiler_params=pltpu.CompilerParams(dimension_semantics=("parallel",)),
    )(x2, *weight_args)
    return out[:B, :num_classes]


# ------------------------------ pure-JAX reference -------------------------- #

def reference_forward(x, w1, b1, w2, b2, wf1, bf1, wf2, bf2):
    hi = jax.lax.Precision.HIGHEST
    y = jax.lax.conv_general_dilated(x, w1, (1, 1), "VALID",
                                     dimension_numbers=("NCHW", "OIHW", "NCHW"),
                                     precision=hi) + b1[None, :, None, None]
    Bn, C, H, W = y.shape
    y = jnp.maximum(y.reshape(Bn, C, H // 2, 2, W // 2, 2).max(axis=(3, 5)), 0.0)
    y = jax.lax.conv_general_dilated(y, w2, (1, 1), "VALID",
                                     dimension_numbers=("NCHW", "OIHW", "NCHW"),
                                     precision=hi) + b2[None, :, None, None]
    Bn, C, H, W = y.shape
    y = jnp.maximum(y.reshape(Bn, C, H // 2, 2, W // 2, 2).max(axis=(3, 5)), 0.0)
    y = y.reshape(Bn, -1)
    y = jnp.maximum(jnp.dot(y, wf1.T, precision=hi) + bf1, 0.0)
    logits = jnp.dot(y, wf2.T, precision=hi) + bf2
    return jax.nn.log_softmax(logits, axis=1)


# ----------------------------------- driver --------------------------------- #

if __name__ == "__main__":
    B, num_channels, num_classes = 16, 1, 10       # MNIST-shaped (28x28) input
    key = jax.random.PRNGKey(0)
    ks = jax.random.split(key, 9)

    x = jax.random.normal(ks[0], (B, num_channels, 28, 28), jnp.float32)

    # Deterministic synthetic parameters in PyTorch layout.
    w1 = 0.1 * jax.random.normal(ks[1], (10, num_channels, 5, 5), jnp.float32)
    b1 = 0.1 * jax.random.normal(ks[2], (10,), jnp.float32)
    w2 = 0.1 * jax.random.normal(ks[3], (20, 10, 5, 5), jnp.float32)
    b2 = 0.1 * jax.random.normal(ks[4], (20,), jnp.float32)
    wf1 = 0.1 * jax.random.normal(ks[5], (50, 320), jnp.float32)   # fc1.weight
    bf1 = 0.1 * jax.random.normal(ks[6], (50,), jnp.float32)
    wf2 = 0.1 * jax.random.normal(ks[7], (num_classes, 50), jnp.float32)  # fc2.weight
    bf2 = 0.1 * jax.random.normal(ks[8], (num_classes,), jnp.float32)

    params = prepare_params(w1, b1, w2, b2, wf1, bf1, wf2, bf2, in_hw=28)

    # b_tile=8 with B=16 keeps grid=2 so both v7x TensorCores get work.
    fwd = jax.jit(lambda xx, pp: cnn_mnist_forward(xx, pp,
                                                   num_classes=num_classes,
                                                   b_tile=8))
    out = jax.block_until_ready(fwd(x, params))

    assert out.shape == (B, num_classes)
    assert bool(jnp.all(jnp.isfinite(out)))
    # log_softmax rows should exponentiate-sum to ~1.
    assert bool(jnp.allclose(jnp.sum(jnp.exp(out), axis=1), 1.0, atol=1e-4))
    # compare against a pure-JAX f32 reference (bf16 MXU operands -> loose tol).
    ref = reference_forward(x, w1, b1, w2, b2, wf1, bf1, wf2, bf2)
    assert float(jnp.max(jnp.abs(out - ref))) < 0.2

    print("KERNEL_OK")
</pallas_src>

<mosaic_0001>
module attributes {stable_mosaic.version = 11 : i64} {
  func.func @_cnn_mnist_kernel(%arg0: i32, %arg1: memref<8x28x28xbf16, #tpu.memory_space<vmem>>, %arg2: memref<5x28x256xbf16, #tpu.memory_space<vmem>>, %arg3: memref<1x128xf32, #tpu.memory_space<vmem>>, %arg4: memref<5x128x256xbf16, #tpu.memory_space<vmem>>, %arg5: memref<1x128xf32, #tpu.memory_space<vmem>>, %arg6: memref<4x128x128xbf16, #tpu.memory_space<vmem>>, %arg7: memref<1x128xf32, #tpu.memory_space<vmem>>, %arg8: memref<128x128xf32, #tpu.memory_space<vmem>>, %arg9: memref<1x128xf32, #tpu.memory_space<vmem>>, %arg10: memref<8x128xf32, #tpu.memory_space<vmem>>, %arg11: memref<192x256xf32, #tpu.memory_space<vmem>>, %arg12: memref<96x256xf32, #tpu.memory_space<vmem>>, %arg13: memref<192x128xf32, #tpu.memory_space<vmem>>, %arg14: memref<104x128xbf16, #tpu.memory_space<vmem>>, %arg15: memref<96x128xf32, #tpu.memory_space<vmem>>) attributes {dimension_semantics = [#tpu.dimension_semantics<parallel>], iteration_bounds = array<i64: 2>, scalar_prefetch = 0 : i64, scratch_operands = 5 : i64, tpu.core_type = #tpu.core_type<tc>, window_params = [{transform_indices = @transform_0, window_bounds = array<i64: 8, 28, 28>}, {pipeline_mode = #tpu.pipeline_mode<synchronous>, transform_indices = @transform_1, window_bounds = array<i64: 5, 28, 256>}, {pipeline_mode = #tpu.pipeline_mode<synchronous>, transform_indices = @transform_2, window_bounds = array<i64: 1, 128>}, {pipeline_mode = #tpu.pipeline_mode<synchronous>, transform_indices = @transform_3, window_bounds = array<i64: 5, 128, 256>}, {pipeline_mode = #tpu.pipeline_mode<synchronous>, transform_indices = @transform_4, window_bounds = array<i64: 1, 128>}, {pipeline_mode = #tpu.pipeline_mode<synchronous>, transform_indices = @transform_5, window_bounds = array<i64: 4, 128, 128>}, {pipeline_mode = #tpu.pipeline_mode<synchronous>, transform_indices = @transform_6, window_bounds = array<i64: 1, 128>}, {pipeline_mode = #tpu.pipeline_mode<synchronous>, transform_indices = @transform_7, window_bounds = array<i64: 128, 128>}, {pipeline_mode = #tpu.pipeline_mode<synchronous>, transform_indices = @transform_8, window_bounds = array<i64: 1, 128>}, {transform_indices = @transform_9, window_bounds = array<i64: 8, 128>}]} {
    %cst = arith.constant 0.000000e+00 : f32
    %0 = vector.broadcast %cst : f32 to vector<192x256xf32>
    %c0 = arith.constant 0 : index
    %c0_0 = arith.constant 0 : index
    %1 = vector.load %arg11[%c0, %c0_0] : memref<192x256xf32, #tpu.memory_space<vmem>>, vector<192x256xf32>
    tpu.vector_store %arg11[%c0, %c0_0], %0 {strides = array<i32>} : memref<192x256xf32, #tpu.memory_space<vmem>>, vector<192x256xf32>,
    %c0_1 = arith.constant 0 : index
    %c0_2 = arith.constant 0 : index
    %c0_3 = arith.constant 0 : index
    %2 = vector.load %arg1[%c0_1, %c0_2, %c0_3] : memref<8x28x28xbf16, #tpu.memory_space<vmem>>, vector<8x24x28xbf16>
    %3 = vector.shape_cast %2 : vector<8x24x28xbf16> to vector<192x28xbf16>
    %c0_4 = arith.constant 0 : index
    %c0_5 = arith.constant 0 : index
    %4 = vector.load %arg11[%c0_4, %c0_5] : memref<192x256xf32, #tpu.memory_space<vmem>>, vector<192x256xf32>
    %c0_6 = arith.constant 0 : index
    %c0_7 = arith.constant 0 : index
    %c0_8 = arith.constant 0 : index
    %5 = vector.load %arg2[%c0_6, %c0_7, %c0_8] : memref<5x28x256xbf16, #tpu.memory_space<vmem>>, vector<1x28x256xbf16>
    %6 = vector.shape_cast %5 : vector<1x28x256xbf16> to vector<28x256xbf16>
    %cst_9 = arith.constant dense<0.000000e+00> : vector<192x256xf32>
    %7 = tpu.matmul %3, %6, %cst_9 {dimension_numbers = #tpu.dot_dimension_numbers<[1], [0], [0], [1], [0, 0, 1, 1], [], []>} : vector<192x28xbf16>, vector<28x256xbf16>, vector<192x256xf32> -> vector<192x256xf32>
    %8 = arith.addf %4, %7 : vector<192x256xf32>
    %c0_10 = arith.constant 0 : index
    %c0_11 = arith.constant 0 : index
    %9 = vector.load %arg11[%c0_10, %c0_11] : memref<192x256xf32, #tpu.memory_space<vmem>>, vector<192x256xf32>
    tpu.vector_store %arg11[%c0_10, %c0_11], %8 {strides = array<i32>} : memref<192x256xf32, #tpu.memory_space<vmem>>, vector<192x256xf32>,
    %c0_12 = arith.constant 0 : index
    %c1 = arith.constant 1 : index
    %c0_13 = arith.constant 0 : index
    %10 = vector.load %arg1[%c0_12, %c1, %c0_13] : memref<8x28x28xbf16, #tpu.memory_space<vmem>>, vector<8x24x28xbf16>
    %11 = vector.shape_cast %10 : vector<8x24x28xbf16> to vector<192x28xbf16>
    %c0_14 = arith.constant 0 : index
    %c0_15 = arith.constant 0 : index
    %12 = vector.load %arg11[%c0_14, %c0_15] : memref<192x256xf32, #tpu.memory_space<vmem>>, vector<192x256xf32>
    %c1_16 = arith.constant 1 : index
    %c0_17 = arith.constant 0 : index
    %c0_18 = arith.constant 0 : index
    %13 = vector.load %arg2[%c1_16, %c0_17, %c0_18] : memref<5x28x256xbf16, #tpu.memory_space<vmem>>, vector<1x28x256xbf16>
    %14 = vector.shape_cast %13 : vector<1x28x256xbf16> to vector<28x256xbf16>
    %cst_19 = arith.constant dense<0.000000e+00> : vector<192x256xf32>
    %15 = tpu.matmul %11, %14, %cst_19 {dimension_numbers = #tpu.dot_dimension_numbers<[1], [0], [0], [1], [0, 0, 1, 1], [], []>} : vector<192x28xbf16>, vector<28x256xbf16>, vector<192x256xf32> -> vector<192x256xf32>
    %16 = arith.addf %12, %15 : vector<192x256xf32>
    %c0_20 = arith.constant 0 : index
    %c0_21 = arith.constant 0 : index
    %17 = vector.load %arg11[%c0_20, %c0_21] : memref<192x256xf32, #tpu.memory_space<vmem>>, vector<192x256xf32>
    tpu.vector_store %arg11[%c0_20, %c0_21], %16 {strides = array<i32>} : memref<192x256xf32, #tpu.memory_space<vmem>>, vector<192x256xf32>,
    %c0_22 = arith.constant 0 : index
    %c2 = arith.constant 2 : index
    %c0_23 = arith.constant 0 : index
    %18 = vector.load %arg1[%c0_22, %c2, %c0_23] : memref<8x28x28xbf16, #tpu.memory_space<vmem>>, vector<8x24x28xbf16>
    %19 = vector.shape_cast %18 : vector<8x24x28xbf16> to vector<192x28xbf16>
    %c0_24 = arith.constant 0 : index
    %c0_25 = arith.constant 0 : index
    %20 = vector.load %arg11[%c0_24, %c0_25] : memref<192x256xf32, #tpu.memory_space<vmem>>, vector<192x256xf32>
    %c2_26 = arith.constant 2 : index
    %c0_27 = arith.constant 0 : index
    %c0_28 = arith.constant 0 : index
    %21 = vector.load %arg2[%c2_26, %c0_27, %c0_28] : memref<5x28x256xbf16, #tpu.memory_space<vmem>>, vector<1x28x256xbf16>
    %22 = vector.shape_cast %21 : vector<1x28x256xbf16> to vector<28x256xbf16>
    %cst_29 = arith.constant dense<0.000000e+00> : vector<192x256xf32>
    %23 = tpu.matmul %19, %22, %cst_29 {dimension_numbers = #tpu.dot_dimension_numbers<[1], [0], [0], [1], [0, 0, 1, 1], [], []>} : vector<192x28xbf16>, vector<28x256xbf16>, vector<192x256xf32> -> vector<192x256xf32>
    %24 = arith.addf %20, %23 : vector<192x256xf32>
    %c0_30 = arith.constant 0 : index
    %c0_31 = arith.constant 0 : index
    %25 = vector.load %arg11[%c0_30, %c0_31] : memref<192x256xf32, #tpu.memory_space<vmem>>, vector<192x256xf32>
    tpu.vector_store %arg11[%c0_30, %c0_31], %24 {strides = array<i32>} : memref<192x256xf32, #tpu.memory_space<vmem>>, vector<192x256xf32>,
    %c0_32 = arith.constant 0 : index
    %c3 = arith.constant 3 : index
    %c0_33 = arith.constant 0 : index
    %26 = vector.load %arg1[%c0_32, %c3, %c0_33] : memref<8x28x28xbf16, #tpu.memory_space<vmem>>, vector<8x24x28xbf16>
    %27 = vector.shape_cast %26 : vector<8x24x28xbf16> to vector<192x28xbf16>
    %c0_34 = arith.constant 0 : index
    %c0_35 = arith.constant 0 : index
    %28 = vector.load %arg11[%c0_34, %c0_35] : memref<192x256xf32, #tpu.memory_space<vmem>>, vector<192x256xf32>
    %c3_36 = arith.constant 3 : index
    %c0_37 = arith.constant 0 : index
    %c0_38 = arith.constant 0 : index
    %29 = vector.load %arg2[%c3_36, %c0_37, %c0_38] : memref<5x28x256xbf16, #tpu.memory_space<vmem>>, vector<1x28x256xbf16>
    %30 = vector.shape_cast %29 : vector<1x28x256xbf16> to vector<28x256xbf16>
    %cst_39 = arith.constant dense<0.000000e+00> : vector<192x256xf32>
    %31 = tpu.matmul %27, %30, %cst_39 {dimension_numbers = #tpu.dot_dimension_numbers<[1], [0], [0], [1], [0, 0, 1, 1], [], []>} : vector<192x28xbf16>, vector<28x256xbf16>, vector<192x256xf32> -> vector<192x256xf32>
    %32 = arith.addf %28, %31 : vector<192x256xf32>
    %c0_40 = arith.constant 0 : index
    %c0_41 = arith.constant 0 : index
    %33 = vector.load %arg11[%c0_40, %c0_41] : memref<192x256xf32, #tpu.memory_space<vmem>>, vector<192x256xf32>
    tpu.vector_store %arg11[%c0_40, %c0_41], %32 {strides = array<i32>} : memref<192x256xf32, #tpu.memory_space<vmem>>, vector<192x256xf32>,
    %c0_42 = arith.constant 0 : index
    %c4 = arith.constant 4 : index
    %c0_43 = arith.constant 0 : index
    %34 = vector.load %arg1[%c0_42, %c4, %c0_43] : memref<8x28x28xbf16, #tpu.memory_space<vmem>>, vector<8x24x28xbf16>
    %35 = vector.shape_cast %34 : vector<8x24x28xbf16> to vector<192x28xbf16>
    %c0_44 = arith.constant 0 : index
    %c0_45 = arith.constant 0 : index
    %36 = vector.load %arg11[%c0_44, %c0_45] : memref<192x256xf32, #tpu.memory_space<vmem>>, vector<192x256xf32>
    %c4_46 = arith.constant 4 : index
    %c0_47 = arith.constant 0 : index
    %c0_48 = arith.constant 0 : index
    %37 = vector.load %arg2[%c4_46, %c0_47, %c0_48] : memref<5x28x256xbf16, #tpu.memory_space<vmem>>, vector<1x28x256xbf16>
    %38 = vector.shape_cast %37 : vector<1x28x256xbf16> to vector<28x256xbf16>
    %cst_49 = arith.constant dense<0.000000e+00> : vector<192x256xf32>
    %39 = tpu.matmul %35, %38, %cst_49 {dimension_numbers = #tpu.dot_dimension_numbers<[1], [0], [0], [1], [0, 0, 1, 1], [], []>} : vector<192x28xbf16>, vector<28x256xbf16>, vector<192x256xf32> -> vector<192x256xf32>
    %40 = arith.addf %36, %39 : vector<192x256xf32>
    %c0_50 = arith.constant 0 : index
    %c0_51 = arith.constant 0 : index
    %41 = vector.load %arg11[%c0_50, %c0_51] : memref<192x256xf32, #tpu.memory_space<vmem>>, vector<192x256xf32>
    tpu.vector_store %arg11[%c0_50, %c0_51], %40 {strides = array<i32>} : memref<192x256xf32, #tpu.memory_space<vmem>>, vector<192x256xf32>,
    %c0_52 = arith.constant 0 : index
    %c0_53 = arith.constant 0 : index
    %42 = vector.load %arg11[%c0_52, %c0_53] : memref<192x256xf32, #tpu.memory_space<vmem>>, vector<192x128xf32>
    %c0_54 = arith.constant 0 : index
    %c128 = arith.constant 128 : index
    %43 = vector.load %arg11[%c0_54, %c128] : memref<192x256xf32, #tpu.memory_space<vmem>>, vector<192x128xf32>
    %44 = arith.maximumf %42, %43 : vector<192x128xf32>
    %c0_55 = arith.constant 0 : index
    %c0_56 = arith.constant 0 : index
    %45 = vector.load %arg3[%c0_55, %c0_56] : memref<1x128xf32, #tpu.memory_space<vmem>>, vector<1x128xf32>
    %46 = vector.broadcast %45 : vector<1x128xf32> to vector<192x128xf32>
    %47 = arith.addf %44, %46 : vector<192x128xf32>
    %c0_57 = arith.constant 0 : index
    %c0_58 = arith.constant 0 : index
    %48 = vector.load %arg13[%c0_57, %c0_58] : memref<192x128xf32, #tpu.memory_space<vmem>>, vector<192x128xf32>
    tpu.vector_store %arg13[%c0_57, %c0_58], %47 {strides = array<i32>} : memref<192x128xf32, #tpu.memory_space<vmem>>, vector<192x128xf32>,
    %c0_59 = arith.constant 0 : index
    %c0_60 = arith.constant 0 : index
    %49 = tpu.strided_load %arg13[%c0_59, %c0_60] {strides = array<i32: 2, 1>} : memref<192x128xf32, #tpu.memory_space<vmem>>, vector<96x128xf32>
    %c1_61 = arith.constant 1 : index
    %c0_62 = arith.constant 0 : index
    %50 = tpu.strided_load %arg13[%c1_61, %c0_62] {strides = array<i32: 2, 1>} : memref<192x128xf32, #tpu.memory_space<vmem>>, vector<96x128xf32>
    %51 = arith.maximumf %49, %50 : vector<96x128xf32>
    %cst_63 = arith.constant 0.000000e+00 : f32
    %52 = vector.broadcast %cst_63 : f32 to vector<96x128xf32>
    %53 = arith.maximumf %51, %52 : vector<96x128xf32>
    %54 = arith.truncf %53 : vector<96x128xf32> to vector<96x128xbf16>
    %c0_64 = arith.constant 0 : index
    %c0_65 = arith.constant 0 : index
    %55 = vector.load %arg14[%c0_64, %c0_65] : memref<104x128xbf16, #tpu.memory_space<vmem>>, vector<96x128xbf16>
    tpu.vector_store %arg14[%c0_64, %c0_65], %54 {strides = array<i32>} : memref<104x128xbf16, #tpu.memory_space<vmem>>, vector<96x128xbf16>,
    %cst_66 = arith.constant 0.000000e+00 : bf16
    %56 = vector.broadcast %cst_66 : bf16 to vector<8x128xbf16>
    %c96 = arith.constant 96 : index
    %c0_67 = arith.constant 0 : index
    %57 = vector.load %arg14[%c96, %c0_67] : memref<104x128xbf16, #tpu.memory_space<vmem>>, vector<8x128xbf16>
    tpu.vector_store %arg14[%c96, %c0_67], %56 {strides = array<i32>} : memref<104x128xbf16, #tpu.memory_space<vmem>>, vector<8x128xbf16>,
    %cst_68 = arith.constant 0.000000e+00 : f32
    %58 = vector.broadcast %cst_68 : f32 to vector<96x256xf32>
    %c0_69 = arith.constant 0 : index
    %c0_70 = arith.constant 0 : index
    %59 = vector.load %arg12[%c0_69, %c0_70] : memref<96x256xf32, #tpu.memory_space<vmem>>, vector<96x256xf32>
    tpu.vector_store %arg12[%c0_69, %c0_70], %58 {strides = array<i32>} : memref<96x256xf32, #tpu.memory_space<vmem>>, vector<96x256xf32>,
    %c0_71 = arith.constant 0 : index
    %c0_72 = arith.constant 0 : index
    %60 = vector.load %arg14[%c0_71, %c0_72] : memref<104x128xbf16, #tpu.memory_space<vmem>>, vector<96x128xbf16>
    %c0_73 = arith.constant 0 : index
    %c0_74 = arith.constant 0 : index
    %61 = vector.load %arg12[%c0_73, %c0_74] : memref<96x256xf32, #tpu.memory_space<vmem>>, vector<96x256xf32>
    %c0_75 = arith.constant 0 : index
    %c0_76 = arith.constant 0 : index
    %c0_77 = arith.constant 0 : index
    %62 = vector.load %arg4[%c0_75, %c0_76, %c0_77] : memref<5x128x256xbf16, #tpu.memory_space<vmem>>, vector<1x128x256xbf16>
    %63 = vector.shape_cast %62 : vector<1x128x256xbf16> to vector<128x256xbf16>
    %cst_78 = arith.constant dense<0.000000e+00> : vector<96x256xf32>
    %64 = tpu.matmul %60, %63, %cst_78 {dimension_numbers = #tpu.dot_dimension_numbers<[1], [0], [0], [1], [0, 0, 1, 1], [], []>} : vector<96x128xbf16>, vector<128x256xbf16>, vector<96x256xf32> -> vector<96x256xf32>
    %65 = arith.addf %61, %64 : vector<96x256xf32>
    %c0_79 = arith.constant 0 : index
    %c0_80 = arith.constant 0 : index
    %66 = vector.load %arg12[%c0_79, %c0_80] : memref<96x256xf32, #tpu.memory_space<vmem>>, vector<96x256xf32>
    tpu.vector_store %arg12[%c0_79, %c0_80], %65 {strides = array<i32>} : memref<96x256xf32, #tpu.memory_space<vmem>>, vector<96x256xf32>,
    %c1_81 = arith.constant 1 : index
    %c0_82 = arith.constant 0 : index
    %67 = vector.load %arg14[%c1_81, %c0_82] : memref<104x128xbf16, #tpu.memory_space<vmem>>, vector<96x128xbf16>
    %c0_83 = arith.constant 0 : index
    %c0_84 = arith.constant 0 : index
    %68 = vector.load %arg12[%c0_83, %c0_84] : memref<96x256xf32, #tpu.memory_space<vmem>>, vector<96x256xf32>
    %c1_85 = arith.constant 1 : index
    %c0_86 = arith.constant 0 : index
    %c0_87 = arith.constant 0 : index
    %69 = vector.load %arg4[%c1_85, %c0_86, %c0_87] : memref<5x128x256xbf16, #tpu.memory_space<vmem>>, vector<1x128x256xbf16>
    %70 = vector.shape_cast %69 : vector<1x128x256xbf16> to vector<128x256xbf16>
    %cst_88 = arith.constant dense<0.000000e+00> : vector<96x256xf32>
    %71 = tpu.matmul %67, %70, %cst_88 {dimension_numbers = #tpu.dot_dimension_numbers<[1], [0], [0], [1], [0, 0, 1, 1], [], []>} : vector<96x128xbf16>, vector<128x256xbf16>, vector<96x256xf32> -> vector<96x256xf32>
    %72 = arith.addf %68, %71 : vector<96x256xf32>
    %c0_89 = arith.constant 0 : index
    %c0_90 = arith.constant 0 : index
    %73 = vector.load %arg12[%c0_89, %c0_90] : memref<96x256xf32, #tpu.memory_space<vmem>>, vector<96x256xf32>
    tpu.vector_store %arg12[%c0_89, %c0_90], %72 {strides = array<i32>} : memref<96x256xf32, #tpu.memory_space<vmem>>, vector<96x256xf32>,
    %c2_91 = arith.constant 2 : index
    %c0_92 = arith.constant 0 : index
    %74 = vector.load %arg14[%c2_91, %c0_92] : memref<104x128xbf16, #tpu.memory_space<vmem>>, vector<96x128xbf16>
    %c0_93 = arith.constant 0 : index
    %c0_94 = arith.constant 0 : index
    %75 = vector.load %arg12[%c0_93, %c0_94] : memref<96x256xf32, #tpu.memory_space<vmem>>, vector<96x256xf32>
    %c2_95 = arith.constant 2 : index
    %c0_96 = arith.constant 0 : index
    %c0_97 = arith.constant 0 : index
    %76 = vector.load %arg4[%c2_95, %c0_96, %c0_97] : memref<5x128x256xbf16, #tpu.memory_space<vmem>>, vector<1x128x256xbf16>
    %77 = vector.shape_cast %76 : vector<1x128x256xbf16> to vector<128x256xbf16>
    %cst_98 = arith.constant dense<0.000000e+00> : vector<96x256xf32>
    %78 = tpu.matmul %74, %77, %cst_98 {dimension_numbers = #tpu.dot_dimension_numbers<[1], [0], [0], [1], [0, 0, 1, 1], [], []>} : vector<96x128xbf16>, vector<128x256xbf16>, vector<96x256xf32> -> vector<96x256xf32>
    %79 = arith.addf %75, %78 : vector<96x256xf32>
    %c0_99 = arith.constant 0 : index
    %c0_100 = arith.constant 0 : index
    %80 = vector.load %arg12[%c0_99, %c0_100] : memref<96x256xf32, #tpu.memory_space<vmem>>, vector<96x256xf32>
    tpu.vector_store %arg12[%c0_99, %c0_100], %79 {strides = array<i32>} : memref<96x256xf32, #tpu.memory_space<vmem>>, vector<96x256xf32>,
    %c3_101 = arith.constant 3 : index
    %c0_102 = arith.constant 0 : index
    %81 = vector.load %arg14[%c3_101, %c0_102] : memref<104x128xbf16, #tpu.memory_space<vmem>>, vector<96x128xbf16>
    %c0_103 = arith.constant 0 : index
    %c0_104 = arith.constant 0 : index
    %82 = vector.load %arg12[%c0_103, %c0_104] : memref<96x256xf32, #tpu.memory_space<vmem>>, vector<96x256xf32>
    %c3_105 = arith.constant 3 : index
    %c0_106 = arith.constant 0 : index
    %c0_107 = arith.constant 0 : index
    %83 = vector.load %arg4[%c3_105, %c0_106, %c0_107] : memref<5x128x256xbf16, #tpu.memory_space<vmem>>, vector<1x128x256xbf16>
    %84 = vector.shape_cast %83 : vector<1x128x256xbf16> to vector<128x256xbf16>
    %cst_108 = arith.constant dense<0.000000e+00> : vector<96x256xf32>
    %85 = tpu.matmul %81, %84, %cst_108 {dimension_numbers = #tpu.dot_dimension_numbers<[1], [0], [0], [1], [0, 0, 1, 1], [], []>} : vector<96x128xbf16>, vector<128x256xbf16>, vector<96x256xf32> -> vector<96x256xf32>
    %86 = arith.addf %82, %85 : vector<96x256xf32>
    %c0_109 = arith.constant 0 : index
    %c0_110 = arith.constant 0 : index
    %87 = vector.load %arg12[%c0_109, %c0_110] : memref<96x256xf32, #tpu.memory_space<vmem>>, vector<96x256xf32>
    tpu.vector_store %arg12[%c0_109, %c0_110], %86 {strides = array<i32>} : memref<96x256xf32, #tpu.memory_space<vmem>>, vector<96x256xf32>,
    %c4_111 = arith.constant 4 : index
    %c0_112 = arith.constant 0 : index
    %88 = vector.load %arg14[%c4_111, %c0_112] : memref<104x128xbf16, #tpu.memory_space<vmem>>, vector<96x128xbf16>
    %c0_113 = arith.constant 0 : index
    %c0_114 = arith.constant 0 : index
    %89 = vector.load %arg12[%c0_113, %c0_114] : memref<96x256xf32, #tpu.memory_space<vmem>>, vector<96x256xf32>
    %c4_115 = arith.constant 4 : index
    %c0_116 = arith.constant 0 : index
    %c0_117 = arith.constant 0 : index
    %90 = vector.load %arg4[%c4_115, %c0_116, %c0_117] : memref<5x128x256xbf16, #tpu.memory_space<vmem>>, vector<1x128x256xbf16>
    %91 = vector.shape_cast %90 : vector<1x128x256xbf16> to vector<128x256xbf16>
    %cst_118 = arith.constant dense<0.000000e+00> : vector<96x256xf32>
    %92 = tpu.matmul %88, %91, %cst_118 {dimension_numbers = #tpu.dot_dimension_numbers<[1], [0], [0], [1], [0, 0, 1, 1], [], []>} : vector<96x128xbf16>, vector<128x256xbf16>, vector<96x256xf32> -> vector<96x256xf32>
    %93 = arith.addf %89, %92 : vector<96x256xf32>
    %c0_119 = arith.constant 0 : index
    %c0_120 = arith.constant 0 : index
    %94 = vector.load %arg12[%c0_119, %c0_120] : memref<96x256xf32, #tpu.memory_space<vmem>>, vector<96x256xf32>
    tpu.vector_store %arg12[%c0_119, %c0_120], %93 {strides = array<i32>} : memref<96x256xf32, #tpu.memory_space<vmem>>, vector<96x256xf32>,
    %c0_121 = arith.constant 0 : index
    %c0_122 = arith.constant 0 : index
    %95 = vector.load %arg12[%c0_121, %c0_122] : memref<96x256xf32, #tpu.memory_space<vmem>>, vector<96x128xf32>
    %c0_123 = arith.constant 0 : index
    %c128_124 = arith.constant 128 : index
    %96 = vector.load %arg12[%c0_123, %c128_124] : memref<96x256xf32, #tpu.memory_space<vmem>>, vector<96x128xf32>
    %97 = arith.maximumf %95, %96 : vector<96x128xf32>
    %c0_125 = arith.constant 0 : index
    %c0_126 = arith.constant 0 : index
    %98 = vector.load %arg5[%c0_125, %c0_126] : memref<1x128xf32, #tpu.memory_space<vmem>>, vector<1x128xf32>
    %99 = vector.broadcast %98 : vector<1x128xf32> to vector<96x128xf32>
    %100 = arith.addf %97, %99 : vector<96x128xf32>
    %c0_127 = arith.constant 0 : index
    %c0_128 = arith.constant 0 : index
    %101 = vector.load %arg15[%c0_127, %c0_128] : memref<96x128xf32, #tpu.memory_space<vmem>>, vector<96x128xf32>
    tpu.vector_store %arg15[%c0_127, %c0_128], %100 {strides = array<i32>} : memref<96x128xf32, #tpu.memory_space<vmem>>, vector<96x128xf32>,
    %cst_129 = arith.constant 0.000000e+00 : f32
    %102 = vector.broadcast %cst_129 : f32 to vector<8x128xf32>
    %c0_130 = arith.constant 0 : index
    %c0_131 = arith.constant 0 : index
    %103 = tpu.strided_load %arg15[%c0_130, %c0_131] {strides = array<i32: 12, 1>} : memref<96x128xf32, #tpu.memory_space<vmem>>, vector<8x128xf32>
    %c1_132 = arith.constant 1 : index
    %c0_133 = arith.constant 0 : index
    %104 = tpu.strided_load %arg15[%c1_132, %c0_133] {strides = array<i32: 12, 1>} : memref<96x128xf32, #tpu.memory_space<vmem>>, vector<8x128xf32>
    %105 = arith.maximumf %103, %104 : vector<8x128xf32>
    %cst_134 = arith.constant 0.000000e+00 : f32
    %106 = vector.broadcast %cst_134 : f32 to vector<8x128xf32>
    %107 = arith.maximumf %105, %106 : vector<8x128xf32>
    %108 = arith.truncf %107 : vector<8x128xf32> to vector<8x128xbf16>
    %c0_135 = arith.constant 0 : index
    %c0_136 = arith.constant 0 : index
    %c0_137 = arith.constant 0 : index
    %109 = vector.load %arg6[%c0_135, %c0_136, %c0_137] : memref<4x128x128xbf16, #tpu.memory_space<vmem>>, vector<1x128x128xbf16>
    %110 = vector.shape_cast %109 : vector<1x128x128xbf16> to vector<128x128xbf16>
    %cst_138 = arith.constant dense<0.000000e+00> : vector<8x128xf32>
    %111 = tpu.matmul %108, %110, %cst_138 {dimension_numbers = #tpu.dot_dimension_numbers<[1], [0], [0], [1], [0, 0, 1, 1], [], []>} : vector<8x128xbf16>, vector<128x128xbf16>, vector<8x128xf32> -> vector<8x128xf32>
    %112 = arith.addf %102, %111 : vector<8x128xf32>
    %c2_139 = arith.constant 2 : index
    %c0_140 = arith.constant 0 : index
    %113 = tpu.strided_load %arg15[%c2_139, %c0_140] {strides = array<i32: 12, 1>} : memref<96x128xf32, #tpu.memory_space<vmem>>, vector<8x128xf32>
    %c3_141 = arith.constant 3 : index
    %c0_142 = arith.constant 0 : index
    %114 = tpu.strided_load %arg15[%c3_141, %c0_142] {strides = array<i32: 12, 1>} : memref<96x128xf32, #tpu.memory_space<vmem>>, vector<8x128xf32>
    %115 = arith.maximumf %113, %114 : vector<8x128xf32>
    %cst_143 = arith.constant 0.000000e+00 : f32
    %116 = vector.broadcast %cst_143 : f32 to vector<8x128xf32>
    %117 = arith.maximumf %115, %116 : vector<8x128xf32>
    %118 = arith.truncf %117 : vector<8x128xf32> to vector<8x128xbf16>
    %c1_144 = arith.constant 1 : index
    %c0_145 = arith.constant 0 : index
    %c0_146 = arith.constant 0 : index
    %119 = vector.load %arg6[%c1_144, %c0_145, %c0_146] : memref<4x128x128xbf16, #tpu.memory_space<vmem>>, vector<1x128x128xbf16>
    %120 = vector.shape_cast %119 : vector<1x128x128xbf16> to vector<128x128xbf16>
    %cst_147 = arith.constant dense<0.000000e+00> : vector<8x128xf32>
    %121 = tpu.matmul %118, %120, %cst_147 {dimension_numbers = #tpu.dot_dimension_numbers<[1], [0], [0], [1], [0, 0, 1, 1], [], []>} : vector<8x128xbf16>, vector<128x128xbf16>, vector<8x128xf32> -> vector<8x128xf32>
    %122 = arith.addf %112, %121 : vector<8x128xf32>
    %c4_148 = arith.constant 4 : index
    %c0_149 = arith.constant 0 : index
    %123 = tpu.strided_load %arg15[%c4_148, %c0_149] {strides = array<i32: 12, 1>} : memref<96x128xf32, #tpu.memory_space<vmem>>, vector<8x128xf32>
    %c5 = arith.constant 5 : index
    %c0_150 = arith.constant 0 : index
    %124 = tpu.strided_load %arg15[%c5, %c0_150] {strides = array<i32: 12, 1>} : memref<96x128xf32, #tpu.memory_space<vmem>>, vector<8x128xf32>
    %125 = arith.maximumf %123, %124 : vector<8x128xf32>
    %cst_151 = arith.constant 0.000000e+00 : f32
    %126 = vector.broadcast %cst_151 : f32 to vector<8x128xf32>
    %127 = arith.maximumf %125, %126 : vector<8x128xf32>
    %128 = arith.truncf %127 : vector<8x128xf32> to vector<8x128xbf16>
    %c2_152 = arith.constant 2 : index
    %c0_153 = arith.constant 0 : index
    %c0_154 = arith.constant 0 : index
    %129 = vector.load %arg6[%c2_152, %c0_153, %c0_154] : memref<4x128x128xbf16, #tpu.memory_space<vmem>>, vector<1x128x128xbf16>
    %130 = vector.shape_cast %129 : vector<1x128x128xbf16> to vector<128x128xbf16>
    %cst_155 = arith.constant dense<0.000000e+00> : vector<8x128xf32>
    %131 = tpu.matmul %128, %130, %cst_155 {dimension_numbers = #tpu.dot_dimension_numbers<[1], [0], [0], [1], [0, 0, 1, 1], [], []>} : vector<8x128xbf16>, vector<128x128xbf16>, vector<8x128xf32> -> vector<8x128xf32>
    %132 = arith.addf %122, %131 : vector<8x128xf32>
    %c6 = arith.constant 6 : index
    %c0_156 = arith.constant 0 : index
    %133 = tpu.strided_load %arg15[%c6, %c0_156] {strides = array<i32: 12, 1>} : memref<96x128xf32, #tpu.memory_space<vmem>>, vector<8x128xf32>
    %c7 = arith.constant 7 : index
    %c0_157 = arith.constant 0 : index
    %134 = tpu.strided_load %arg15[%c7, %c0_157] {strides = array<i32: 12, 1>} : memref<96x128xf32, #tpu.memory_space<vmem>>, vector<8x128xf32>
    %135 = arith.maximumf %133, %134 : vector<8x128xf32>
    %cst_158 = arith.constant 0.000000e+00 : f32
    %136 = vector.broadcast %cst_158 : f32 to vector<8x128xf32>
    %137 = arith.maximumf %135, %136 : vector<8x128xf32>
    %138 = arith.truncf %137 : vector<8x128xf32> to vector<8x128xbf16>
    %c3_159 = arith.constant 3 : index
    %c0_160 = arith.constant 0 : index
    %c0_161 = arith.constant 0 : index
    %139 = vector.load %arg6[%c3_159, %c0_160, %c0_161] : memref<4x128x128xbf16, #tpu.memory_space<vmem>>, vector<1x128x128xbf16>
    %140 = vector.shape_cast %139 : vector<1x128x128xbf16> to vector<128x128xbf16>
    %cst_162 = arith.constant dense<0.000000e+00> : vector<8x128xf32>
    %141 = tpu.matmul %138, %140, %cst_162 {dimension_numbers = #tpu.dot_dimension_numbers<[1], [0], [0], [1], [0, 0, 1, 1], [], []>} : vector<8x128xbf16>, vector<128x128xbf16>, vector<8x128xf32> -> vector<8x128xf32>
    %142 = arith.addf %132, %141 : vector<8x128xf32>
    %c0_163 = arith.constant 0 : index
    %c0_164 = arith.constant 0 : index
    %143 = vector.load %arg7[%c0_163, %c0_164] : memref<1x128xf32, #tpu.memory_space<vmem>>, vector<1x128xf32>
    %144 = vector.broadcast %143 : vector<1x128xf32> to vector<8x128xf32>
    %145 = arith.addf %142, %144 : vector<8x128xf32>
    %cst_165 = arith.constant 0.000000e+00 : f32
    %146 = vector.broadcast %cst_165 : f32 to vector<8x128xf32>
    %147 = arith.maximumf %145, %146 : vector<8x128xf32>
    %c0_166 = arith.constant 0 : index
    %c0_167 = arith.constant 0 : index
    %148 = vector.load %arg8[%c0_166, %c0_167] : memref<128x128xf32, #tpu.memory_space<vmem>>, vector<128x128xf32>
    %cst_168 = arith.constant dense<0.000000e+00> : vector<8x128xf32>
    %149 = tpu.matmul %147, %148, %cst_168 {dimension_numbers = #tpu.dot_dimension_numbers<[1], [0], [0], [1], [0, 0, 1, 1], [], []>} : vector<8x128xf32>, vector<128x128xf32>, vector<8x128xf32> -> vector<8x128xf32>
    %c0_169 = arith.constant 0 : index
    %c0_170 = arith.constant 0 : index
    %150 = vector.load %arg9[%c0_169, %c0_170] : memref<1x128xf32, #tpu.memory_space<vmem>>, vector<1x128xf32>
    %151 = vector.broadcast %150 : vector<1x128xf32> to vector<8x128xf32>
    %152 = arith.addf %149, %151 : vector<8x128xf32>
    %cst_171 = arith.constant dense<0xFF800000> : vector<8xf32>
    %153 = vector.multi_reduction <maximumf>, %152, %cst_171 [1] : vector<8x128xf32> to vector<8xf32>
    %154 = vector.shape_cast %153 : vector<8xf32> to vector<8x1xf32>
    %155 = vector.broadcast %154 : vector<8x1xf32> to vector<8x128xf32>
    %156 = arith.subf %152, %155 : vector<8x128xf32>
    %157 = math.exp %156 : vector<8x128xf32>
    %cst_172 = arith.constant dense<0.000000e+00> : vector<8xf32>
    %158 = vector.multi_reduction <add>, %157, %cst_172 [1] : vector<8x128xf32> to vector<8xf32>
    %159 = vector.shape_cast %158 : vector<8xf32> to vector<8x1xf32>
    %160 = math.log %159 : vector<8x1xf32>
    %161 = vector.broadcast %160 : vector<8x1xf32> to vector<8x128xf32>
    %162 = arith.subf %156, %161 : vector<8x128xf32>
    %c0_173 = arith.constant 0 : index
    %c0_174 = arith.constant 0 : index
    %163 = vector.load %arg10[%c0_173, %c0_174] : memref<8x128xf32, #tpu.memory_space<vmem>>, vector<8x128xf32>
    tpu.vector_store %arg10[%c0_173, %c0_174], %162 {strides = array<i32>} : memref<8x128xf32, #tpu.memory_space<vmem>>, vector<8x128xf32>,
    return
  }
  func.func @transform_0(%arg0: i32) -> (i32, i32, i32) {
    %c0_i32 = arith.constant 0 : i32
    %c0_i32_0 = arith.constant 0 : i32
    %c0_i32_1 = arith.constant 0 : i32
    return %arg0, %c0_i32, %c0_i32_0 : i32, i32, i32
  }
  func.func @transform_1(%arg0: i32) -> (i32, i32, i32) {
    %c0_i32 = arith.constant 0 : i32
    %c0_i32_0 = arith.constant 0 : i32
    %c0_i32_1 = arith.constant 0 : i32
    %c0_i32_2 = arith.constant 0 : i32
    return %c0_i32, %c0_i32_0, %c0_i32_1 : i32, i32, i32
  }
  func.func @transform_2(%arg0: i32) -> (i32, i32) {
    %c0_i32 = arith.constant 0 : i32
    %c0_i32_0 = arith.constant 0 : i32
    %c0_i32_1 = arith.constant 0 : i32
    return %c0_i32, %c0_i32_0 : i32, i32
  }
  func.func @transform_3(%arg0: i32) -> (i32, i32, i32) {
    %c0_i32 = arith.constant 0 : i32
    %c0_i32_0 = arith.constant 0 : i32
    %c0_i32_1 = arith.constant 0 : i32
    %c0_i32_2 = arith.constant 0 : i32
    return %c0_i32, %c0_i32_0, %c0_i32_1 : i32, i32, i32
  }
  func.func @transform_4(%arg0: i32) -> (i32, i32) {
    %c0_i32 = arith.constant 0 : i32
    %c0_i32_0 = arith.constant 0 : i32
    %c0_i32_1 = arith.constant 0 : i32
    return %c0_i32, %c0_i32_0 : i32, i32
  }
  func.func @transform_5(%arg0: i32) -> (i32, i32, i32) {
    %c0_i32 = arith.constant 0 : i32
    %c0_i32_0 = arith.constant 0 : i32
    %c0_i32_1 = arith.constant 0 : i32
    %c0_i32_2 = arith.constant 0 : i32
    return %c0_i32, %c0_i32_0, %c0_i32_1 : i32, i32, i32
  }
  func.func @transform_6(%arg0: i32) -> (i32, i32) {
    %c0_i32 = arith.constant 0 : i32
    %c0_i32_0 = arith.constant 0 : i32
    %c0_i32_1 = arith.constant 0 : i32
    return %c0_i32, %c0_i32_0 : i32, i32
  }
  func.func @transform_7(%arg0: i32) -> (i32, i32) {
    %c0_i32 = arith.constant 0 : i32
    %c0_i32_0 = arith.constant 0 : i32
    %c0_i32_1 = arith.constant 0 : i32
    return %c0_i32, %c0_i32_0 : i32, i32
  }
  func.func @transform_8(%arg0: i32) -> (i32, i32) {
    %c0_i32 = arith.constant 0 : i32
    %c0_i32_0 = arith.constant 0 : i32
    %c0_i32_1 = arith.constant 0 : i32
    return %c0_i32, %c0_i32_0 : i32, i32
  }
  func.func @transform_9(%arg0: i32) -> (i32, i32) {
    %c0_i32 = arith.constant 0 : i32
    %c0_i32_0 = arith.constant 0 : i32
    return %arg0, %c0_i32 : i32, i32
  }
}

</mosaic_0001>

<llo_original>
// kernel: _lambda_.1
$region0: #{_lambda_.1}
  #allocation0 [shape = 'u32[]', space=smem, size = 0x4, offset = 0x4, fixed_abs, tag = 'smem constant byte address 0x4 - core index']
  #allocation1 [shape = 'u32[144,128]{1,0:T(1,128)}', space=vmem, size = 0x12000, scoped, tag = 'internal scratch']
  #allocation2 [shape = 'f32[192,256]{1,0:T(8,128)}', space=vmem, size = 0x30000, scoped, tag = 'scratch operand']
  #allocation3 [shape = 'f32[96,256]{1,0:T(8,128)}', space=vmem, size = 0x18000, scoped, tag = 'scratch operand']
  #allocation4 [shape = 'f32[192,128]{1,0:T(8,128)}', space=vmem, size = 0x18000, scoped, tag = 'scratch operand']
  #allocation5 [shape = 'bf16[104,128]{1,0:T(8,128)(2,1)}', space=vmem, size = 0x6800, scoped, tag = 'scratch operand']
  #allocation6 [shape = 'f32[96,128]{1,0:T(8,128)}', space=vmem, size = 0xc000, scoped, tag = 'scratch operand']
  %s0 = inlined_call_operand.vmem [shape: bf16[16,28,28], index: 0, kind: input, shape index: {}]
  %s1 = inlined_call_operand.hbm [shape: bf16[5,28,256], index: 1, kind: input, shape index: {}]
  %s2 = inlined_call_operand.vmem [shape: f32[1,128], index: 2, kind: input, shape index: {}]
  %s3 = inlined_call_operand.vmem [shape: bf16[5,128,256], index: 3, kind: input, shape index: {}]
  %s4 = inlined_call_operand.vmem [shape: f32[1,128], index: 4, kind: input, shape index: {}]
  %s5 = inlined_call_operand.hbm [shape: bf16[4,128,128], index: 5, kind: input, shape index: {}]
  %s6 = inlined_call_operand.vmem [shape: f32[1,128], index: 6, kind: input, shape index: {}]
  %s7 = inlined_call_operand.hbm [shape: f32[128,128], index: 7, kind: input, shape index: {}]
  %s8 = inlined_call_operand.vmem [shape: f32[1,128], index: 8, kind: input, shape index: {}]
  %s9 = inlined_call_operand.hbm [shape: f32[16,128], index: 9, kind: output, shape index: {}]
  %s10 = sld [smem:[#allocation0]]
  $region81: #{_lambda_.1} parent=0
    _
  %s12 = ssub.s32 1, %s10
  %s13 = scalar_select 0, %s12, %s10
  $region1: #{_lambda_.1} parent=0
    #allocation7 [shape = 'u8[81920]{0}', space=vmem, size = 0x14000, scoped, tag = 'input window, operand 1, single buffered']
    #allocation8 [shape = 's32[2]{0}', space=sflag, size = 0x8, scoped, tag = 'scoped memory for _lambda_.1']
    #allocation9 [shape = 's32[2]{0}', space=sflag, size = 0x8, scoped, tag = 'scoped memory for _lambda_.1']
    #allocation10 [shape = 'u8[131072]{0}', space=vmem, size = 0x20000, scoped, tag = 'input window, operand 5, single buffered']
    #allocation11 [shape = 's32[1]{0}', space=sflag, size = 0x4, scoped, tag = 'scoped memory for _lambda_.1']
    #allocation12 [shape = 'u8[65536]{0}', space=vmem, size = 0x10000, scoped, tag = 'input window, operand 7, single buffered']
    #allocation13 [shape = 'u8[8192]{0}', space=vmem, size = 0x2000, scoped, tag = 'output window, operand 0']
    %14 = vsyncpa [#allocation8], 0
    %15 = vsyncpa [#allocation11], 0
    %16 = vsyncpa [#allocation9], 0
    %s17 = scalar_lea.sflag [#allocation9], 1
    %18 = vsyncpa %s17, 0
    loop: start=0, step=1, limit=4
    $region2: #{_lambda_.1} parent=1 // loop_pre_header
      _
    $region3: #{_lambda_.1} parent=1 // loop_header
      %s20 = sphi 0, %s24
      %p21 = scmp.ge.s32.totalorder %s20, 4
      %s30 = sphi 0, %s32
      %s33 = sphi 0, %s30
      %s34 = sphi 0, %s33
      %s50 = sphi 0, %s34
      %s54 = sphi 0, %s54
      %s56 = sphi 0, %s54
      %s57 = sphi 0, %s56
      %s71 = sphi 0, %s57
      %s75 = sphi 0, %s75
      %s77 = sphi 0, %s75
      %s78 = sphi 0, %s77
      %s92 = sphi 0, %s78
      %s96 = sphi 0, %s96
      %s98 = sphi 0, %s96
      %s99 = sphi 0, %s98
      %s113 = sphi 0, %s99
      %s117 = sphi 0, %s117
      %s119 = sphi 0, %s117
      %s120 = sphi 0, %s119
      %s134 = sphi 0, %s120
      %s138 = sphi 0, %s138
      %s140 = sphi 0, %s138
      %s141 = sphi 0, %s140
      %s155 = sphi 0, %s141
      %s159 = sphi 0, %s159
      %s161 = sphi 0, %s159
      %s162 = sphi 0, %s161
      %s176 = sphi 0, %s162
      %s180 = sphi 0, %s180
      %s182 = sphi 0, %s180
      %s183 = sphi 0, %s182
      %s197 = sphi 0, %s183
      %s201 = sphi 0, %s201
      %s203 = sphi 0, %s201
      %s204 = sphi 0, %s203
      %s218 = sphi 0, %s204
      %s224 = sphi 0, %s226
      %s227 = sphi 0, %s224
      %s228 = sphi 0, %s227
      %s244 = sphi 0, %s228
    $region4: #{_lambda_.1} parent=1 // loop_header_branch
      %23 = sbr.rel (%p21) target = $region8
    $region5: #{_lambda_.1} parent=1 // loop_body
      %s25 = ssub.s32 %s20, 1
      %s26 = ssub.s32 %s20, 2
      %s27 = sadd.s32 %s20, 1
      %s28 = ssub.s32 %s20, %s27
      %p29 = scmp.eq.s32.totalorder %s28, 0
      %s31 = sadd.s32 %s30, 1
      %s32 = scalar_select %p29, %s30, %s31
      %p35 = pneg %p29
      %p36 = scmp.eq.s32.totalorder %s20, 1
      %p37 = por %p35, %p36
      %p38 = scmp.ne.s32.totalorder %s30, %s33
      %p39 = scmp.eq.s32.totalorder %s20, 0
      %p40 = por %p38, %p39
      %p41 = scmp.ne.s32.totalorder %s30, %s33
      %p42 = scmp.eq.s32.totalorder %s25, 1
      %p43 = por %p41, %p42
      %p44 = scmp.ne.s32.totalorder %s33, %s34
      %p45 = scmp.eq.s32.totalorder %s25, 0
      %p46 = por %p44, %p45
      %p47 = scmp.ne.s32.totalorder %s33, %s34
      %p48 = scmp.eq.s32.totalorder %s26, 1
      %p49 = por %p47, %p48
      %p51 = scmp.ne.s32.totalorder %s34, %s50
      %p52 = scmp.eq.s32.totalorder %s26, 0
      %p53 = por %p51, %p52
      %s55 = sadd.s32 %s54, 1
      %p58 = scmp.eq.s32.totalorder %s20, 1
      %p59 = scmp.ne.s32.totalorder %s54, %s56
      %p60 = scmp.eq.s32.totalorder %s20, 0
      %p61 = por %p59, %p60
      %p62 = scmp.ne.s32.totalorder %s54, %s56
      %p63 = scmp.eq.s32.totalorder %s25, 1
      %p64 = por %p62, %p63
      %p65 = scmp.ne.s32.totalorder %s56, %s57
      %p66 = scmp.eq.s32.totalorder %s25, 0
      %p67 = por %p65, %p66
      %p68 = scmp.ne.s32.totalorder %s56, %s57
      %p69 = scmp.eq.s32.totalorder %s26, 1
      %p70 = por %p68, %p69
      %p72 = scmp.ne.s32.totalorder %s57, %s71
      %p73 = scmp.eq.s32.totalorder %s26, 0
      %p74 = por %p72, %p73
      %s76 = sadd.s32 %s75, 1
      %p79 = scmp.eq.s32.totalorder %s20, 1
      %p80 = scmp.ne.s32.totalorder %s75, %s77
      %p81 = scmp.eq.s32.totalorder %s20, 0
      %p82 = por %p80, %p81
      %p83 = scmp.ne.s32.totalorder %s75, %s77
      %p84 = scmp.eq.s32.totalorder %s25, 1
      %p85 = por %p83, %p84
      %p86 = scmp.ne.s32.totalorder %s77, %s78
      %p87 = scmp.eq.s32.totalorder %s25, 0
      %p88 = por %p86, %p87
      %p89 = scmp.ne.s32.totalorder %s77, %s78
      %p90 = scmp.eq.s32.totalorder %s26, 1
      %p91 = por %p89, %p90
      %p93 = scmp.ne.s32.totalorder %s78, %s92
      %p94 = scmp.eq.s32.totalorder %s26, 0
      %p95 = por %p93, %p94
      %s97 = sadd.s32 %s96, 1
      %p100 = scmp.eq.s32.totalorder %s20, 1
      %p101 = scmp.ne.s32.totalorder %s96, %s98
      %p102 = scmp.eq.s32.totalorder %s20, 0
      %p103 = por %p101, %p102
      %p104 = scmp.ne.s32.totalorder %s96, %s98
      %p105 = scmp.eq.s32.totalorder %s25, 1
      %p106 = por %p104, %p105
      %p107 = scmp.ne.s32.totalorder %s98, %s99
      %p108 = scmp.eq.s32.totalorder %s25, 0
      %p109 = por %p107, %p108
      %p110 = scmp.ne.s32.totalorder %s98, %s99
      %p111 = scmp.eq.s32.totalorder %s26, 1
      %p112 = por %p110, %p111
      %p114 = scmp.ne.s32.totalorder %s99, %s113
      %p115 = scmp.eq.s32.totalorder %s26, 0
      %p116 = por %p114, %p115
      %s118 = sadd.s32 %s117, 1
      %p121 = scmp.eq.s32.totalorder %s20, 1
      %p122 = scmp.ne.s32.totalorder %s117, %s119
      %p123 = scmp.eq.s32.totalorder %s20, 0
      %p124 = por %p122, %p123
      %p125 = scmp.ne.s32.totalorder %s117, %s119
      %p126 = scmp.eq.s32.totalorder %s25, 1
      %p127 = por %p125, %p126
      %p128 = scmp.ne.s32.totalorder %s119, %s120
      %p129 = scmp.eq.s32.totalorder %s25, 0
      %p130 = por %p128, %p129
      %p131 = scmp.ne.s32.totalorder %s119, %s120
      %p132 = scmp.eq.s32.totalorder %s26, 1
      %p133 = por %p131, %p132
      %p135 = scmp.ne.s32.totalorder %s120, %s134
      %p136 = scmp.eq.s32.totalorder %s26, 0
      %p137 = por %p135, %p136
      %s139 = sadd.s32 %s138, 1
      %p142 = scmp.eq.s32.totalorder %s20, 1
      %p143 = scmp.ne.s32.totalorder %s138, %s140
      %p144 = scmp.eq.s32.totalorder %s20, 0
      %p145 = por %p143, %p144
      %p146 = scmp.ne.s32.totalorder %s138, %s140
      %p147 = scmp.eq.s32.totalorder %s25, 1
      %p148 = por %p146, %p147
      %p149 = scmp.ne.s32.totalorder %s140, %s141
      %p150 = scmp.eq.s32.totalorder %s25, 0
      %p151 = por %p149, %p150
      %p152 = scmp.ne.s32.totalorder %s140, %s141
      %p153 = scmp.eq.s32.totalorder %s26, 1
      %p154 = por %p152, %p153
      %p156 = scmp.ne.s32.totalorder %s141, %s155
      %p157 = scmp.eq.s32.totalorder %s26, 0
      %p158 = por %p156, %p157
      %s160 = sadd.s32 %s159, 1
      %p163 = scmp.eq.s32.totalorder %s20, 1
      %p164 = scmp.ne.s32.totalorder %s159, %s161
      %p165 = scmp.eq.s32.totalorder %s20, 0
      %p166 = por %p164, %p165
      %p167 = scmp.ne.s32.totalorder %s159, %s161
      %p168 = scmp.eq.s32.totalorder %s25, 1
      %p169 = por %p167, %p168
      %p170 = scmp.ne.s32.totalorder %s161, %s162
      %p171 = scmp.eq.s32.totalorder %s25, 0
      %p172 = por %p170, %p171
      %p173 = scmp.ne.s32.totalorder %s161, %s162
      %p174 = scmp.eq.s32.totalorder %s26, 1
      %p175 = por %p173, %p174
      %p177 = scmp.ne.s32.totalorder %s162, %s176
      %p178 = scmp.eq.s32.totalorder %s26, 0
      %p179 = por %p177, %p178
      %s181 = sadd.s32 %s180, 1
      %p184 = scmp.eq.s32.totalorder %s20, 1
      %p185 = scmp.ne.s32.totalorder %s180, %s182
      %p186 = scmp.eq.s32.totalorder %s20, 0
      %p187 = por %p185, %p186
      %p188 = scmp.ne.s32.totalorder %s180, %s182
      %p189 = scmp.eq.s32.totalorder %s25, 1
      %p190 = por %p188, %p189
      %p191 = scmp.ne.s32.totalorder %s182, %s183
      %p192 = scmp.eq.s32.totalorder %s25, 0
      %p193 = por %p191, %p192
      %p194 = scmp.ne.s32.totalorder %s182, %s183
      %p195 = scmp.eq.s32.totalorder %s26, 1
      %p196 = por %p194, %p195
      %p198 = scmp.ne.s32.totalorder %s183, %s197
      %p199 = scmp.eq.s32.totalorder %s26, 0
      %p200 = por %p198, %p199
      %s202 = sadd.s32 %s201, 1
      %p205 = scmp.eq.s32.totalorder %s20, 1
      %p206 = scmp.ne.s32.totalorder %s201, %s203
      %p207 = scmp.eq.s32.totalorder %s20, 0
      %p208 = por %p206, %p207
      %p209 = scmp.ne.s32.totalorder %s201, %s203
      %p210 = scmp.eq.s32.totalorder %s25, 1
      %p211 = por %p209, %p210
      %p212 = scmp.ne.s32.totalorder %s203, %s204
      %p213 = scmp.eq.s32.totalorder %s25, 0
      %p214 = por %p212, %p213
      %p215 = scmp.ne.s32.totalorder %s203, %s204
      %p216 = scmp.eq.s32.totalorder %s26, 1
      %p217 = por %p215, %p216
      %p219 = scmp.ne.s32.totalorder %s204, %s218
      %p220 = scmp.eq.s32.totalorder %s26, 0
      %p221 = por %p219, %p220
      %s222 = ssub.s32 %s20, %s27
      %p223 = scmp.eq.s32.totalorder %s222, 0
      %s225 = sadd.s32 %s224, 1
      %s226 = scalar_select %p223, %s224, %s225
      %p229 = pneg %p223
      %p230 = scmp.eq.s32.totalorder %s20, 1
      %p231 = por %p229, %p230
      %p232 = scmp.ne.s32.totalorder %s224, %s227
      %p233 = scmp.eq.s32.totalorder %s20, 0
      %p234 = por %p232, %p233
      %p235 = scmp.ne.s32.totalorder %s224, %s227
      %p236 = scmp.eq.s32.totalorder %s25, 1
      %p237 = por %p235, %p236
      %p238 = scmp.ne.s32.totalorder %s227, %s228
      %p239 = scmp.eq.s32.totalorder %s25, 0
      %p240 = por %p238, %p239
      %p241 = scmp.ne.s32.totalorder %s227, %s228
      %p242 = scmp.eq.s32.totalorder %s26, 1
      %p243 = por %p241, %p242
      %p245 = scmp.ne.s32.totalorder %s228, %s244
      %p246 = scmp.eq.s32.totalorder %s26, 0
      %p247 = por %p245, %p246
      %p248 = scmp.le.s32.totalorder 1, %s20
      %p249 = scmp.lt.s32.totalorder %s20, 3
      %p250 = pnand %p248, %p249
      %p251 = pneg %p250
      // Predicated region
      $region9: #{_lambda_.1} parent=5 // pred_check
        _
      $region10: #{_lambda_.1} parent=5 // pred_check_branch
        %253 = sbr.rel (%p250) target = $region12
      $region11: #{_lambda_.1} parent=5 // pred_region
        %s254 = ssub.s32 %s20, 1
        // Predicated region
        $region13: #{_lambda_.1} parent=11 // pred_check
          %p255 = pneg %p67
        $region14: #{_lambda_.1} parent=11 // pred_check_branch
          %257 = sbr.rel (%p255) target = $region16
        $region15: #{_lambda_.1} parent=11 // pred_region
          %s259 = ssub.s32 2560, 2560
          %260 = vsyncadd [#allocation8], %s259
          %s261 = sshll.u32 [#allocation7], 4
          %s262 = int_to_ptr.vmem [resolvable:$true] %s261
          %267 = dma.hbm_to_vmem [thread:$0]  %s1, 2560, %s262, [#allocation8], 128, 128, 8
        $region16: #{_lambda_.1} parent=11 // pred_fallthru
          _
        // Predicated region
        $region17: #{_lambda_.1} parent=11 // pred_check
          %p268 = pneg %p88
        $region18: #{_lambda_.1} parent=11 // pred_check_branch
          %270 = sbr.rel (%p268) target = $region20
        $region19: #{_lambda_.1} parent=11 // pred_region
          _
        $region20: #{_lambda_.1} parent=11 // pred_fallthru
          _
        // Predicated region
        $region21: #{_lambda_.1} parent=11 // pred_check
          %p271 = pneg %p109
        $region22: #{_lambda_.1} parent=11 // pred_check_branch
          %273 = sbr.rel (%p271) target = $region24
        $region23: #{_lambda_.1} parent=11 // pred_region
          _
        $region24: #{_lambda_.1} parent=11 // pred_fallthru
          _
        // Predicated region
        $region25: #{_lambda_.1} parent=11 // pred_check
          %p274 = pneg %p130
        $region26: #{_lambda_.1} parent=11 // pred_check_branch
          %276 = sbr.rel (%p274) target = $region28
        $region27: #{_lambda_.1} parent=11 // pred_region
          _
        $region28: #{_lambda_.1} parent=11 // pred_fallthru
          _
        // Predicated region
        $region29: #{_lambda_.1} parent=11 // pred_check
          %p277 = pneg %p151
        $region30: #{_lambda_.1} parent=11 // pred_check_branch
          %279 = sbr.rel (%p277) target = $region32
        $region31: #{_lambda_.1} parent=11 // pred_region
          %s281 = ssub.s32 4096, 4096
          %282 = vsyncadd [#allocation11], %s281
          %s283 = sshll.u32 [#allocation10], 4
          %s284 = int_to_ptr.vmem [resolvable:$true] %s283
          %289 = dma.hbm_to_vmem [thread:$0]  %s5, 4096, %s284, [#allocation11], 64, 64, 4
        $region32: #{_lambda_.1} parent=11 // pred_fallthru
          _
        // Predicated region
        $region33: #{_lambda_.1} parent=11 // pred_check
          %p290 = pneg %p172
        $region34: #{_lambda_.1} parent=11 // pred_check_branch
          %292 = sbr.rel (%p290) target = $region36
        $region35: #{_lambda_.1} parent=11 // pred_region
          _
        $region36: #{_lambda_.1} parent=11 // pred_fallthru
          _
        // Predicated region
        $region37: #{_lambda_.1} parent=11 // pred_check
          %p293 = pneg %p193
        $region38: #{_lambda_.1} parent=11 // pred_check_branch
          %295 = sbr.rel (%p293) target = $region40
        $region39: #{_lambda_.1} parent=11 // pred_region
          %s297 = ssub.s32 2048, 2048
          %298 = vsyncadd [#allocation11], %s297
          %s299 = sshll.u32 [#allocation12], 4
          %s300 = int_to_ptr.vmem [resolvable:$true] %s299
          %305 = dma.hbm_to_vmem [thread:$0]  %s7, 2048, %s300, [#allocation11], 128, 128, 8
        $region40: #{_lambda_.1} parent=11 // pred_fallthru
          _
        // Predicated region
        $region41: #{_lambda_.1} parent=11 // pred_check
          %p306 = pneg %p214
        $region42: #{_lambda_.1} parent=11 // pred_check_branch
          %308 = sbr.rel (%p306) target = $region44
        $region43: #{_lambda_.1} parent=11 // pred_region
          _
        $region44: #{_lambda_.1} parent=11 // pred_fallthru
          _
      $region12: #{_lambda_.1} parent=5 // pred_fallthru
        _
      %p309 = scmp.lt.s32.totalorder %s20, 2
      // Predicated region
      $region45: #{_lambda_.1} parent=5 // pred_check
        %p310 = pneg %p309
      $region46: #{_lambda_.1} parent=5 // pred_check_branch
        %312 = sbr.rel (%p310) target = $region48
      $region47: #{_lambda_.1} parent=5 // pred_region
        // Predicated region
        $region49: #{_lambda_.1} parent=47 // pred_check
          %p313 = pneg %p40
        $region50: #{_lambda_.1} parent=47 // pred_check_branch
          %315 = sbr.rel (%p313) target = $region52
        $region51: #{_lambda_.1} parent=47 // pred_region
          %s316 = smul.u32 8, %s20
          %p317 = scmp.lt.s32.totalorder %s316, 15
          %s318 = scalar_select %p317, %s316, 15
          %s319 = smul.addr %s318, 4
          %s320 = smul.addr %s319, 4
          %s321 = scalar_lea.vmem %s0, %s320
          %s322 = smul.u32 8, %s20
        $region52: #{_lambda_.1} parent=47 // pred_fallthru
          _
      $region48: #{_lambda_.1} parent=5 // pred_fallthru
        _
      %p323 = scmp.le.s32.totalorder 1, %s20
      %p324 = scmp.lt.s32.totalorder %s20, 3
      %p325 = pnand %p323, %p324
      %p326 = pneg %p325
      // Predicated region
      $region53: #{_lambda_.1} parent=5 // pred_check
        _
      $region54: #{_lambda_.1} parent=5 // pred_check_branch
        %328 = sbr.rel (%p325) target = $region56
      $region55: #{_lambda_.1} parent=5 // pred_region
        %s329 = ssub.s32 %s20, 1
        // Predicated region
        $region57: #{_lambda_.1} parent=55 // pred_check
          %p330 = pneg %p67
        $region58: #{_lambda_.1} parent=55 // pred_check_branch
          %332 = sbr.rel (%p330) target = $region60
        $region59: #{_lambda_.1} parent=55 // pred_region
          %333 = dma.done [#allocation8], 2560
        $region60: #{_lambda_.1} parent=55 // pred_fallthru
          _
        // Predicated region
        $region61: #{_lambda_.1} parent=55 // pred_check
          %p334 = pneg %p151
        $region62: #{_lambda_.1} parent=55 // pred_check_branch
          %336 = sbr.rel (%p334) target = $region64
        $region63: #{_lambda_.1} parent=55 // pred_region
          %337 = dma.done [#allocation11], 4096
        $region64: #{_lambda_.1} parent=55 // pred_fallthru
          _
        // Predicated region
        $region65: #{_lambda_.1} parent=55 // pred_check
          %p338 = pneg %p193
        $region66: #{_lambda_.1} parent=55 // pred_check_branch
          %340 = sbr.rel (%p338) target = $region68
        $region67: #{_lambda_.1} parent=55 // pred_region
          %341 = dma.done [#allocation11], 2048
        $region68: #{_lambda_.1} parent=55 // pred_fallthru
          _
        %s342 = smul.u32 8, %s25
        %p343 = scmp.lt.s32.totalorder %s342, 15
        %s344 = scalar_select %p343, %s342, 15
        %s345 = smul.addr %s344, 4
        %s346 = smul.addr %s345, 4
        %s347 = scalar_lea.vmem %s0, %s346
        %p348 = pneg %p46
        %p349 = pneg %p43
        %p350 = pneg %p67
        %p351 = pneg %p64
        %p352 = pneg %p88
        %p353 = pneg %p85
        %p354 = pneg %p109
        %p355 = pneg %p106
        %p356 = pneg %p130
        %p357 = pneg %p127
        %p358 = pneg %p151
        %p359 = pneg %p148
        %p360 = pneg %p172
        %p361 = pneg %p169
        %p362 = pneg %p193
        %p363 = pneg %p190
        %p364 = pneg %p214
        %p365 = pneg %p211
        %p366 = pneg %p240
        %p367 = pneg %p237
        %s368 = sand.u32 %s227, 1
        %s369 = scalar_lea.sflag [#allocation9], %s368
        %s370 = sand.u32 %s227, 1
        %s371 = smul.addr %s370, 8
        %s372 = scalar_lea.vmem [#allocation13], %s371
        %s373 = smul.u32 8, %s25
        %p374 = scmp.lt.s32.totalorder %s373, 15
        %s375 = scalar_select %p374, %s373, 15
        %s376 = smul.addr %s375, 4
        %s377 = smul.addr %s376, 4
        %s378 = scalar_lea.vmem %s0, %s377
        %s379 = smul.u32 8, %s25
        %381 = vst [vmem:[#allocation2] sm:$0xff] 0.0
        %382 = vst [vmem:[#allocation2 + $0x8] sm:$0xff] 0.0
        %383 = vst [vmem:[#allocation2 + $0x10] sm:$0xff] 0.0
        %384 = vst [vmem:[#allocation2 + $0x18] sm:$0xff] 0.0
        %385 = vst [vmem:[#allocation2 + $0x20] sm:$0xff] 0.0
        %386 = vst [vmem:[#allocation2 + $0x28] sm:$0xff] 0.0
        %387 = vst [vmem:[#allocation2 + $0x30] sm:$0xff] 0.0
        %388 = vst [vmem:[#allocation2 + $0x38] sm:$0xff] 0.0
        %389 = vst [vmem:[#allocation2 + $0x40] sm:$0xff] 0.0
        %390 = vst [vmem:[#allocation2 + $0x48] sm:$0xff] 0.0
        %391 = vst [vmem:[#allocation2 + $0x50] sm:$0xff] 0.0
        %392 = vst [vmem:[#allocation2 + $0x58] sm:$0xff] 0.0
        %393 = vst [vmem:[#allocation2 + $0x60] sm:$0xff] 0.0
        %394 = vst [vmem:[#allocation2 + $0x68] sm:$0xff] 0.0
        %395 = vst [vmem:[#allocation2 + $0x70] sm:$0xff] 0.0
        %396 = vst [vmem:[#allocation2 + $0x78] sm:$0xff] 0.0
        %397 = vst [vmem:[#allocation2 + $0x80] sm:$0xff] 0.0
        %398 = vst [vmem:[#allocation2 + $0x88] sm:$0xff] 0.0
        %399 = vst [vmem:[#allocation2 + $0x90] sm:$0xff] 0.0
        %400 = vst [vmem:[#allocation2 + $0x98] sm:$0xff] 0.0
        %401 = vst [vmem:[#allocation2 + $0xa0] sm:$0xff] 0.0
        %402 = vst [vmem:[#allocation2 + $0xa8] sm:$0xff] 0.0
        %403 = vst [vmem:[#allocation2 + $0xb0] sm:$0xff] 0.0
        %404 = vst [vmem:[#allocation2 + $0xb8] sm:$0xff] 0.0
        %405 = vst [vmem:[#allocation2 + $0xc0] sm:$0xff] 0.0
        %406 = vst [vmem:[#allocation2 + $0xc8] sm:$0xff] 0.0
        %407 = vst [vmem:[#allocation2 + $0xd0] sm:$0xff] 0.0
        %408 = vst [vmem:[#allocation2 + $0xd8] sm:$0xff] 0.0
        %409 = vst [vmem:[#allocation2 + $0xe0] sm:$0xff] 0.0
        %410 = vst [vmem:[#allocation2 + $0xe8] sm:$0xff] 0.0
        %411 = vst [vmem:[#allocation2 + $0xf0] sm:$0xff] 0.0
        %412 = vst [vmem:[#allocation2 + $0xf8] sm:$0xff] 0.0
        %413 = vst [vmem:[#allocation2 + $0x100] sm:$0xff] 0.0
        %414 = vst [vmem:[#allocation2 + $0x108] sm:$0xff] 0.0
        %415 = vst [vmem:[#allocation2 + $0x110] sm:$0xff] 0.0
        %416 = vst [vmem:[#allocation2 + $0x118] sm:$0xff] 0.0
        %417 = vst [vmem:[#allocation2 + $0x120] sm:$0xff] 0.0
        %418 = vst [vmem:[#allocation2 + $0x128] sm:$0xff] 0.0
        %419 = vst [vmem:[#allocation2 + $0x130] sm:$0xff] 0.0
        %420 = vst [vmem:[#allocation2 + $0x138] sm:$0xff] 0.0
        %421 = vst [vmem:[#allocation2 + $0x140] sm:$0xff] 0.0
        %422 = vst [vmem:[#allocation2 + $0x148] sm:$0xff] 0.0
        %423 = vst [vmem:[#allocation2 + $0x150] sm:$0xff] 0.0
        %424 = vst [vmem:[#allocation2 + $0x158] sm:$0xff] 0.0
        %425 = vst [vmem:[#allocation2 + $0x160] sm:$0xff] 0.0
        %426 = vst [vmem:[#allocation2 + $0x168] sm:$0xff] 0.0
        %427 = vst [vmem:[#allocation2 + $0x170] sm:$0xff] 0.0
        %428 = vst [vmem:[#allocation2 + $0x178] sm:$0xff] 0.0
        %v429 = vld [vmem:[%s378] sm:$0xf]
        %v430 = vld [vmem:[%s378 + $0x4] sm:$0xf]
        %v431 = vld [vmem:[%s378 + $0x8] sm:$0xf]
        %v432 = vld [vmem:[%s378 + $0x10] sm:$0xf]
        %v433 = vld [vmem:[%s378 + $0x14] sm:$0xf]
        %v434 = vld [vmem:[%s378 + $0x18] sm:$0xf]
        %v435 = vld [vmem:[%s378 + $0x20] sm:$0xf]
        %v436 = vld [vmem:[%s378 + $0x24] sm:$0xf]
        %v437 = vld [vmem:[%s378 + $0x28] sm:$0xf]
        %v438 = vld [vmem:[%s378 + $0x30] sm:$0xf]
        %v439 = vld [vmem:[%s378 + $0x34] sm:$0xf]
        %v440 = vld [vmem:[%s378 + $0x38] sm:$0xf]
        %v441 = vld [vmem:[%s378 + $0x40] sm:$0xf]
        %v442 = vld [vmem:[%s378 + $0x44] sm:$0xf]
        %v443 = vld [vmem:[%s378 + $0x48] sm:$0xf]
        %v444 = vld [vmem:[%s378 + $0x50] sm:$0xf]
        %v445 = vld [vmem:[%s378 + $0x54] sm:$0xf]
        %v446 = vld [vmem:[%s378 + $0x58] sm:$0xf]
        %v447 = vld [vmem:[%s378 + $0x60] sm:$0xf]
        %v448 = vld [vmem:[%s378 + $0x64] sm:$0xf]
        %v449 = vld [vmem:[%s378 + $0x68] sm:$0xf]
        %v450 = vld [vmem:[%s378 + $0x70] sm:$0xf]
        %v451 = vld [vmem:[%s378 + $0x74] sm:$0xf]
        %v452 = vld [vmem:[%s378 + $0x78] sm:$0xf]
        %v453 = vld [vmem:[#allocation2] sm:$0xff]
        %v454 = vld [vmem:[#allocation2 + $0x8] sm:$0xff]
        %v455 = vld [vmem:[#allocation2 + $0x10] sm:$0xff]
        %v456 = vld [vmem:[#allocation2 + $0x18] sm:$0xff]
        %v457 = vld [vmem:[#allocation2 + $0x20] sm:$0xff]
        %v458 = vld [vmem:[#allocation2 + $0x28] sm:$0xff]
        %v459 = vld [vmem:[#allocation2 + $0x30] sm:$0xff]
        %v460 = vld [vmem:[#allocation2 + $0x38] sm:$0xff]
        %v461 = vld [vmem:[#allocation2 + $0x40] sm:$0xff]
        %v462 = vld [vmem:[#allocation2 + $0x48] sm:$0xff]
        %v463 = vld [vmem:[#allocation2 + $0x50] sm:$0xff]
        %v464 = vld [vmem:[#allocation2 + $0x58] sm:$0xff]
        %v465 = vld [vmem:[#allocation2 + $0x60] sm:$0xff]
        %v466 = vld [vmem:[#allocation2 + $0x68] sm:$0xff]
        %v467 = vld [vmem:[#allocation2 + $0x70] sm:$0xff]
        %v468 = vld [vmem:[#allocation2 + $0x78] sm:$0xff]
        %v469 = vld [vmem:[#allocation2 + $0x80] sm:$0xff]
        %v470 = vld [vmem:[#allocation2 + $0x88] sm:$0xff]
        %v471 = vld [vmem:[#allocation2 + $0x90] sm:$0xff]
        %v472 = vld [vmem:[#allocation2 + $0x98] sm:$0xff]
        %v473 = vld [vmem:[#allocation2 + $0xa0] sm:$0xff]
        %v474 = vld [vmem:[#allocation2 + $0xa8] sm:$0xff]
        %v475 = vld [vmem:[#allocation2 + $0xb0] sm:$0xff]
        %v476 = vld [vmem:[#allocation2 + $0xb8] sm:$0xff]
        %v477 = vld [vmem:[#allocation2 + $0xc0] sm:$0xff]
        %v478 = vld [vmem:[#allocation2 + $0xc8] sm:$0xff]
        %v479 = vld [vmem:[#allocation2 + $0xd0] sm:$0xff]
        %v480 = vld [vmem:[#allocation2 + $0xd8] sm:$0xff]
        %v481 = vld [vmem:[#allocation2 + $0xe0] sm:$0xff]
        %v482 = vld [vmem:[#allocation2 + $0xe8] sm:$0xff]
        %v483 = vld [vmem:[#allocation2 + $0xf0] sm:$0xff]
        %v484 = vld [vmem:[#allocation2 + $0xf8] sm:$0xff]
        %v485 = vld [vmem:[#allocation2 + $0x100] sm:$0xff]
        %v486 = vld [vmem:[#allocation2 + $0x108] sm:$0xff]
        %v487 = vld [vmem:[#allocation2 + $0x110] sm:$0xff]
        %v488 = vld [vmem:[#allocation2 + $0x118] sm:$0xff]
        %v489 = vld [vmem:[#allocation2 + $0x120] sm:$0xff]
        %v490 = vld [vmem:[#allocation2 + $0x128] sm:$0xff]
        %v491 = vld [vmem:[#allocation2 + $0x130] sm:$0xff]
        %v492 = vld [vmem:[#allocation2 + $0x138] sm:$0xff]
        %v493 = vld [vmem:[#allocation2 + $0x140] sm:$0xff]
        %v494 = vld [vmem:[#allocation2 + $0x148] sm:$0xff]
        %v495 = vld [vmem:[#allocation2 + $0x150] sm:$0xff]
        %v496 = vld [vmem:[#allocation2 + $0x158] sm:$0xff]
        %v497 = vld [vmem:[#allocation2 + $0x160] sm:$0xff]
        %v498 = vld [vmem:[#allocation2 + $0x168] sm:$0xff]
        %v499 = vld [vmem:[#allocation2 + $0x170] sm:$0xff]
        %v500 = vld [vmem:[#allocation2 + $0x178] sm:$0xff]
        %v501 = vld [vmem:[#allocation7] sm:$0xff]
        %v502 = vld [vmem:[#allocation7 + $0x8] sm:$0xff]
        %v503 = vld [vmem:[#allocation7 + $0x10] sm:$0xff]
        %v504 = vld [vmem:[#allocation7 + $0x18] sm:$0x33]
        %v529 = vunpack.c.l.b16 %v429
        %v530 = vunpack.c.l.b16 %v430
        %v531 = vunpack.c.l.b16 %v431
        %v532 = vunpack.c.l.b16 %v432
        %v533 = vunpack.c.l.b16 %v433
        %v534 = vunpack.c.l.b16 %v434
        %v535 = vunpack.c.l.b16 %v435
        %v536 = vunpack.c.l.b16 %v436
        %v537 = vunpack.c.l.b16 %v437
        %v538 = vunpack.c.l.b16 %v438
        %v539 = vunpack.c.l.b16 %v439
        %v540 = vunpack.c.l.b16 %v440
        %v541 = vunpack.c.l.b16 %v441
        %v542 = vunpack.c.l.b16 %v442
        %v543 = vunpack.c.l.b16 %v443
        %v544 = vunpack.c.l.b16 %v444
        %v545 = vunpack.c.l.b16 %v445
        %v546 = vunpack.c.l.b16 %v446
        %v547 = vunpack.c.l.b16 %v447
        %v548 = vunpack.c.l.b16 %v448
        %v549 = vunpack.c.l.b16 %v449
        %v550 = vunpack.c.l.b16 %v450
        %v551 = vunpack.c.l.b16 %v451
        %v552 = vunpack.c.l.b16 %v452
        %v553 = vpack.c.b16 %v530, %v529
        %v554 = vpack.c.b16 %v532, %v531
        %v555 = vpack.c.b16 %v534, %v533
        %v556 = vpack.c.b16 %v536, %v535
        %v557 = vpack.c.b16 %v538, %v537
        %v558 = vpack.c.b16 %v540, %v539
        %v559 = vpack.c.b16 %v542, %v541
        %v560 = vpack.c.b16 %v544, %v543
        %v561 = vpack.c.b16 %v546, %v545
        %v562 = vpack.c.b16 %v548, %v547
        %v563 = vpack.c.b16 %v550, %v549
        %v564 = vpack.c.b16 %v552, %v551
        %v569 = vunpack.c.l.b16 %v501
        %v570 = vunpack.c.h.b16 %v501
        %v571 = vunpack.c.l.b16 %v502
        %v572 = vunpack.c.h.b16 %v502
        %v573 = vunpack.c.l.b16 %v503
        %v574 = vunpack.c.h.b16 %v503
        %v575 = vunpack.c.l.b16 %v504
        %v576 = vunpack.c.h.b16 %v504
        %v577 = vpack.c.b16 %v571, %v569
        %v578 = vpack.c.b16 %v572, %v570
        %v579 = vpack.c.b16 %v575, %v573
        %v580 = vpack.c.b16 %v576, %v574
        %vm583 = vcmask 228352
        %v585 = vsel %vm583, %v553, 0
        %v588 = vsel %vm583, %v554, 0
        %v591 = vsel %vm583, %v555, 0
        %v594 = vsel %vm583, %v556, 0
        %v597 = vsel %vm583, %v557, 0
        %v600 = vsel %vm583, %v558, 0
        %v603 = vsel %vm583, %v559, 0
        %v606 = vsel %vm583, %v560, 0
        %v609 = vsel %vm583, %v561, 0
        %v612 = vsel %vm583, %v562, 0
        %v615 = vsel %vm583, %v563, 0
        %v618 = vsel %vm583, %v564, 0
        %vm620 = vcmask 1045504
        %v622 = vsel %vm620, %v579, 0
        %v625 = vsel %vm620, %v580, 0
        %627 = vmatprep.subr.bf16.mxu0 %v578
        %628 = vmatpush1.bf16.msra.mxu0 %v577
        %629 = vmatprep.subr.bf16.mxu0 %v625
        %630 = vmatpush1.bf16.msra.mxu0 %v622
        %631 = vmatprep.subr.bf16.mxu0 0
        %632 = vmatpush1.bf16.msra.mxu0 0
        %633 = vmatprep.subr.bf16.mxu0 0
        %634 = vmatpush1.bf16.msra.mxu0 0
        %635 = vmatprep.subr.bf16.mxu0 0
        %636 = vmatpush1.bf16.msra.mxu0 0
        %637 = vmatprep.subr.bf16.mxu0 0
        %638 = vmatpush1.bf16.msra.mxu0 0
        %639 = vmatprep.subr.bf16.mxu0 0
        %640 = vmatpush1.bf16.msra.mxu0 0
        %641 = vmatprep.subr.bf16.mxu0 0
        %642 = vmatpush1.bf16.msra.mxu0 0
        %643 = vmatprep.subr.bf16.mxu0 0
        %644 = vmatpush1.bf16.msra.mxu0 0
        %645 = vmatprep.subr.bf16.mxu0 0
        %646 = vmatpush1.bf16.msra.mxu0 0
        %647 = vmatprep.subr.bf16.mxu0 0
        %648 = vmatpush1.bf16.msra.mxu0 0
        %649 = vmatprep.subr.bf16.mxu0 0
        %650 = vmatpush1.bf16.msra.mxu0 0
        %651 = vmatprep.subr.bf16.mxu0 0
        %652 = vmatpush1.bf16.msra.mxu0 0
        %653 = vmatprep.subr.bf16.mxu0 0
        %654 = vmatpush1.bf16.msra.mxu0 0
        %655 = vmatprep.subr.bf16.mxu0 0
        %656 = vmatpush1.bf16.msra.mxu0 0
        %657 = vmatprep.subr.bf16.mxu0 0
        %658 = vmatpush1.bf16.msra.mxu0 0
        %659 = vmatprep.mubr.bf16.mxu0 0
        %660 = vmatmul.mubr.bf16.gmra.mrb[0].mxu0 %v585
        %v661 = vpop.f32.mrb[0].mxu0
        %v662 = vadd.f32 0.0, %v661
        %v663 = vpop.f32.mrb[0].mxu0
        %v664 = vadd.f32 0.0, %v663
        %v665 = vpop.f32.mrb[0].mxu0
        %v666 = vadd.f32 0.0, %v665
        %v667 = vpop.f32.mrb[0].mxu0
        %v668 = vadd.f32 0.0, %v667
        %669 = vmatprep.mubr.bf16.mxu0 0
        %670 = vmatmul.mubr.bf16.gmra.mrb[0].mxu0 %v588
        %v671 = vpop.f32.mrb[0].mxu0
        %v672 = vadd.f32 0.0, %v671
        %v673 = vpop.f32.mrb[0].mxu0
        %v674 = vadd.f32 0.0, %v673
        %v675 = vpop.f32.mrb[0].mxu0
        %v676 = vadd.f32 0.0, %v675
        %v677 = vpop.f32.mrb[0].mxu0
        %v678 = vadd.f32 0.0, %v677
        %679 = vmatprep.mubr.bf16.mxu0 0
        %680 = vmatmul.mubr.bf16.gmra.mrb[0].mxu0 %v591
        %v681 = vpop.f32.mrb[0].mxu0
        %v682 = vadd.f32 0.0, %v681
        %v683 = vpop.f32.mrb[0].mxu0
        %v684 = vadd.f32 0.0, %v683
        %v685 = vpop.f32.mrb[0].mxu0
        %v686 = vadd.f32 0.0, %v685
        %v687 = vpop.f32.mrb[0].mxu0
        %v688 = vadd.f32 0.0, %v687
        %689 = vmatprep.mubr.bf16.mxu0 0
        %690 = vmatmul.mubr.bf16.gmra.mrb[0].mxu0 %v594
        %v691 = vpop.f32.mrb[0].mxu0
        %v692 = vadd.f32 0.0, %v691
        %v693 = vpop.f32.mrb[0].mxu0
        %v694 = vadd.f32 0.0, %v693
        %v695 = vpop.f32.mrb[0].mxu0
        %v696 = vadd.f32 0.0, %v695
        %v697 = vpop.f32.mrb[0].mxu0
        %v698 = vadd.f32 0.0, %v697
        %699 = vmatprep.mubr.bf16.mxu0 0
        %700 = vmatmul.mubr.bf16.gmra.mrb[0].mxu0 %v597
        %v701 = vpop.f32.mrb[0].mxu0
        %v702 = vadd.f32 0.0, %v701
        %v703 = vpop.f32.mrb[0].mxu0
        %v704 = vadd.f32 0.0, %v703
        %v705 = vpop.f32.mrb[0].mxu0
        %v706 = vadd.f32 0.0, %v705
        %v707 = vpop.f32.mrb[0].mxu0
        %v708 = vadd.f32 0.0, %v707
        %709 = vmatprep.mubr.bf16.mxu0 0
        %710 = vmatmul.mubr.bf16.gmra.mrb[0].mxu0 %v600
        %v711 = vpop.f32.mrb[0].mxu0
        %v712 = vadd.f32 0.0, %v711
        %v713 = vpop.f32.mrb[0].mxu0
        %v714 = vadd.f32 0.0, %v713
        %v715 = vpop.f32.mrb[0].mxu0
        %v716 = vadd.f32 0.0, %v715
        %v717 = vpop.f32.mrb[0].mxu0
        %v718 = vadd.f32 0.0, %v717
        %719 = vmatprep.mubr.bf16.mxu0 0
        %720 = vmatmul.mubr.bf16.gmra.mrb[0].mxu0 %v603
        %v721 = vpop.f32.mrb[0].mxu0
        %v722 = vadd.f32 0.0, %v721
        %v723 = vpop.f32.mrb[0].mxu0
        %v724 = vadd.f32 0.0, %v723
        %v725 = vpop.f32.mrb[0].mxu0
        %v726 = vadd.f32 0.0, %v725
        %v727 = vpop.f32.mrb[0].mxu0
        %v728 = vadd.f32 0.0, %v727
        %729 = vmatprep.mubr.bf16.mxu0 0
        %730 = vmatmul.mubr.bf16.gmra.mrb[0].mxu0 %v606
        %v731 = vpop.f32.mrb[0].mxu0
        %v732 = vadd.f32 0.0, %v731
        %v733 = vpop.f32.mrb[0].mxu0
        %v734 = vadd.f32 0.0, %v733
        %v735 = vpop.f32.mrb[0].mxu0
        %v736 = vadd.f32 0.0, %v735
        %v737 = vpop.f32.mrb[0].mxu0
        %v738 = vadd.f32 0.0, %v737
        %739 = vmatprep.mubr.bf16.mxu0 0
        %740 = vmatmul.mubr.bf16.gmra.mrb[0].mxu0 %v609
        %v741 = vpop.f32.mrb[0].mxu0
        %v742 = vadd.f32 0.0, %v741
        %v743 = vpop.f32.mrb[0].mxu0
        %v744 = vadd.f32 0.0, %v743
        %v745 = vpop.f32.mrb[0].mxu0
        %v746 = vadd.f32 0.0, %v745
        %v747 = vpop.f32.mrb[0].mxu0
        %v748 = vadd.f32 0.0, %v747
        %749 = vmatprep.mubr.bf16.mxu0 0
        %750 = vmatmul.mubr.bf16.gmra.mrb[0].mxu0 %v612
        %v751 = vpop.f32.mrb[0].mxu0
        %v752 = vadd.f32 0.0, %v751
        %v753 = vpop.f32.mrb[0].mxu0
        %v754 = vadd.f32 0.0, %v753
        %v755 = vpop.f32.mrb[0].mxu0
        %v756 = vadd.f32 0.0, %v755
        %v757 = vpop.f32.mrb[0].mxu0
        %v758 = vadd.f32 0.0, %v757
        %759 = vmatprep.mubr.bf16.mxu0 0
        %760 = vmatmul.mubr.bf16.gmra.mrb[0].mxu0 %v615
        %v761 = vpop.f32.mrb[0].mxu0
        %v762 = vadd.f32 0.0, %v761
        %v763 = vpop.f32.mrb[0].mxu0
        %v764 = vadd.f32 0.0, %v763
        %v765 = vpop.f32.mrb[0].mxu0
        %v766 = vadd.f32 0.0, %v765
        %v767 = vpop.f32.mrb[0].mxu0
        %v768 = vadd.f32 0.0, %v767
        %769 = vmatprep.mubr.bf16.mxu0 0
        %770 = vmatmul.mubr.bf16.gmra.mrb[0].mxu0 %v618
        %v771 = vpop.f32.mrb[0].mxu0
        %v772 = vadd.f32 0.0, %v771
        %v773 = vpop.f32.mrb[0].mxu0
        %v774 = vadd.f32 0.0, %v773
        %v775 = vpop.f32.mrb[0].mxu0
        %v776 = vadd.f32 0.0, %v775
        %v777 = vpop.f32.mrb[0].mxu0
        %v778 = vadd.f32 0.0, %v777
        %779 = vdwg.mxu0
        %v780 = vadd.f32 %v453, %v662
        %v781 = vadd.f32 %v454, %v664
        %v782 = vadd.f32 %v455, %v666
        %v783 = vadd.f32 %v456, %v668
        %v784 = vadd.f32 %v457, %v672
        %v785 = vadd.f32 %v458, %v674
        %v786 = vadd.f32 %v459, %v676
        %v787 = vadd.f32 %v460, %v678
        %v788 = vadd.f32 %v461, %v682
        %v789 = vadd.f32 %v462, %v684
        %v790 = vadd.f32 %v463, %v686
        %v791 = vadd.f32 %v464, %v688
        %v792 = vadd.f32 %v465, %v692
        %v793 = vadd.f32 %v466, %v694
        %v794 = vadd.f32 %v467, %v696
        %v795 = vadd.f32 %v468, %v698
        %v796 = vadd.f32 %v469, %v702
        %v797 = vadd.f32 %v470, %v704
        %v798 = vadd.f32 %v471, %v706
        %v799 = vadd.f32 %v472, %v708
        %v800 = vadd.f32 %v473, %v712
        %v801 = vadd.f32 %v474, %v714
        %v802 = vadd.f32 %v475, %v716
        %v803 = vadd.f32 %v476, %v718
        %v804 = vadd.f32 %v477, %v722
        %v805 = vadd.f32 %v478, %v724
        %v806 = vadd.f32 %v479, %v726
        %v807 = vadd.f32 %v480, %v728
        %v808 = vadd.f32 %v481, %v732
        %v809 = vadd.f32 %v482, %v734
        %v810 = vadd.f32 %v483, %v736
        %v811 = vadd.f32 %v484, %v738
        %v812 = vadd.f32 %v485, %v742
        %v813 = vadd.f32 %v486, %v744
        %v814 = vadd.f32 %v487, %v746
        %v815 = vadd.f32 %v488, %v748
        %v816 = vadd.f32 %v489, %v752
        %v817 = vadd.f32 %v490, %v754
        %v818 = vadd.f32 %v491, %v756
        %v819 = vadd.f32 %v492, %v758
        %v820 = vadd.f32 %v493, %v762
        %v821 = vadd.f32 %v494, %v764
        %v822 = vadd.f32 %v495, %v766
        %v823 = vadd.f32 %v496, %v768
        %v824 = vadd.f32 %v497, %v772
        %v825 = vadd.f32 %v498, %v774
        %v826 = vadd.f32 %v499, %v776
        %v827 = vadd.f32 %v500, %v778
        %828 = vst [vmem:[#allocation2] sm:$0xff] %v780
        %829 = vst [vmem:[#allocation2 + $0x8] sm:$0xff] %v781
        %830 = vst [vmem:[#allocation2 + $0x10] sm:$0xff] %v782
        %831 = vst [vmem:[#allocation2 + $0x18] sm:$0xff] %v783
        %832 = vst [vmem:[#allocation2 + $0x20] sm:$0xff] %v784
        %833 = vst [vmem:[#allocation2 + $0x28] sm:$0xff] %v785
        %834 = vst [vmem:[#allocation2 + $0x30] sm:$0xff] %v786
        %835 = vst [vmem:[#allocation2 + $0x38] sm:$0xff] %v787
        %836 = vst [vmem:[#allocation2 + $0x40] sm:$0xff] %v788
        %837 = vst [vmem:[#allocation2 + $0x48] sm:$0xff] %v789
        %838 = vst [vmem:[#allocation2 + $0x50] sm:$0xff] %v790
        %839 = vst [vmem:[#allocation2 + $0x58] sm:$0xff] %v791
        %840 = vst [vmem:[#allocation2 + $0x60] sm:$0xff] %v792
        %841 = vst [vmem:[#allocation2 + $0x68] sm:$0xff] %v793
        %842 = vst [vmem:[#allocation2 + $0x70] sm:$0xff] %v794
        %843 = vst [vmem:[#allocation2 + $0x78] sm:$0xff] %v795
        %844 = vst [vmem:[#allocation2 + $0x80] sm:$0xff] %v796
        %845 = vst [vmem:[#allocation2 + $0x88] sm:$0xff] %v797
        %846 = vst [vmem:[#allocation2 + $0x90] sm:$0xff] %v798
        %847 = vst [vmem:[#allocation2 + $0x98] sm:$0xff] %v799
        %848 = vst [vmem:[#allocation2 + $0xa0] sm:$0xff] %v800
        %849 = vst [vmem:[#allocation2 + $0xa8] sm:$0xff] %v801
        %850 = vst [vmem:[#allocation2 + $0xb0] sm:$0xff] %v802
        %851 = vst [vmem:[#allocation2 + $0xb8] sm:$0xff] %v803
        %852 = vst [vmem:[#allocation2 + $0xc0] sm:$0xff] %v804
        %853 = vst [vmem:[#allocation2 + $0xc8] sm:$0xff] %v805
        %854 = vst [vmem:[#allocation2 + $0xd0] sm:$0xff] %v806
        %855 = vst [vmem:[#allocation2 + $0xd8] sm:$0xff] %v807
        %856 = vst [vmem:[#allocation2 + $0xe0] sm:$0xff] %v808
        %857 = vst [vmem:[#allocation2 + $0xe8] sm:$0xff] %v809
        %858 = vst [vmem:[#allocation2 + $0xf0] sm:$0xff] %v810
        %859 = vst [vmem:[#allocation2 + $0xf8] sm:$0xff] %v811
        %860 = vst [vmem:[#allocation2 + $0x100] sm:$0xff] %v812
        %861 = vst [vmem:[#allocation2 + $0x108] sm:$0xff] %v813
        %862 = vst [vmem:[#allocation2 + $0x110] sm:$0xff] %v814
        %863 = vst [vmem:[#allocation2 + $0x118] sm:$0xff] %v815
        %864 = vst [vmem:[#allocation2 + $0x120] sm:$0xff] %v816
        %865 = vst [vmem:[#allocation2 + $0x128] sm:$0xff] %v817
        %866 = vst [vmem:[#allocation2 + $0x130] sm:$0xff] %v818
        %867 = vst [vmem:[#allocation2 + $0x138] sm:$0xff] %v819
        %868 = vst [vmem:[#allocation2 + $0x140] sm:$0xff] %v820
        %869 = vst [vmem:[#allocation2 + $0x148] sm:$0xff] %v821
        %870 = vst [vmem:[#allocation2 + $0x150] sm:$0xff] %v822
        %871 = vst [vmem:[#allocation2 + $0x158] sm:$0xff] %v823
        %872 = vst [vmem:[#allocation2 + $0x160] sm:$0xff] %v824
        %873 = vst [vmem:[#allocation2 + $0x168] sm:$0xff] %v825
        %874 = vst [vmem:[#allocation2 + $0x170] sm:$0xff] %v826
        %875 = vst [vmem:[#allocation2 + $0x178] sm:$0xff] %v827
        %v876 = vld [vmem:[%s378] sm:$0xf]
        %v877 = vld [vmem:[%s378 + $0x4] sm:$0xf]
        %v878 = vld [vmem:[%s378 + $0x8] sm:$0xf]
        %v879 = vld [vmem:[%s378 + $0xc] sm:$0x1]
        %v880 = vld [vmem:[%s378 + $0x10] sm:$0xf]
        %v881 = vld [vmem:[%s378 + $0x14] sm:$0xf]
        %v882 = vld [vmem:[%s378 + $0x18] sm:$0xf]
        %v883 = vld [vmem:[%s378 + $0x1c] sm:$0x1]
        %v884 = vld [vmem:[%s378 + $0x20] sm:$0xf]
        %v885 = vld [vmem:[%s378 + $0x24] sm:$0xf]
        %v886 = vld [vmem:[%s378 + $0x28] sm:$0xf]
        %v887 = vld [vmem:[%s378 + $0x2c] sm:$0x1]
        %v888 = vld [vmem:[%s378 + $0x30] sm:$0xf]
        %v889 = vld [vmem:[%s378 + $0x34] sm:$0xf]
        %v890 = vld [vmem:[%s378 + $0x38] sm:$0xf]
        %v891 = vld [vmem:[%s378 + $0x3c] sm:$0x1]
        %v892 = vld [vmem:[%s378 + $0x40] sm:$0xf]
        %v893 = vld [vmem:[%s378 + $0x44] sm:$0xf]
        %v894 = vld [vmem:[%s378 + $0x48] sm:$0xf]
        %v895 = vld [vmem:[%s378 + $0x4c] sm:$0x1]
        %v896 = vld [vmem:[%s378 + $0x50] sm:$0xf]
        %v897 = vld [vmem:[%s378 + $0x54] sm:$0xf]
        %v898 = vld [vmem:[%s378 + $0x58] sm:$0xf]
        %v899 = vld [vmem:[%s378 + $0x5c] sm:$0x1]
        %v900 = vld [vmem:[%s378 + $0x60] sm:$0xf]
        %v901 = vld [vmem:[%s378 + $0x64] sm:$0xf]
        %v902 = vld [vmem:[%s378 + $0x68] sm:$0xf]
        %v903 = vld [vmem:[%s378 + $0x6c] sm:$0x1]
        %v904 = vld [vmem:[%s378 + $0x70] sm:$0xf]
        %v905 = vld [vmem:[%s378 + $0x74] sm:$0xf]
        %v906 = vld [vmem:[%s378 + $0x78] sm:$0xf]
        %v907 = vld [vmem:[%s378 + $0x7c] sm:$0x1]
        %vm908 = vsmask.f32 3328
        %vm909 = vsmask.f32 7440
        %vm910 = vmor %vm908, %vm909
        %v912 = vshrl.u32 %v876, 16
        %v914 = vrot.slane %v912, 4
        %v915 = vshll.u32 %v876, 16
        %v917 = vrot.slane %v915, 5
        %v918 = vor.u32 %v914, %v917
        %v919 = vrot.slane %v918, 4
        %v921 = vshll.u32 %v877, 16
        %v923 = vrot.slane %v921, 5
        %v924 = vsel %vm910, %v919, %v923
        %v925 = vshrl.u32 %v877, 16
        %v927 = vrot.slane %v925, 4
        %v928 = vor.u32 %v927, %v923
        %v929 = vrot.slane %v928, 4
        %v931 = vshll.u32 %v878, 16
        %v933 = vrot.slane %v931, 5
        %v934 = vsel %vm910, %v929, %v933
        %v935 = vshrl.u32 %v878, 16
        %v937 = vrot.slane %v935, 4
        %v938 = vor.u32 %v937, %v933
        %v939 = vrot.slane %v938, 4
        %v941 = vshll.u32 %v879, 16
        %v943 = vrot.slane %v941, 5
        %v944 = vsel %vm910, %v939, %v943
        %v946 = vshrl.u32 %v880, 16
        %v948 = vrot.slane %v946, 4
        %v949 = vshll.u32 %v880, 16
        %v951 = vrot.slane %v949, 5
        %v952 = vor.u32 %v948, %v951
        %v953 = vrot.slane %v952, 4
        %v955 = vshll.u32 %v881, 16
        %v957 = vrot.slane %v955, 5
        %v958 = vsel %vm910, %v953, %v957
        %v959 = vshrl.u32 %v881, 16
        %v961 = vrot.slane %v959, 4
        %v962 = vor.u32 %v961, %v957
        %v963 = vrot.slane %v962, 4
        %v965 = vshll.u32 %v882, 16
        %v967 = vrot.slane %v965, 5
        %v968 = vsel %vm910, %v963, %v967
        %v969 = vshrl.u32 %v882, 16
        %v971 = vrot.slane %v969, 4
        %v972 = vor.u32 %v971, %v967
        %v973 = vrot.slane %v972, 4
        %v975 = vshll.u32 %v883, 16
        %v977 = vrot.slane %v975, 5
        %v978 = vsel %vm910, %v973, %v977
        %v980 = vshrl.u32 %v884, 16
        %v982 = vrot.slane %v980, 4
        %v983 = vshll.u32 %v884, 16
        %v985 = vrot.slane %v983, 5
        %v986 = vor.u32 %v982, %v985
        %v987 = vrot.slane %v986, 4
        %v989 = vshll.u32 %v885, 16
        %v991 = vrot.slane %v989, 5
        %v992 = vsel %vm910, %v987, %v991
        %v993 = vshrl.u32 %v885, 16
        %v995 = vrot.slane %v993, 4
        %v996 = vor.u32 %v995, %v991
        %v997 = vrot.slane %v996, 4
        %v999 = vshll.u32 %v886, 16
        %v1001 = vrot.slane %v999, 5
        %v1002 = vsel %vm910, %v997, %v1001
        %v1003 = vshrl.u32 %v886, 16
        %v1005 = vrot.slane %v1003, 4
        %v1006 = vor.u32 %v1005, %v1001
        %v1007 = vrot.slane %v1006, 4
        %v1009 = vshll.u32 %v887, 16
        %v1011 = vrot.slane %v1009, 5
        %v1012 = vsel %vm910, %v1007, %v1011
        %v1014 = vshrl.u32 %v888, 16
        %v1016 = vrot.slane %v1014, 4
        %v1017 = vshll.u32 %v888, 16
        %v1019 = vrot.slane %v1017, 5
        %v1020 = vor.u32 %v1016, %v1019
        %v1021 = vrot.slane %v1020, 4
        %v1023 = vshll.u32 %v889, 16
        %v1025 = vrot.slane %v1023, 5
        %v1026 = vsel %vm910, %v1021, %v1025
        %v1027 = vshrl.u32 %v889, 16
        %v1029 = vrot.slane %v1027, 4
        %v1030 = vor.u32 %v1029, %v1025
        %v1031 = vrot.slane %v1030, 4
        %v1033 = vshll.u32 %v890, 16
        %v1035 = vrot.slane %v1033, 5
        %v1036 = vsel %vm910, %v1031, %v1035
        %v1037 = vshrl.u32 %v890, 16
        %v1039 = vrot.slane %v1037, 4
        %v1040 = vor.u32 %v1039, %v1035
        %v1041 = vrot.slane %v1040, 4
        %v1043 = vshll.u32 %v891, 16
        %v1045 = vrot.slane %v1043, 5
        %v1046 = vsel %vm910, %v1041, %v1045
        %v1048 = vshrl.u32 %v892, 16
        %v1050 = vrot.slane %v1048, 4
        %v1051 = vshll.u32 %v892, 16
        %v1053 = vrot.slane %v1051, 5
        %v1054 = vor.u32 %v1050, %v1053
        %v1055 = vrot.slane %v1054, 4
        %v1057 = vshll.u32 %v893, 16
        %v1059 = vrot.slane %v1057, 5
        %v1060 = vsel %vm910, %v1055, %v1059
        %v1061 = vshrl.u32 %v893, 16
        %v1063 = vrot.slane %v1061, 4
        %v1064 = vor.u32 %v1063, %v1059
        %v1065 = vrot.slane %v1064, 4
        %v1067 = vshll.u32 %v894, 16
        %v1069 = vrot.slane %v1067, 5
        %v1070 = vsel %vm910, %v1065, %v1069
        %v1071 = vshrl.u32 %v894, 16
        %v1073 = vrot.slane %v1071, 4
        %v1074 = vor.u32 %v1073, %v1069
        %v1075 = vrot.slane %v1074, 4
        %v1077 = vshll.u32 %v895, 16
        %v1079 = vrot.slane %v1077, 5
        %v1080 = vsel %vm910, %v1075, %v1079
        %v1082 = vshrl.u32 %v896, 16
        %v1084 = vrot.slane %v1082, 4
        %v1085 = vshll.u32 %v896, 16
        %v1087 = vrot.slane %v1085, 5
        %v1088 = vor.u32 %v1084, %v1087
        %v1089 = vrot.slane %v1088, 4
        %v1091 = vshll.u32 %v897, 16
        %v1093 = vrot.slane %v1091, 5
        %v1094 = vsel %vm910, %v1089, %v1093
        %v1095 = vshrl.u32 %v897, 16
        %v1097 = vrot.slane %v1095, 4
        %v1098 = vor.u32 %v1097, %v1093
        %v1099 = vrot.slane %v1098, 4
        %v1101 = vshll.u32 %v898, 16
        %v1103 = vrot.slane %v1101, 5
        %v1104 = vsel %vm910, %v1099, %v1103
        %v1105 = vshrl.u32 %v898, 16
        %v1107 = vrot.slane %v1105, 4
        %v1108 = vor.u32 %v1107, %v1103
        %v1109 = vrot.slane %v1108, 4
        %v1111 = vshll.u32 %v899, 16
        %v1113 = vrot.slane %v1111, 5
        %v1114 = vsel %vm910, %v1109, %v1113
        %v1116 = vshrl.u32 %v900, 16
        %v1118 = vrot.slane %v1116, 4
        %v1119 = vshll.u32 %v900, 16
        %v1121 = vrot.slane %v1119, 5
        %v1122 = vor.u32 %v1118, %v1121
        %v1123 = vrot.slane %v1122, 4
        %v1125 = vshll.u32 %v901, 16
        %v1127 = vrot.slane %v1125, 5
        %v1128 = vsel %vm910, %v1123, %v1127
        %v1129 = vshrl.u32 %v901, 16
        %v1131 = vrot.slane %v1129, 4
        %v1132 = vor.u32 %v1131, %v1127
        %v1133 = vrot.slane %v1132, 4
        %v1135 = vshll.u32 %v902, 16
        %v1137 = vrot.slane %v1135, 5
        %v1138 = vsel %vm910, %v1133, %v1137
        %v1139 = vshrl.u32 %v902, 16
        %v1141 = vrot.slane %v1139, 4
        %v1142 = vor.u32 %v1141, %v1137
        %v1143 = vrot.slane %v1142, 4
        %v1145 = vshll.u32 %v903, 16
        %v1147 = vrot.slane %v1145, 5
        %v1148 = vsel %vm910, %v1143, %v1147
        %v1150 = vshrl.u32 %v904, 16
        %v1152 = vrot.slane %v1150, 4
        %v1153 = vshll.u32 %v904, 16
        %v1155 = vrot.slane %v1153, 5
        %v1156 = vor.u32 %v1152, %v1155
        %v1157 = vrot.slane %v1156, 4
        %v1159 = vshll.u32 %v905, 16
        %v1161 = vrot.slane %v1159, 5
        %v1162 = vsel %vm910, %v1157, %v1161
        %v1163 = vshrl.u32 %v905, 16
        %v1165 = vrot.slane %v1163, 4
        %v1166 = vor.u32 %v1165, %v1161
        %v1167 = vrot.slane %v1166, 4
        %v1169 = vshll.u32 %v906, 16
        %v1171 = vrot.slane %v1169, 5
        %v1172 = vsel %vm910, %v1167, %v1171
        %v1173 = vshrl.u32 %v906, 16
        %v1175 = vrot.slane %v1173, 4
        %v1176 = vor.u32 %v1175, %v1171
        %v1177 = vrot.slane %v1176, 4
        %v1179 = vshll.u32 %v907, 16
        %v1181 = vrot.slane %v1179, 5
        %v1182 = vsel %vm910, %v1177, %v1181
        %v1183 = vld [vmem:[#allocation2] sm:$0xff]
        %v1184 = vld [vmem:[#allocation2 + $0x8] sm:$0xff]
        %v1185 = vld [vmem:[#allocation2 + $0x10] sm:$0xff]
        %v1186 = vld [vmem:[#allocation2 + $0x18] sm:$0xff]
        %v1187 = vld [vmem:[#allocation2 + $0x20] sm:$0xff]
        %v1188 = vld [vmem:[#allocation2 + $0x28] sm:$0xff]
        %v1189 = vld [vmem:[#allocation2 + $0x30] sm:$0xff]
        %v1190 = vld [vmem:[#allocation2 + $0x38] sm:$0xff]
        %v1191 = vld [vmem:[#allocation2 + $0x40] sm:$0xff]
        %v1192 = vld [vmem:[#allocation2 + $0x48] sm:$0xff]
        %v1193 = vld [vmem:[#allocation2 + $0x50] sm:$0xff]
        %v1194 = vld [vmem:[#allocation2 + $0x58] sm:$0xff]
        %v1195 = vld [vmem:[#allocation2 + $0x60] sm:$0xff]
        %v1196 = vld [vmem:[#allocation2 + $0x68] sm:$0xff]
        %v1197 = vld [vmem:[#allocation2 + $0x70] sm:$0xff]
        %v1198 = vld [vmem:[#allocation2 + $0x78] sm:$0xff]
        %v1199 = vld [vmem:[#allocation2 + $0x80] sm:$0xff]
        %v1200 = vld [vmem:[#allocation2 + $0x88] sm:$0xff]
        %v1201 = vld [vmem:[#allocation2 + $0x90] sm:$0xff]
        %v1202 = vld [vmem:[#allocation2 + $0x98] sm:$0xff]
        %v1203 = vld [vmem:[#allocation2 + $0xa0] sm:$0xff]
        %v1204 = vld [vmem:[#allocation2 + $0xa8] sm:$0xff]
        %v1205 = vld [vmem:[#allocation2 + $0xb0] sm:$0xff]
        %v1206 = vld [vmem:[#allocation2 + $0xb8] sm:$0xff]
        %v1207 = vld [vmem:[#allocation2 + $0xc0] sm:$0xff]
        %v1208 = vld [vmem:[#allocation2 + $0xc8] sm:$0xff]
        %v1209 = vld [vmem:[#allocation2 + $0xd0] sm:$0xff]
        %v1210 = vld [vmem:[#allocation2 + $0xd8] sm:$0xff]
        %v1211 = vld [vmem:[#allocation2 + $0xe0] sm:$0xff]
        %v1212 = vld [vmem:[#allocation2 + $0xe8] sm:$0xff]
        %v1213 = vld [vmem:[#allocation2 + $0xf0] sm:$0xff]
        %v1214 = vld [vmem:[#allocation2 + $0xf8] sm:$0xff]
        %v1215 = vld [vmem:[#allocation2 + $0x100] sm:$0xff]
        %v1216 = vld [vmem:[#allocation2 + $0x108] sm:$0xff]
        %v1217 = vld [vmem:[#allocation2 + $0x110] sm:$0xff]
        %v1218 = vld [vmem:[#allocation2 + $0x118] sm:$0xff]
        %v1219 = vld [vmem:[#allocation2 + $0x120] sm:$0xff]
        %v1220 = vld [vmem:[#allocation2 + $0x128] sm:$0xff]
        %v1221 = vld [vmem:[#allocation2 + $0x130] sm:$0xff]
        %v1222 = vld [vmem:[#allocation2 + $0x138] sm:$0xff]
        %v1223 = vld [vmem:[#allocation2 + $0x140] sm:$0xff]
        %v1224 = vld [vmem:[#allocation2 + $0x148] sm:$0xff]
        %v1225 = vld [vmem:[#allocation2 + $0x150] sm:$0xff]
        %v1226 = vld [vmem:[#allocation2 + $0x158] sm:$0xff]
        %v1227 = vld [vmem:[#allocation2 + $0x160] sm:$0xff]
        %v1228 = vld [vmem:[#allocation2 + $0x168] sm:$0xff]
        %v1229 = vld [vmem:[#allocation2 + $0x170] sm:$0xff]
        %v1230 = vld [vmem:[#allocation2 + $0x178] sm:$0xff]
        %s1231 = scalar_lea.vmem [#allocation7], 32
        %v1232 = vld [vmem:[%s1231] sm:$0xff]
        %v1233 = vld [vmem:[%s1231 + $0x8] sm:$0xff]
        %v1234 = vld [vmem:[%s1231 + $0x10] sm:$0xff]
        %v1235 = vld [vmem:[%s1231 + $0x18] sm:$0x33]
        %v1236 = vunpack.c.l.b16 %v924
        %v1237 = vunpack.c.l.b16 %v934
        %v1238 = vunpack.c.l.b16 %v944
        %v1239 = vunpack.c.l.b16 %v958
        %v1240 = vunpack.c.l.b16 %v968
        %v1241 = vunpack.c.l.b16 %v978
        %v1242 = vunpack.c.l.b16 %v992
        %v1243 = vunpack.c.l.b16 %v1002
        %v1244 = vunpack.c.l.b16 %v1012
        %v1245 = vunpack.c.l.b16 %v1026
        %v1246 = vunpack.c.l.b16 %v1036
        %v1247 = vunpack.c.l.b16 %v1046
        %v1248 = vunpack.c.l.b16 %v1060
        %v1249 = vunpack.c.l.b16 %v1070
        %v1250 = vunpack.c.l.b16 %v1080
        %v1251 = vunpack.c.l.b16 %v1094
        %v1252 = vunpack.c.l.b16 %v1104
        %v1253 = vunpack.c.l.b16 %v1114
        %v1254 = vunpack.c.l.b16 %v1128
        %v1255 = vunpack.c.l.b16 %v1138
        %v1256 = vunpack.c.l.b16 %v1148
        %v1257 = vunpack.c.l.b16 %v1162
        %v1258 = vunpack.c.l.b16 %v1172
        %v1259 = vunpack.c.l.b16 %v1182
        %v1260 = vpack.c.b16 %v1237, %v1236
        %v1261 = vpack.c.b16 %v1239, %v1238
        %v1262 = vpack.c.b16 %v1241, %v1240
        %v1263 = vpack.c.b16 %v1243, %v1242
        %v1264 = vpack.c.b16 %v1245, %v1244
        %v1265 = vpack.c.b16 %v1247, %v1246
        %v1266 = vpack.c.b16 %v1249, %v1248
        %v1267 = vpack.c.b16 %v1251, %v1250
        %v1268 = vpack.c.b16 %v1253, %v1252
        %v1269 = vpack.c.b16 %v1255, %v1254
        %v1270 = vpack.c.b16 %v1257, %v1256
        %v1271 = vpack.c.b16 %v1259, %v1258
        %v1276 = vunpack.c.l.b16 %v1232
        %v1277 = vunpack.c.h.b16 %v1232
        %v1278 = vunpack.c.l.b16 %v1233
        %v1279 = vunpack.c.h.b16 %v1233
        %v1280 = vunpack.c.l.b16 %v1234
        %v1281 = vunpack.c.h.b16 %v1234
        %v1282 = vunpack.c.l.b16 %v1235
        %v1283 = vunpack.c.h.b16 %v1235
        %v1284 = vpack.c.b16 %v1278, %v1276
        %v1285 = vpack.c.b16 %v1279, %v1277
        %v1286 = vpack.c.b16 %v1282, %v1280
        %v1287 = vpack.c.b16 %v1283, %v1281
        %v1291 = vsel %vm583, %v1260, 0
        %v1294 = vsel %vm583, %v1261, 0
        %v1297 = vsel %vm583, %v1262, 0
        %v1300 = vsel %vm583, %v1263, 0
        %v1303 = vsel %vm583, %v1264, 0
        %v1306 = vsel %vm583, %v1265, 0
        %v1309 = vsel %vm583, %v1266, 0
        %v1312 = vsel %vm583, %v1267, 0
        %v1315 = vsel %vm583, %v1268, 0
        %v1318 = vsel %vm583, %v1269, 0
        %v1321 = vsel %vm583, %v1270, 0
        %v1324 = vsel %vm583, %v1271, 0
        %v1327 = vsel %vm620, %v1286, 0
        %v1330 = vsel %vm620, %v1287, 0
        %1332 = vmatprep.subr.bf16.mxu0 %v1285
        %1333 = vmatpush1.bf16.msra.mxu0 %v1284
        %1334 = vmatprep.subr.bf16.mxu0 %v1330
        %1335 = vmatpush1.bf16.msra.mxu0 %v1327
        %1336 = vmatprep.subr.bf16.mxu0 0
        %1337 = vmatpush1.bf16.msra.mxu0 0
        %1338 = vmatprep.subr.bf16.mxu0 0
        %1339 = vmatpush1.bf16.msra.mxu0 0
        %1340 = vmatprep.subr.bf16.mxu0 0
        %1341 = vmatpush1.bf16.msra.mxu0 0
        %1342 = vmatprep.subr.bf16.mxu0 0
        %1343 = vmatpush1.bf16.msra.mxu0 0
        %1344 = vmatprep.subr.bf16.mxu0 0
        %1345 = vmatpush1.bf16.msra.mxu0 0
        %1346 = vmatprep.subr.bf16.mxu0 0
        %1347 = vmatpush1.bf16.msra.mxu0 0
        %1348 = vmatprep.subr.bf16.mxu0 0
        %1349 = vmatpush1.bf16.msra.mxu0 0
        %1350 = vmatprep.subr.bf16.mxu0 0
        %1351 = vmatpush1.bf16.msra.mxu0 0
        %1352 = vmatprep.subr.bf16.mxu0 0
        %1353 = vmatpush1.bf16.msra.mxu0 0
        %1354 = vmatprep.subr.bf16.mxu0 0
        %1355 = vmatpush1.bf16.msra.mxu0 0
        %1356 = vmatprep.subr.bf16.mxu0 0
        %1357 = vmatpush1.bf16.msra.mxu0 0
        %1358 = vmatprep.subr.bf16.mxu0 0
        %1359 = vmatpush1.bf16.msra.mxu0 0
        %1360 = vmatprep.subr.bf16.mxu0 0
        %1361 = vmatpush1.bf16.msra.mxu0 0
        %1362 = vmatprep.subr.bf16.mxu0 0
        %1363 = vmatpush1.bf16.msra.mxu0 0
        %1364 = vmatprep.mubr.bf16.mxu0 0
        %1365 = vmatmul.mubr.bf16.gmra.mrb[0].mxu0 %v1291
        %v1366 = vpop.f32.mrb[0].mxu0
        %v1367 = vadd.f32 0.0, %v1366
        %v1368 = vpop.f32.mrb[0].mxu0
        %v1369 = vadd.f32 0.0, %v1368
        %v1370 = vpop.f32.mrb[0].mxu0
        %v1371 = vadd.f32 0.0, %v1370
        %v1372 = vpop.f32.mrb[0].mxu0
        %v1373 = vadd.f32 0.0, %v1372
        %1374 = vmatprep.mubr.bf16.mxu0 0
        %1375 = vmatmul.mubr.bf16.gmra.mrb[0].mxu0 %v1294
        %v1376 = vpop.f32.mrb[0].mxu0
        %v1377 = vadd.f32 0.0, %v1376
        %v1378 = vpop.f32.mrb[0].mxu0
        %v1379 = vadd.f32 0.0, %v1378
        %v1380 = vpop.f32.mrb[0].mxu0
        %v1381 = vadd.f32 0.0, %v1380
        %v1382 = vpop.f32.mrb[0].mxu0
        %v1383 = vadd.f32 0.0, %v1382
        %1384 = vmatprep.mubr.bf16.mxu0 0
        %1385 = vmatmul.mubr.bf16.gmra.mrb[0].mxu0 %v1297
        %v1386 = vpop.f32.mrb[0].mxu0
        %v1387 = vadd.f32 0.0, %v1386
        %v1388 = vpop.f32.mrb[0].mxu0
        %v1389 = vadd.f32 0.0, %v1388
        %v1390 = vpop.f32.mrb[0].mxu0
        %v1391 = vadd.f32 0.0, %v1390
        %v1392 = vpop.f32.mrb[0].mxu0
        %v1393 = vadd.f32 0.0, %v1392
        %1394 = vmatprep.mubr.bf16.mxu0 0
        %1395 = vmatmul.mubr.bf16.gmra.mrb[0].mxu0 %v1300
        %v1396 = vpop.f32.mrb[0].mxu0
        %v1397 = vadd.f32 0.0, %v1396
        %v1398 = vpop.f32.mrb[0].mxu0
        %v1399 = vadd.f32 0.0, %v1398
        %v1400 = vpop.f32.mrb[0].mxu0
        %v1401 = vadd.f32 0.0, %v1400
        %v1402 = vpop.f32.mrb[0].mxu0
        %v1403 = vadd.f32 0.0, %v1402
        %1404 = vmatprep.mubr.bf16.mxu0 0
        %1405 = vmatmul.mubr.bf16.gmra.mrb[0].mxu0 %v1303
        %v1406 = vpop.f32.mrb[0].mxu0
        %v1407 = vadd.f32 0.0, %v1406
        %v1408 = vpop.f32.mrb[0].mxu0
        %v1409 = vadd.f32 0.0, %v1408
        %v1410 = vpop.f32.mrb[0].mxu0
        %v1411 = vadd.f32 0.0, %v1410
        %v1412 = vpop.f32.mrb[0].mxu0
        %v1413 = vadd.f32 0.0, %v1412
        %1414 = vmatprep.mubr.bf16.mxu0 0
        %1415 = vmatmul.mubr.bf16.gmra.mrb[0].mxu0 %v1306
        %v1416 = vpop.f32.mrb[0].mxu0
        %v1417 = vadd.f32 0.0, %v1416
        %v1418 = vpop.f32.mrb[0].mxu0
        %v1419 = vadd.f32 0.0, %v1418
        %v1420 = vpop.f32.mrb[0].mxu0
        %v1421 = vadd.f32 0.0, %v1420
        %v1422 = vpop.f32.mrb[0].mxu0
        %v1423 = vadd.f32 0.0, %v1422
        %1424 = vmatprep.mubr.bf16.mxu0 0
        %1425 = vmatmul.mubr.bf16.gmra.mrb[0].mxu0 %v1309
        %v1426 = vpop.f32.mrb[0].mxu0
        %v1427 = vadd.f32 0.0, %v1426
        %v1428 = vpop.f32.mrb[0].mxu0
        %v1429 = vadd.f32 0.0, %v1428
        %v1430 = vpop.f32.mrb[0].mxu0
        %v1431 = vadd.f32 0.0, %v1430
        %v1432 = vpop.f32.mrb[0].mxu0
        %v1433 = vadd.f32 0.0, %v1432
        %1434 = vmatprep.mubr.bf16.mxu0 0
        %1435 = vmatmul.mubr.bf16.gmra.mrb[0].mxu0 %v1312
        %v1436 = vpop.f32.mrb[0].mxu0
        %v1437 = vadd.f32 0.0, %v1436
        %v1438 = vpop.f32.mrb[0].mxu0
        %v1439 = vadd.f32 0.0, %v1438
        %v1440 = vpop.f32.mrb[0].mxu0
        %v1441 = vadd.f32 0.0, %v1440
        %v1442 = vpop.f32.mrb[0].mxu0
        %v1443 = vadd.f32 0.0, %v1442
        %1444 = vmatprep.mubr.bf16.mxu0 0
        %1445 = vmatmul.mubr.bf16.gmra.mrb[0].mxu0 %v1315
        %v1446 = vpop.f32.mrb[0].mxu0
        %v1447 = vadd.f32 0.0, %v1446
        %v1448 = vpop.f32.mrb[0].mxu0
        %v1449 = vadd.f32 0.0, %v1448
        %v1450 = vpop.f32.mrb[0].mxu0
        %v1451 = vadd.f32 0.0, %v1450
        %v1452 = vpop.f32.mrb[0].mxu0
        %v1453 = vadd.f32 0.0, %v1452
        %1454 = vmatprep.mubr.bf16.mxu0 0
        %1455 = vmatmul.mubr.bf16.gmra.mrb[0].mxu0 %v1318
        %v1456 = vpop.f32.mrb[0].mxu0
        %v1457 = vadd.f32 0.0, %v1456
        %v1458 = vpop.f32.mrb[0].mxu0
        %v1459 = vadd.f32 0.0, %v1458
        %v1460 = vpop.f32.mrb[0].mxu0
        %v1461 = vadd.f32 0.0, %v1460
        %v1462 = vpop.f32.mrb[0].mxu0
        %v1463 = vadd.f32 0.0, %v1462
        %1464 = vmatprep.mubr.bf16.mxu0 0
        %1465 = vmatmul.mubr.bf16.gmra.mrb[0].mxu0 %v1321
        %v1466 = vpop.f32.mrb[0].mxu0
        %v1467 = vadd.f32 0.0, %v1466
        %v1468 = vpop.f32.mrb[0].mxu0
        %v1469 = vadd.f32 0.0, %v1468
        %v1470 = vpop.f32.mrb[0].mxu0
        %v1471 = vadd.f32 0.0, %v1470
        %v1472 = vpop.f32.mrb[0].mxu0
        %v1473 = vadd.f32 0.0, %v1472
        %1474 = vmatprep.mubr.bf16.mxu0 0
        %1475 = vmatmul.mubr.bf16.gmra.mrb[0].mxu0 %v1324
        %v1476 = vpop.f32.mrb[0].mxu0
        %v1477 = vadd.f32 0.0, %v1476
        %v1478 = vpop.f32.mrb[0].mxu0
        %v1479 = vadd.f32 0.0, %v1478
        %v1480 = vpop.f32.mrb[0].mxu0
        %v1481 = vadd.f32 0.0, %v1480
        %v1482 = vpop.f32.mrb[0].mxu0
        %v1483 = vadd.f32 0.0, %v1482
        %1484 = vdwg.mxu0
        %v1485 = vadd.f32 %v1183, %v1367
        %v1486 = vadd.f32 %v1184, %v1369
        %v1487 = vadd.f32 %v1185, %v1371
        %v1488 = vadd.f32 %v1186, %v1373
        %v1489 = vadd.f32 %v1187, %v1377
        %v1490 = vadd.f32 %v1188, %v1379
        %v1491 = vadd.f32 %v1189, %v1381
        %v1492 = vadd.f32 %v1190, %v1383
        %v1493 = vadd.f32 %v1191, %v1387
        %v1494 = vadd.f32 %v1192, %v1389
        %v1495 = vadd.f32 %v1193, %v1391
        %v1496 = vadd.f32 %v1194, %v1393
        %v1497 = vadd.f32 %v1195, %v1397
        %v1498 = vadd.f32 %v1196, %v1399
        %v1499 = vadd.f32 %v1197, %v1401
        %v1500 = vadd.f32 %v1198, %v1403
        %v1501 = vadd.f32 %v1199, %v1407
        %v1502 = vadd.f32 %v1200, %v1409
        %v1503 = vadd.f32 %v1201, %v1411
        %v1504 = vadd.f32 %v1202, %v1413
        %v1505 = vadd.f32 %v1203, %v1417
        %v1506 = vadd.f32 %v1204, %v1419
        %v1507 = vadd.f32 %v1205, %v1421
        %v1508 = vadd.f32 %v1206, %v1423
        %v1509 = vadd.f32 %v1207, %v1427
        %v1510 = vadd.f32 %v1208, %v1429
        %v1511 = vadd.f32 %v1209, %v1431
        %v1512 = vadd.f32 %v1210, %v1433
        %v1513 = vadd.f32 %v1211, %v1437
        %v1514 = vadd.f32 %v1212, %v1439
        %v1515 = vadd.f32 %v1213, %v1441
        %v1516 = vadd.f32 %v1214, %v1443
        %v1517 = vadd.f32 %v1215, %v1447
        %v1518 = vadd.f32 %v1216, %v1449
        %v1519 = vadd.f32 %v1217, %v1451
        %v1520 = vadd.f32 %v1218, %v1453
        %v1521 = vadd.f32 %v1219, %v1457
        %v1522 = vadd.f32 %v1220, %v1459
        %v1523 = vadd.f32 %v1221, %v1461
        %v1524 = vadd.f32 %v1222, %v1463
        %v1525 = vadd.f32 %v1223, %v1467
        %v1526 = vadd.f32 %v1224, %v1469
        %v1527 = vadd.f32 %v1225, %v1471
        %v1528 = vadd.f32 %v1226, %v1473
        %v1529 = vadd.f32 %v1227, %v1477
        %v1530 = vadd.f32 %v1228, %v1479
        %v1531 = vadd.f32 %v1229, %v1481
        %v1532 = vadd.f32 %v1230, %v1483
        %1533 = vst [vmem:[#allocation2] sm:$0xff] %v1485
        %1534 = vst [vmem:[#allocation2 + $0x8] sm:$0xff] %v1486
        %1535 = vst [vmem:[#allocation2 + $0x10] sm:$0xff] %v1487
        %1536 = vst [vmem:[#allocation2 + $0x18] sm:$0xff] %v1488
        %1537 = vst [vmem:[#allocation2 + $0x20] sm:$0xff] %v1489
        %1538 = vst [vmem:[#allocation2 + $0x28] sm:$0xff] %v1490
        %1539 = vst [vmem:[#allocation2 + $0x30] sm:$0xff] %v1491
        %1540 = vst [vmem:[#allocation2 + $0x38] sm:$0xff] %v1492
        %1541 = vst [vmem:[#allocation2 + $0x40] sm:$0xff] %v1493
        %1542 = vst [vmem:[#allocation2 + $0x48] sm:$0xff] %v1494
        %1543 = vst [vmem:[#allocation2 + $0x50] sm:$0xff] %v1495
        %1544 = vst [vmem:[#allocation2 + $0x58] sm:$0xff] %v1496
        %1545 = vst [vmem:[#allocation2 + $0x60] sm:$0xff] %v1497
        %1546 = vst [vmem:[#allocation2 + $0x68] sm:$0xff] %v1498
        %1547 = vst [vmem:[#allocation2 + $0x70] sm:$0xff] %v1499
        %1548 = vst [vmem:[#allocation2 + $0x78] sm:$0xff] %v1500
        %1549 = vst [vmem:[#allocation2 + $0x80] sm:$0xff] %v1501
        %1550 = vst [vmem:[#allocation2 + $0x88] sm:$0xff] %v1502
        %1551 = vst [vmem:[#allocation2 + $0x90] sm:$0xff] %v1503
        %1552 = vst [vmem:[#allocation2 + $0x98] sm:$0xff] %v1504
        %1553 = vst [vmem:[#allocation2 + $0xa0] sm:$0xff] %v1505
        %1554 = vst [vmem:[#allocation2 + $0xa8] sm:$0xff] %v1506
        %1555 = vst [vmem:[#allocation2 + $0xb0] sm:$0xff] %v1507
        %1556 = vst [vmem:[#allocation2 + $0xb8] sm:$0xff] %v1508
        %1557 = vst [vmem:[#allocation2 + $0xc0] sm:$0xff] %v1509
        %1558 = vst [vmem:[#allocation2 + $0xc8] sm:$0xff] %v1510
        %1559 = vst [vmem:[#allocation2 + $0xd0] sm:$0xff] %v1511
        %1560 = vst [vmem:[#allocation2 + $0xd8] sm:$0xff] %v1512
        %1561 = vst [vmem:[#allocation2 + $0xe0] sm:$0xff] %v1513
        %1562 = vst [vmem:[#allocation2 + $0xe8] sm:$0xff] %v1514
        %1563 = vst [vmem:[#allocation2 + $0xf0] sm:$0xff] %v1515
        %1564 = vst [vmem:[#allocation2 + $0xf8] sm:$0xff] %v1516
        %1565 = vst [vmem:[#allocation2 + $0x100] sm:$0xff] %v1517
        %1566 = vst [vmem:[#allocation2 + $0x108] sm:$0xff] %v1518
        %1567 = vst [vmem:[#allocation2 + $0x110] sm:$0xff] %v1519
        %1568 = vst [vmem:[#allocation2 + $0x118] sm:$0xff] %v1520
        %1569 = vst [vmem:[#allocation2 + $0x120] sm:$0xff] %v1521
        %1570 = vst [vmem:[#allocation2 + $0x128] sm:$0xff] %v1522
        %1571 = vst [vmem:[#allocation2 + $0x130] sm:$0xff] %v1523
        %1572 = vst [vmem:[#allocation2 + $0x138] sm:$0xff] %v1524
        %1573 = vst [vmem:[#allocation2 + $0x140] sm:$0xff] %v1525
        %1574 = vst [vmem:[#allocation2 + $0x148] sm:$0xff] %v1526
        %1575 = vst [vmem:[#allocation2 + $0x150] sm:$0xff] %v1527
        %1576 = vst [vmem:[#allocation2 + $0x158] sm:$0xff] %v1528
        %1577 = vst [vmem:[#allocation2 + $0x160] sm:$0xff] %v1529
        %1578 = vst [vmem:[#allocation2 + $0x168] sm:$0xff] %v1530
        %1579 = vst [vmem:[#allocation2 + $0x170] sm:$0xff] %v1531
        %1580 = vst [vmem:[#allocation2 + $0x178] sm:$0xff] %v1532
        %v1581 = vld [vmem:[%s378] sm:$0xe]
        %v1582 = vld [vmem:[%s378 + $0x4] sm:$0xf]
        %v1583 = vld [vmem:[%s378 + $0x8] sm:$0xf]
        %v1584 = vld [vmem:[%s378 + $0xc] sm:$0x1]
        %v1585 = vld [vmem:[%s378 + $0x10] sm:$0xe]
        %v1586 = vld [vmem:[%s378 + $0x14] sm:$0xf]
        %v1587 = vld [vmem:[%s378 + $0x18] sm:$0xf]
        %v1588 = vld [vmem:[%s378 + $0x1c] sm:$0x1]
        %v1589 = vld [vmem:[%s378 + $0x20] sm:$0xe]
        %v1590 = vld [vmem:[%s378 + $0x24] sm:$0xf]
        %v1591 = vld [vmem:[%s378 + $0x28] sm:$0xf]
        %v1592 = vld [vmem:[%s378 + $0x2c] sm:$0x1]
        %v1593 = vld [vmem:[%s378 + $0x30] sm:$0xe]
        %v1594 = vld [vmem:[%s378 + $0x34] sm:$0xf]
        %v1595 = vld [vmem:[%s378 + $0x38] sm:$0xf]
        %v1596 = vld [vmem:[%s378 + $0x3c] sm:$0x1]
        %v1597 = vld [vmem:[%s378 + $0x40] sm:$0xe]
        %v1598 = vld [vmem:[%s378 + $0x44] sm:$0xf]
        %v1599 = vld [vmem:[%s378 + $0x48] sm:$0xf]
        %v1600 = vld [vmem:[%s378 + $0x4c] sm:$0x1]
        %v1601 = vld [vmem:[%s378 + $0x50] sm:$0xe]
        %v1602 = vld [vmem:[%s378 + $0x54] sm:$0xf]
        %v1603 = vld [vmem:[%s378 + $0x58] sm:$0xf]
        %v1604 = vld [vmem:[%s378 + $0x5c] sm:$0x1]
        %v1605 = vld [vmem:[%s378 + $0x60] sm:$0xe]
        %v1606 = vld [vmem:[%s378 + $0x64] sm:$0xf]
        %v1607 = vld [vmem:[%s378 + $0x68] sm:$0xf]
        %v1608 = vld [vmem:[%s378 + $0x6c] sm:$0x1]
        %v1609 = vld [vmem:[%s378 + $0x70] sm:$0xe]
        %v1610 = vld [vmem:[%s378 + $0x74] sm:$0xf]
        %v1611 = vld [vmem:[%s378 + $0x78] sm:$0xf]
        %v1612 = vld [vmem:[%s378 + $0x7c] sm:$0x1]
        %vm1645 = vcmask 1042432
        %vm1646 = vcmask 1046532
        %vm1647 = vmor %vm1645, %vm1646
        %v1648 = vrot.slane %v1581, 5
        %v1649 = vrot.slane %v1648, 4
        %v1650 = vrot.slane %v1582, 5
        %v1651 = vsel %vm1647, %v1649, %v1650
        %v1652 = vrot.slane %v1650, 4
        %v1653 = vrot.slane %v1583, 5
        %v1654 = vsel %vm1647, %v1652, %v1653
        %v1655 = vrot.slane %v1653, 4
        %v1656 = vrot.slane %v1584, 5
        %v1657 = vsel %vm1647, %v1655, %v1656
        %v1658 = vrot.slane %v1585, 5
        %v1659 = vrot.slane %v1658, 4
        %v1660 = vrot.slane %v1586, 5
        %v1661 = vsel %vm1647, %v1659, %v1660
        %v1662 = vrot.slane %v1660, 4
        %v1663 = vrot.slane %v1587, 5
        %v1664 = vsel %vm1647, %v1662, %v1663
        %v1665 = vrot.slane %v1663, 4
        %v1666 = vrot.slane %v1588, 5
        %v1667 = vsel %vm1647, %v1665, %v1666
        %v1668 = vrot.slane %v1589, 5
        %v1669 = vrot.slane %v1668, 4
        %v1670 = vrot.slane %v1590, 5
        %v1671 = vsel %vm1647, %v1669, %v1670
        %v1672 = vrot.slane %v1670, 4
        %v1673 = vrot.slane %v1591, 5
        %v1674 = vsel %vm1647, %v1672, %v1673
        %v1675 = vrot.slane %v1673, 4
        %v1676 = vrot.slane %v1592, 5
        %v1677 = vsel %vm1647, %v1675, %v1676
        %v1678 = vrot.slane %v1593, 5
        %v1679 = vrot.slane %v1678, 4
        %v1680 = vrot.slane %v1594, 5
        %v1681 = vsel %vm1647, %v1679, %v1680
        %v1682 = vrot.slane %v1680, 4
        %v1683 = vrot.slane %v1595, 5
        %v1684 = vsel %vm1647, %v1682, %v1683
        %v1685 = vrot.slane %v1683, 4
        %v1686 = vrot.slane %v1596, 5
        %v1687 = vsel %vm1647, %v1685, %v1686
        %v1688 = vrot.slane %v1597, 5
        %v1689 = vrot.slane %v1688, 4
        %v1690 = vrot.slane %v1598, 5
        %v1691 = vsel %vm1647, %v1689, %v1690
        %v1692 = vrot.slane %v1690, 4
        %v1693 = vrot.slane %v1599, 5
        %v1694 = vsel %vm1647, %v1692, %v1693
        %v1695 = vrot.slane %v1693, 4
        %v1696 = vrot.slane %v1600, 5
        %v1697 = vsel %vm1647, %v1695, %v1696
        %v1698 = vrot.slane %v1601, 5
        %v1699 = vrot.slane %v1698, 4
        %v1700 = vrot.slane %v1602, 5
        %v1701 = vsel %vm1647, %v1699, %v1700
        %v1702 = vrot.slane %v1700, 4
        %v1703 = vrot.slane %v1603, 5
        %v1704 = vsel %vm1647, %v1702, %v1703
        %v1705 = vrot.slane %v1703, 4
        %v1706 = vrot.slane %v1604, 5
        %v1707 = vsel %vm1647, %v1705, %v1706
        %v1708 = vrot.slane %v1605, 5
        %v1709 = vrot.slane %v1708, 4
        %v1710 = vrot.slane %v1606, 5
        %v1711 = vsel %vm1647, %v1709, %v1710
        %v1712 = vrot.slane %v1710, 4
        %v1713 = vrot.slane %v1607, 5
        %v1714 = vsel %vm1647, %v1712, %v1713
        %v1715 = vrot.slane %v1713, 4
        %v1716 = vrot.slane %v1608, 5
        %v1717 = vsel %vm1647, %v1715, %v1716
        %v1718 = vrot.slane %v1609, 5
        %v1719 = vrot.slane %v1718, 4
        %v1720 = vrot.slane %v1610, 5
        %v1721 = vsel %vm1647, %v1719, %v1720
        %v1722 = vrot.slane %v1720, 4
        %v1723 = vrot.slane %v1611, 5
        %v1724 = vsel %vm1647, %v1722, %v1723
        %v1725 = vrot.slane %v1723, 4
        %v1726 = vrot.slane %v1612, 5
        %v1727 = vsel %vm1647, %v1725, %v1726
        %v1728 = vld [vmem:[#allocation2] sm:$0xff]
        %v1729 = vld [vmem:[#allocation2 + $0x8] sm:$0xff]
        %v1730 = vld [vmem:[#allocation2 + $0x10] sm:$0xff]
        %v1731 = vld [vmem:[#allocation2 + $0x18] sm:$0xff]
        %v1732 = vld [vmem:[#allocation2 + $0x20] sm:$0xff]
        %v1733 = vld [vmem:[#allocation2 + $0x28] sm:$0xff]
        %v1734 = vld [vmem:[#allocation2 + $0x30] sm:$0xff]
        %v1735 = vld [vmem:[#allocation2 + $0x38] sm:$0xff]
        %v1736 = vld [vmem:[#allocation2 + $0x40] sm:$0xff]
        %v1737 = vld [vmem:[#allocation2 + $0x48] sm:$0xff]
        %v1738 = vld [vmem:[#allocation2 + $0x50] sm:$0xff]
        %v1739 = vld [vmem:[#allocation2 + $0x58] sm:$0xff]
        %v1740 = vld [vmem:[#allocation2 + $0x60] sm:$0xff]
        %v1741 = vld [vmem:[#allocation2 + $0x68] sm:$0xff]
        %v1742 = vld [vmem:[#allocation2 + $0x70] sm:$0xff]
        %v1743 = vld [vmem:[#allocation2 + $0x78] sm:$0xff]
        %v1744 = vld [vmem:[#allocation2 + $0x80] sm:$0xff]
        %v1745 = vld [vmem:[#allocation2 + $0x88] sm:$0xff]
        %v1746 = vld [vmem:[#allocation2 + $0x90] sm:$0xff]
        %v1747 = vld [vmem:[#allocation2 + $0x98] sm:$0xff]
        %v1748 = vld [vmem:[#allocation2 + $0xa0] sm:$0xff]
        %v1749 = vld [vmem:[#allocation2 + $0xa8] sm:$0xff]
        %v1750 = vld [vmem:[#allocation2 + $0xb0] sm:$0xff]
        %v1751 = vld [vmem:[#allocation2 + $0xb8] sm:$0xff]
        %v1752 = vld [vmem:[#allocation2 + $0xc0] sm:$0xff]
        %v1753 = vld [vmem:[#allocation2 + $0xc8] sm:$0xff]
        %v1754 = vld [vmem:[#allocation2 + $0xd0] sm:$0xff]
        %v1755 = vld [vmem:[#allocation2 + $0xd8] sm:$0xff]
        %v1756 = vld [vmem:[#allocation2 + $0xe0] sm:$0xff]
        %v1757 = vld [vmem:[#allocation2 + $0xe8] sm:$0xff]
        %v1758 = vld [vmem:[#allocation2 + $0xf0] sm:$0xff]
        %v1759 = vld [vmem:[#allocation2 + $0xf8] sm:$0xff]
        %v1760 = vld [vmem:[#allocation2 + $0x100] sm:$0xff]
        %v1761 = vld [vmem:[#allocation2 + $0x108] sm:$0xff]
        %v1762 = vld [vmem:[#allocation2 + $0x110] sm:$0xff]
        %v1763 = vld [vmem:[#allocation2 + $0x118] sm:$0xff]
        %v1764 = vld [vmem:[#allocation2 + $0x120] sm:$0xff]
        %v1765 = vld [vmem:[#allocation2 + $0x128] sm:$0xff]
        %v1766 = vld [vmem:[#allocation2 + $0x130] sm:$0xff]
        %v1767 = vld [vmem:[#allocation2 + $0x138] sm:$0xff]
        %v1768 = vld [vmem:[#allocation2 + $0x140] sm:$0xff]
        %v1769 = vld [vmem:[#allocation2 + $0x148] sm:$0xff]
        %v1770 = vld [vmem:[#allocation2 + $0x150] sm:$0xff]
        %v1771 = vld [vmem:[#allocation2 + $0x158] sm:$0xff]
        %v1772 = vld [vmem:[#allocation2 + $0x160] sm:$0xff]
        %v1773 = vld [vmem:[#allocation2 + $0x168] sm:$0xff]
        %v1774 = vld [vmem:[#allocation2 + $0x170] sm:$0xff]
        %v1775 = vld [vmem:[#allocation2 + $0x178] sm:$0xff]
        %s1776 = scalar_lea.vmem [#allocation7], 64
        %v1777 = vld [vmem:[%s1776] sm:$0xff]
        %v1778 = vld [vmem:[%s1776 + $0x8] sm:$0xff]
        %v1779 = vld [vmem:[%s1776 + $0x10] sm:$0xff]
        %v1780 = vld [vmem:[%s1776 + $0x18] sm:$0x33]
        %v1781 = vunpack.c.l.b16 %v1651
        %v1782 = vunpack.c.l.b16 %v1654
        %v1783 = vunpack.c.l.b16 %v1657
        %v1784 = vunpack.c.l.b16 %v1661
        %v1785 = vunpack.c.l.b16 %v1664
        %v1786 = vunpack.c.l.b16 %v1667
        %v1787 = vunpack.c.l.b16 %v1671
        %v1788 = vunpack.c.l.b16 %v1674
        %v1789 = vunpack.c.l.b16 %v1677
        %v1790 = vunpack.c.l.b16 %v1681
        %v1791 = vunpack.c.l.b16 %v1684
        %v1792 = vunpack.c.l.b16 %v1687
        %v1793 = vunpack.c.l.b16 %v1691
        %v1794 = vunpack.c.l.b16 %v1694
        %v1795 = vunpack.c.l.b16 %v1697
        %v1796 = vunpack.c.l.b16 %v1701
        %v1797 = vunpack.c.l.b16 %v1704
        %v1798 = vunpack.c.l.b16 %v1707
        %v1799 = vunpack.c.l.b16 %v1711
        %v1800 = vunpack.c.l.b16 %v1714
        %v1801 = vunpack.c.l.b16 %v1717
        %v1802 = vunpack.c.l.b16 %v1721
        %v1803 = vunpack.c.l.b16 %v1724
        %v1804 = vunpack.c.l.b16 %v1727
        %v1805 = vpack.c.b16 %v1782, %v1781
        %v1806 = vpack.c.b16 %v1784, %v1783
        %v1807 = vpack.c.b16 %v1786, %v1785
        %v1808 = vpack.c.b16 %v1788, %v1787
        %v1809 = vpack.c.b16 %v1790, %v1789
        %v1810 = vpack.c.b16 %v1792, %v1791
        %v1811 = vpack.c.b16 %v1794, %v1793
        %v1812 = vpack.c.b16 %v1796, %v1795
        %v1813 = vpack.c.b16 %v1798, %v1797
        %v1814 = vpack.c.b16 %v1800, %v1799
        %v1815 = vpack.c.b16 %v1802, %v1801
        %v1816 = vpack.c.b16 %v1804, %v1803
        %v1821 = vunpack.c.l.b16 %v1777
        %v1822 = vunpack.c.h.b16 %v1777
        %v1823 = vunpack.c.l.b16 %v1778
        %v1824 = vunpack.c.h.b16 %v1778
        %v1825 = vunpack.c.l.b16 %v1779
        %v1826 = vunpack.c.h.b16 %v1779
        %v1827 = vunpack.c.l.b16 %v1780
        %v1828 = vunpack.c.h.b16 %v1780
        %v1829 = vpack.c.b16 %v1823, %v1821
        %v1830 = vpack.c.b16 %v1824, %v1822
        %v1831 = vpack.c.b16 %v1827, %v1825
        %v1832 = vpack.c.b16 %v1828, %v1826
        %v1836 = vsel %vm583, %v1805, 0
        %v1839 = vsel %vm583, %v1806, 0
        %v1842 = vsel %vm583, %v1807, 0
        %v1845 = vsel %vm583, %v1808, 0
        %v1848 = vsel %vm583, %v1809, 0
        %v1851 = vsel %vm583, %v1810, 0
        %v1854 = vsel %vm583, %v1811, 0
        %v1857 = vsel %vm583, %v1812, 0
        %v1860 = vsel %vm583, %v1813, 0
        %v1863 = vsel %vm583, %v1814, 0
        %v1866 = vsel %vm583, %v1815, 0
        %v1869 = vsel %vm583, %v1816, 0
        %v1872 = vsel %vm620, %v1831, 0
        %v1875 = vsel %vm620, %v1832, 0
        %1877 = vmatprep.subr.bf16.mxu0 %v1830
        %1878 = vmatpush1.bf16.msra.mxu0 %v1829
        %1879 = vmatprep.subr.bf16.mxu0 %v1875
        %1880 = vmatpush1.bf16.msra.mxu0 %v1872
        %1881 = vmatprep.subr.bf16.mxu0 0
        %1882 = vmatpush1.bf16.msra.mxu0 0
        %1883 = vmatprep.subr.bf16.mxu0 0
        %1884 = vmatpush1.bf16.msra.mxu0 0
        %1885 = vmatprep.subr.bf16.mxu0 0
        %1886 = vmatpush1.bf16.msra.mxu0 0
        %1887 = vmatprep.subr.bf16.mxu0 0
        %1888 = vmatpush1.bf16.msra.mxu0 0
        %1889 = vmatprep.subr.bf16.mxu0 0
        %1890 = vmatpush1.bf16.msra.mxu0 0
        %1891 = vmatprep.subr.bf16.mxu0 0
        %1892 = vmatpush1.bf16.msra.mxu0 0
        %1893 = vmatprep.subr.bf16.mxu0 0
        %1894 = vmatpush1.bf16.msra.mxu0 0
        %1895 = vmatprep.subr.bf16.mxu0 0
        %1896 = vmatpush1.bf16.msra.mxu0 0
        %1897 = vmatprep.subr.bf16.mxu0 0
        %1898 = vmatpush1.bf16.msra.mxu0 0
        %1899 = vmatprep.subr.bf16.mxu0 0
        %1900 = vmatpush1.bf16.msra.mxu0 0
        %1901 = vmatprep.subr.bf16.mxu0 0
        %1902 = vmatpush1.bf16.msra.mxu0 0
        %1903 = vmatprep.subr.bf16.mxu0 0
        %1904 = vmatpush1.bf16.msra.mxu0 0
        %1905 = vmatprep.subr.bf16.mxu0 0
        %1906 = vmatpush1.bf16.msra.mxu0 0
        %1907 = vmatprep.subr.bf16.mxu0 0
        %1908 = vmatpush1.bf16.msra.mxu0 0
        %1909 = vmatprep.mubr.bf16.mxu0 0
        %1910 = vmatmul.mubr.bf16.gmra.mrb[0].mxu0 %v1836
        %v1911 = vpop.f32.mrb[0].mxu0
        %v1912 = vadd.f32 0.0, %v1911
        %v1913 = vpop.f32.mrb[0].mxu0
        %v1914 = vadd.f32 0.0, %v1913
        %v1915 = vpop.f32.mrb[0].mxu0
        %v1916 = vadd.f32 0.0, %v1915
        %v1917 = vpop.f32.mrb[0].mxu0
        %v1918 = vadd.f32 0.0, %v1917
        %1919 = vmatprep.mubr.bf16.mxu0 0
        %1920 = vmatmul.mubr.bf16.gmra.mrb[0].mxu0 %v1839
        %v1921 = vpop.f32.mrb[0].mxu0
        %v1922 = vadd.f32 0.0, %v1921
        %v1923 = vpop.f32.mrb[0].mxu0
        %v1924 = vadd.f32 0.0, %v1923
        %v1925 = vpop.f32.mrb[0].mxu0
        %v1926 = vadd.f32 0.0, %v1925
        %v1927 = vpop.f32.mrb[0].mxu0
        %v1928 = vadd.f32 0.0, %v1927
        %1929 = vmatprep.mubr.bf16.mxu0 0
        %1930 = vmatmul.mubr.bf16.gmra.mrb[0].mxu0 %v1842
        %v1931 = vpop.f32.mrb[0].mxu0
        %v1932 = vadd.f32 0.0, %v1931
        %v1933 = vpop.f32.mrb[0].mxu0
        %v1934 = vadd.f32 0.0, %v1933
        %v1935 = vpop.f32.mrb[0].mxu0
        %v1936 = vadd.f32 0.0, %v1935
        %v1937 = vpop.f32.mrb[0].mxu0
        %v1938 = vadd.f32 0.0, %v1937
        %1939 = vmatprep.mubr.bf16.mxu0 0
        %1940 = vmatmul.mubr.bf16.gmra.mrb[0].mxu0 %v1845
        %v1941 = vpop.f32.mrb[0].mxu0
        %v1942 = vadd.f32 0.0, %v1941
        %v1943 = vpop.f32.mrb[0].mxu0
        %v1944 = vadd.f32 0.0, %v1943
        %v1945 = vpop.f32.mrb[0].mxu0
        %v1946 = vadd.f32 0.0, %v1945
        %v1947 = vpop.f32.mrb[0].mxu0
        %v1948 = vadd.f32 0.0, %v1947
        %1949 = vmatprep.mubr.bf16.mxu0 0
        %1950 = vmatmul.mubr.bf16.gmra.mrb[0].mxu0 %v1848
        %v1951 = vpop.f32.mrb[0].mxu0
        %v1952 = vadd.f32 0.0, %v1951
        %v1953 = vpop.f32.mrb[0].mxu0
        %v1954 = vadd.f32 0.0, %v1953
        %v1955 = vpop.f32.mrb[0].mxu0
        %v1956 = vadd.f32 0.0, %v1955
        %v1957 = vpop.f32.mrb[0].mxu0
        %v1958 = vadd.f32 0.0, %v1957
        %1959 = vmatprep.mubr.bf16.mxu0 0
        %1960 = vmatmul.mubr.bf16.gmra.mrb[0].mxu0 %v1851
        %v1961 = vpop.f32.mrb[0].mxu0
        %v1962 = vadd.f32 0.0, %v1961
        %v1963 = vpop.f32.mrb[0].mxu0
        %v1964 = vadd.f32 0.0, %v1963
        %v1965 = vpop.f32.mrb[0].mxu0
        %v1966 = vadd.f32 0.0, %v1965
        %v1967 = vpop.f32.mrb[0].mxu0
        %v1968 = vadd.f32 0.0, %v1967
        %1969 = vmatprep.mubr.bf16.mxu0 0
        %1970 = vmatmul.mubr.bf16.gmra.mrb[0].mxu0 %v1854
        %v1971 = vpop.f32.mrb[0].mxu0
        %v1972 = vadd.f32 0.0, %v1971
        %v1973 = vpop.f32.mrb[0].mxu0
        %v1974 = vadd.f32 0.0, %v1973
        %v1975 = vpop.f32.mrb[0].mxu0
        %v1976 = vadd.f32 0.0, %v1975
        %v1977 = vpop.f32.mrb[0].mxu0
        %v1978 = vadd.f32 0.0, %v1977
        %1979 = vmatprep.mubr.bf16.mxu0 0
        %1980 = vmatmul.mubr.bf16.gmra.mrb[0].mxu0 %v1857
        %v1981 = vpop.f32.mrb[0].mxu0
        %v1982 = vadd.f32 0.0, %v1981
        %v1983 = vpop.f32.mrb[0].mxu0
        %v1984 = vadd.f32 0.0, %v1983
        %v1985 = vpop.f32.mrb[0].mxu0
        %v1986 = vadd.f32 0.0, %v1985
        %v1987 = vpop.f32.mrb[0].mxu0
        %v1988 = vadd.f32 0.0, %v1987
        %1989 = vmatprep.mubr.bf16.mxu0 0
        %1990 = vmatmul.mubr.bf16.gmra.mrb[0].mxu0 %v1860
        %v1991 = vpop.f32.mrb[0].mxu0
        %v1992 = vadd.f32 0.0, %v1991
        %v1993 = vpop.f32.mrb[0].mxu0
        %v1994 = vadd.f32 0.0, %v1993
        %v1995 = vpop.f32.mrb[0].mxu0
        %v1996 = vadd.f32 0.0, %v1995
        %v1997 = vpop.f32.mrb[0].mxu0
        %v1998 = vadd.f32 0.0, %v1997
        %1999 = vmatprep.mubr.bf16.mxu0 0
        %2000 = vmatmul.mubr.bf16.gmra.mrb[0].mxu0 %v1863
        %v2001 = vpop.f32.mrb[0].mxu0
        %v2002 = vadd.f32 0.0, %v2001
        %v2003 = vpop.f32.mrb[0].mxu0
        %v2004 = vadd.f32 0.0, %v2003
        %v2005 = vpop.f32.mrb[0].mxu0
        %v2006 = vadd.f32 0.0, %v2005
        %v2007 = vpop.f32.mrb[0].mxu0
        %v2008 = vadd.f32 0.0, %v2007
        %2009 = vmatprep.mubr.bf16.mxu0 0
        %2010 = vmatmul.mubr.bf16.gmra.mrb[0].mxu0 %v1866
        %v2011 = vpop.f32.mrb[0].mxu0
        %v2012 = vadd.f32 0.0, %v2011
        %v2013 = vpop.f32.mrb[0].mxu0
        %v2014 = vadd.f32 0.0, %v2013
        %v2015 = vpop.f32.mrb[0].mxu0
        %v2016 = vadd.f32 0.0, %v2015
        %v2017 = vpop.f32.mrb[0].mxu0
        %v2018 = vadd.f32 0.0, %v2017
        %2019 = vmatprep.mubr.bf16.mxu0 0
        %2020 = vmatmul.mubr.bf16.gmra.mrb[0].mxu0 %v1869
        %v2021 = vpop.f32.mrb[0].mxu0
        %v2022 = vadd.f32 0.0, %v2021
        %v2023 = vpop.f32.mrb[0].mxu0
        %v2024 = vadd.f32 0.0, %v2023
        %v2025 = vpop.f32.mrb[0].mxu0
        %v2026 = vadd.f32 0.0, %v2025
        %v2027 = vpop.f32.mrb[0].mxu0
        %v2028 = vadd.f32 0.0, %v2027
        %2029 = vdwg.mxu0
        %v2030 = vadd.f32 %v1728, %v1912
        %v2031 = vadd.f32 %v1729, %v1914
        %v2032 = vadd.f32 %v1730, %v1916
        %v2033 = vadd.f32 %v1731, %v1918
        %v2034 = vadd.f32 %v1732, %v1922
        %v2035 = vadd.f32 %v1733, %v1924
        %v2036 = vadd.f32 %v1734, %v1926
        %v2037 = vadd.f32 %v1735, %v1928
        %v2038 = vadd.f32 %v1736, %v1932
        %v2039 = vadd.f32 %v1737, %v1934
        %v2040 = vadd.f32 %v1738, %v1936
        %v2041 = vadd.f32 %v1739, %v1938
        %v2042 = vadd.f32 %v1740, %v1942
        %v2043 = vadd.f32 %v1741, %v1944
        %v2044 = vadd.f32 %v1742, %v1946
        %v2045 = vadd.f32 %v1743, %v1948
        %v2046 = vadd.f32 %v1744, %v1952
        %v2047 = vadd.f32 %v1745, %v1954
        %v2048 = vadd.f32 %v1746, %v1956
        %v2049 = vadd.f32 %v1747, %v1958
        %v2050 = vadd.f32 %v1748, %v1962
        %v2051 = vadd.f32 %v1749, %v1964
        %v2052 = vadd.f32 %v1750, %v1966
        %v2053 = vadd.f32 %v1751, %v1968
        %v2054 = vadd.f32 %v1752, %v1972
        %v2055 = vadd.f32 %v1753, %v1974
        %v2056 = vadd.f32 %v1754, %v1976
        %v2057 = vadd.f32 %v1755, %v1978
        %v2058 = vadd.f32 %v1756, %v1982
        %v2059 = vadd.f32 %v1757, %v1984
        %v2060 = vadd.f32 %v1758, %v1986
        %v2061 = vadd.f32 %v1759, %v1988
        %v2062 = vadd.f32 %v1760, %v1992
        %v2063 = vadd.f32 %v1761, %v1994
        %v2064 = vadd.f32 %v1762, %v1996
        %v2065 = vadd.f32 %v1763, %v1998
        %v2066 = vadd.f32 %v1764, %v2002
        %v2067 = vadd.f32 %v1765, %v2004
        %v2068 = vadd.f32 %v1766, %v2006
        %v2069 = vadd.f32 %v1767, %v2008
        %v2070 = vadd.f32 %v1768, %v2012
        %v2071 = vadd.f32 %v1769, %v2014
        %v2072 = vadd.f32 %v1770, %v2016
        %v2073 = vadd.f32 %v1771, %v2018
        %v2074 = vadd.f32 %v1772, %v2022
        %v2075 = vadd.f32 %v1773, %v2024
        %v2076 = vadd.f32 %v1774, %v2026
        %v2077 = vadd.f32 %v1775, %v2028
        %2078 = vst [vmem:[#allocation2] sm:$0xff] %v2030
        %2079 = vst [vmem:[#allocation2 + $0x8] sm:$0xff] %v2031
        %2080 = vst [vmem:[#allocation2 + $0x10] sm:$0xff] %v2032
        %2081 = vst [vmem:[#allocation2 + $0x18] sm:$0xff] %v2033
        %2082 = vst [vmem:[#allocation2 + $0x20] sm:$0xff] %v2034
        %2083 = vst [vmem:[#allocation2 + $0x28] sm:$0xff] %v2035
        %2084 = vst [vmem:[#allocation2 + $0x30] sm:$0xff] %v2036
        %2085 = vst [vmem:[#allocation2 + $0x38] sm:$0xff] %v2037
        %2086 = vst [vmem:[#allocation2 + $0x40] sm:$0xff] %v2038
        %2087 = vst [vmem:[#allocation2 + $0x48] sm:$0xff] %v2039
        %2088 = vst [vmem:[#allocation2 + $0x50] sm:$0xff] %v2040
        %2089 = vst [vmem:[#allocation2 + $0x58] sm:$0xff] %v2041
        %2090 = vst [vmem:[#allocation2 + $0x60] sm:$0xff] %v2042
        %2091 = vst [vmem:[#allocation2 + $0x68] sm:$0xff] %v2043
        %2092 = vst [vmem:[#allocation2 + $0x70] sm:$0xff] %v2044
        %2093 = vst [vmem:[#allocation2 + $0x78] sm:$0xff] %v2045
        %2094 = vst [vmem:[#allocation2 + $0x80] sm:$0xff] %v2046
        %2095 = vst [vmem:[#allocation2 + $0x88] sm:$0xff] %v2047
        %2096 = vst [vmem:[#allocation2 + $0x90] sm:$0xff] %v2048
        %2097 = vst [vmem:[#allocation2 + $0x98] sm:$0xff] %v2049
        %2098 = vst [vmem:[#allocation2 + $0xa0] sm:$0xff] %v2050
        %2099 = vst [vmem:[#allocation2 + $0xa8] sm:$0xff] %v2051
        %2100 = vst [vmem:[#allocation2 + $0xb0] sm:$0xff] %v2052
        %2101 = vst [vmem:[#allocation2 + $0xb8] sm:$0xff] %v2053
        %2102 = vst [vmem:[#allocation2 + $0xc0] sm:$0xff] %v2054
        %2103 = vst [vmem:[#allocation2 + $0xc8] sm:$0xff] %v2055
        %2104 = vst [vmem:[#allocation2 + $0xd0] sm:$0xff] %v2056
        %2105 = vst [vmem:[#allocation2 + $0xd8] sm:$0xff] %v2057
        %2106 = vst [vmem:[#allocation2 + $0xe0] sm:$0xff] %v2058
        %2107 = vst [vmem:[#allocation2 + $0xe8] sm:$0xff] %v2059
        %2108 = vst [vmem:[#allocation2 + $0xf0] sm:$0xff] %v2060
        %2109 = vst [vmem:[#allocation2 + $0xf8] sm:$0xff] %v2061
        %2110 = vst [vmem:[#allocation2 + $0x100] sm:$0xff] %v2062
        %2111 = vst [vmem:[#allocation2 + $0x108] sm:$0xff] %v2063
        %2112 = vst [vmem:[#allocation2 + $0x110] sm:$0xff] %v2064
        %2113 = vst [vmem:[#allocation2 + $0x118] sm:$0xff] %v2065
        %2114 = vst [vmem:[#allocation2 + $0x120] sm:$0xff] %v2066
        %2115 = vst [vmem:[#allocation2 + $0x128] sm:$0xff] %v2067
        %2116 = vst [vmem:[#allocation2 + $0x130] sm:$0xff] %v2068
        %2117 = vst [vmem:[#allocation2 + $0x138] sm:$0xff] %v2069
        %2118 = vst [vmem:[#allocation2 + $0x140] sm:$0xff] %v2070
        %2119 = vst [vmem:[#allocation2 + $0x148] sm:$0xff] %v2071
        %2120 = vst [vmem:[#allocation2 + $0x150] sm:$0xff] %v2072
        %2121 = vst [vmem:[#allocation2 + $0x158] sm:$0xff] %v2073
        %2122 = vst [vmem:[#allocation2 + $0x160] sm:$0xff] %v2074
        %2123 = vst [vmem:[#allocation2 + $0x168] sm:$0xff] %v2075
        %2124 = vst [vmem:[#allocation2 + $0x170] sm:$0xff] %v2076
        %2125 = vst [vmem:[#allocation2 + $0x178] sm:$0xff] %v2077
        %v2126 = vld [vmem:[%s378] sm:$0xe]
        %v2127 = vld [vmem:[%s378 + $0x4] sm:$0xf]
        %v2128 = vld [vmem:[%s378 + $0x8] sm:$0xf]
        %v2129 = vld [vmem:[%s378 + $0xc] sm:$0x3]
        %v2130 = vld [vmem:[%s378 + $0x10] sm:$0xe]
        %v2131 = vld [vmem:[%s378 + $0x14] sm:$0xf]
        %v2132 = vld [vmem:[%s378 + $0x18] sm:$0xf]
        %v2133 = vld [vmem:[%s378 + $0x1c] sm:$0x3]
        %v2134 = vld [vmem:[%s378 + $0x20] sm:$0xe]
        %v2135 = vld [vmem:[%s378 + $0x24] sm:$0xf]
        %v2136 = vld [vmem:[%s378 + $0x28] sm:$0xf]
        %v2137 = vld [vmem:[%s378 + $0x2c] sm:$0x3]
        %v2138 = vld [vmem:[%s378 + $0x30] sm:$0xe]
        %v2139 = vld [vmem:[%s378 + $0x34] sm:$0xf]
        %v2140 = vld [vmem:[%s378 + $0x38] sm:$0xf]
        %v2141 = vld [vmem:[%s378 + $0x3c] sm:$0x3]
        %v2142 = vld [vmem:[%s378 + $0x40] sm:$0xe]
        %v2143 = vld [vmem:[%s378 + $0x44] sm:$0xf]
        %v2144 = vld [vmem:[%s378 + $0x48] sm:$0xf]
        %v2145 = vld [vmem:[%s378 + $0x4c] sm:$0x3]
        %v2146 = vld [vmem:[%s378 + $0x50] sm:$0xe]
        %v2147 = vld [vmem:[%s378 + $0x54] sm:$0xf]
        %v2148 = vld [vmem:[%s378 + $0x58] sm:$0xf]
        %v2149 = vld [vmem:[%s378 + $0x5c] sm:$0x3]
        %v2150 = vld [vmem:[%s378 + $0x60] sm:$0xe]
        %v2151 = vld [vmem:[%s378 + $0x64] sm:$0xf]
        %v2152 = vld [vmem:[%s378 + $0x68] sm:$0xf]
        %v2153 = vld [vmem:[%s378 + $0x6c] sm:$0x3]
        %v2154 = vld [vmem:[%s378 + $0x70] sm:$0xe]
        %v2155 = vld [vmem:[%s378 + $0x74] sm:$0xf]
        %v2156 = vld [vmem:[%s378 + $0x78] sm:$0xf]
        %v2157 = vld [vmem:[%s378 + $0x7c] sm:$0x3]
        %vm2158 = vsmask.f32 2304
        %vm2159 = vsmask.f32 6416
        %vm2160 = vmor %vm2158, %vm2159
        %v2162 = vshrl.u32 %v2126, 16
        %v2164 = vrot.slane %v2162, 5
        %v2165 = vshll.u32 %v2126, 16
        %v2167 = vrot.slane %v2165, 6
        %v2168 = vor.u32 %v2164, %v2167
        %v2169 = vrot.slane %v2168, 4
        %v2171 = vshrl.u32 %v2127, 16
        %v2173 = vrot.slane %v2171, 5
        %v2174 = vshll.u32 %v2127, 16
        %v2176 = vrot.slane %v2174, 6
        %v2177 = vor.u32 %v2173, %v2176
        %v2178 = vsel %vm2160, %v2169, %v2177
        %v2179 = vrot.slane %v2177, 4
        %v2181 = vshrl.u32 %v2128, 16
        %v2183 = vrot.slane %v2181, 5
        %v2184 = vshll.u32 %v2128, 16
        %v2186 = vrot.slane %v2184, 6
        %v2187 = vor.u32 %v2183, %v2186
        %v2188 = vsel %vm2160, %v2179, %v2187
        %v2189 = vrot.slane %v2187, 4
        %v2191 = vshrl.u32 %v2129, 16
        %v2193 = vrot.slane %v2191, 5
        %v2194 = vshll.u32 %v2129, 16
        %v2196 = vrot.slane %v2194, 6
        %v2197 = vor.u32 %v2193, %v2196
        %v2198 = vsel %vm2160, %v2189, %v2197
        %v2200 = vshrl.u32 %v2130, 16
        %v2202 = vrot.slane %v2200, 5
        %v2203 = vshll.u32 %v2130, 16
        %v2205 = vrot.slane %v2203, 6
        %v2206 = vor.u32 %v2202, %v2205
        %v2207 = vrot.slane %v2206, 4
        %v2209 = vshrl.u32 %v2131, 16
        %v2211 = vrot.slane %v2209, 5
        %v2212 = vshll.u32 %v2131, 16
        %v2214 = vrot.slane %v2212, 6
        %v2215 = vor.u32 %v2211, %v2214
        %v2216 = vsel %vm2160, %v2207, %v2215
        %v2217 = vrot.slane %v2215, 4
        %v2219 = vshrl.u32 %v2132, 16
        %v2221 = vrot.slane %v2219, 5
        %v2222 = vshll.u32 %v2132, 16
        %v2224 = vrot.slane %v2222, 6
        %v2225 = vor.u32 %v2221, %v2224
        %v2226 = vsel %vm2160, %v2217, %v2225
        %v2227 = vrot.slane %v2225, 4
        %v2229 = vshrl.u32 %v2133, 16
        %v2231 = vrot.slane %v2229, 5
        %v2232 = vshll.u32 %v2133, 16
        %v2234 = vrot.slane %v2232, 6
        %v2235 = vor.u32 %v2231, %v2234
        %v2236 = vsel %vm2160, %v2227, %v2235
        %v2238 = vshrl.u32 %v2134, 16
        %v2240 = vrot.slane %v2238, 5
        %v2241 = vshll.u32 %v2134, 16
        %v2243 = vrot.slane %v2241, 6
        %v2244 = vor.u32 %v2240, %v2243
        %v2245 = vrot.slane %v2244, 4
        %v2247 = vshrl.u32 %v2135, 16
        %v2249 = vrot.slane %v2247, 5
        %v2250 = vshll.u32 %v2135, 16
        %v2252 = vrot.slane %v2250, 6
        %v2253 = vor.u32 %v2249, %v2252
        %v2254 = vsel %vm2160, %v2245, %v2253
        %v2255 = vrot.slane %v2253, 4
        %v2257 = vshrl.u32 %v2136, 16
        %v2259 = vrot.slane %v2257, 5
        %v2260 = vshll.u32 %v2136, 16
        %v2262 = vrot.slane %v2260, 6
        %v2263 = vor.u32 %v2259, %v2262
        %v2264 = vsel %vm2160, %v2255, %v2263
        %v2265 = vrot.slane %v2263, 4
        %v2267 = vshrl.u32 %v2137, 16
        %v2269 = vrot.slane %v2267, 5
        %v2270 = vshll.u32 %v2137, 16
        %v2272 = vrot.slane %v2270, 6
        %v2273 = vor.u32 %v2269, %v2272
        %v2274 = vsel %vm2160, %v2265, %v2273
        %v2276 = vshrl.u32 %v2138, 16
        %v2278 = vrot.slane %v2276, 5
        %v2279 = vshll.u32 %v2138, 16
        %v2281 = vrot.slane %v2279, 6
        %v2282 = vor.u32 %v2278, %v2281
        %v2283 = vrot.slane %v2282, 4
        %v2285 = vshrl.u32 %v2139, 16
        %v2287 = vrot.slane %v2285, 5
        %v2288 = vshll.u32 %v2139, 16
        %v2290 = vrot.slane %v2288, 6
        %v2291 = vor.u32 %v2287, %v2290
        %v2292 = vsel %vm2160, %v2283, %v2291
        %v2293 = vrot.slane %v2291, 4
        %v2295 = vshrl.u32 %v2140, 16
        %v2297 = vrot.slane %v2295, 5
        %v2298 = vshll.u32 %v2140, 16
        %v2300 = vrot.slane %v2298, 6
        %v2301 = vor.u32 %v2297, %v2300
        %v2302 = vsel %vm2160, %v2293, %v2301
        %v2303 = vrot.slane %v2301, 4
        %v2305 = vshrl.u32 %v2141, 16
        %v2307 = vrot.slane %v2305, 5
        %v2308 = vshll.u32 %v2141, 16
        %v2310 = vrot.slane %v2308, 6
        %v2311 = vor.u32 %v2307, %v2310
        %v2312 = vsel %vm2160, %v2303, %v2311
        %v2314 = vshrl.u32 %v2142, 16
        %v2316 = vrot.slane %v2314, 5
        %v2317 = vshll.u32 %v2142, 16
        %v2319 = vrot.slane %v2317, 6
        %v2320 = vor.u32 %v2316, %v2319
        %v2321 = vrot.slane %v2320, 4
        %v2323 = vshrl.u32 %v2143, 16
        %v2325 = vrot.slane %v2323, 5
        %v2326 = vshll.u32 %v2143, 16
        %v2328 = vrot.slane %v2326, 6
        %v2329 = vor.u32 %v2325, %v2328
        %v2330 = vsel %vm2160, %v2321, %v2329
        %v2331 = vrot.slane %v2329, 4
        %v2333 = vshrl.u32 %v2144, 16
        %v2335 = vrot.slane %v2333, 5
        %v2336 = vshll.u32 %v2144, 16
        %v2338 = vrot.slane %v2336, 6
        %v2339 = vor.u32 %v2335, %v2338
        %v2340 = vsel %vm2160, %v2331, %v2339
        %v2341 = vrot.slane %v2339, 4
        %v2343 = vshrl.u32 %v2145, 16
        %v2345 = vrot.slane %v2343, 5
        %v2346 = vshll.u32 %v2145, 16
        %v2348 = vrot.slane %v2346, 6
        %v2349 = vor.u32 %v2345, %v2348
        %v2350 = vsel %vm2160, %v2341, %v2349
        %v2352 = vshrl.u32 %v2146, 16
        %v2354 = vrot.slane %v2352, 5
        %v2355 = vshll.u32 %v2146, 16
        %v2357 = vrot.slane %v2355, 6
        %v2358 = vor.u32 %v2354, %v2357
        %v2359 = vrot.slane %v2358, 4
        %v2361 = vshrl.u32 %v2147, 16
        %v2363 = vrot.slane %v2361, 5
        %v2364 = vshll.u32 %v2147, 16
        %v2366 = vrot.slane %v2364, 6
        %v2367 = vor.u32 %v2363, %v2366
        %v2368 = vsel %vm2160, %v2359, %v2367
        %v2369 = vrot.slane %v2367, 4
        %v2371 = vshrl.u32 %v2148, 16
        %v2373 = vrot.slane %v2371, 5
        %v2374 = vshll.u32 %v2148, 16
        %v2376 = vrot.slane %v2374, 6
        %v2377 = vor.u32 %v2373, %v2376
        %v2378 = vsel %vm2160, %v2369, %v2377
        %v2379 = vrot.slane %v2377, 4
        %v2381 = vshrl.u32 %v2149, 16
        %v2383 = vrot.slane %v2381, 5
        %v2384 = vshll.u32 %v2149, 16
        %v2386 = vrot.slane %v2384, 6
        %v2387 = vor.u32 %v2383, %v2386
        %v2388 = vsel %vm2160, %v2379, %v2387
        %v2390 = vshrl.u32 %v2150, 16
        %v2392 = vrot.slane %v2390, 5
        %v2393 = vshll.u32 %v2150, 16
        %v2395 = vrot.slane %v2393, 6
        %v2396 = vor.u32 %v2392, %v2395
        %v2397 = vrot.slane %v2396, 4
        %v2399 = vshrl.u32 %v2151, 16
        %v2401 = vrot.slane %v2399, 5
        %v2402 = vshll.u32 %v2151, 16
        %v2404 = vrot.slane %v2402, 6
        %v2405 = vor.u32 %v2401, %v2404
        %v2406 = vsel %vm2160, %v2397, %v2405
        %v2407 = vrot.slane %v2405, 4
        %v2409 = vshrl.u32 %v2152, 16
        %v2411 = vrot.slane %v2409, 5
        %v2412 = vshll.u32 %v2152, 16
        %v2414 = vrot.slane %v2412, 6
        %v2415 = vor.u32 %v2411, %v2414
        %v2416 = vsel %vm2160, %v2407, %v2415
        %v2417 = vrot.slane %v2415, 4
        %v2419 = vshrl.u32 %v2153, 16
        %v2421 = vrot.slane %v2419, 5
        %v2422 = vshll.u32 %v2153, 16
        %v2424 = vrot.slane %v2422, 6
        %v2425 = vor.u32 %v2421, %v2424
        %v2426 = vsel %vm2160, %v2417, %v2425
        %v2428 = vshrl.u32 %v2154, 16
        %v2430 = vrot.slane %v2428, 5
        %v2431 = vshll.u32 %v2154, 16
        %v2433 = vrot.slane %v2431, 6
        %v2434 = vor.u32 %v2430, %v2433
        %v2435 = vrot.slane %v2434, 4
        %v2437 = vshrl.u32 %v2155, 16
        %v2439 = vrot.slane %v2437, 5
        %v2440 = vshll.u32 %v2155, 16
        %v2442 = vrot.slane %v2440, 6
        %v2443 = vor.u32 %v2439, %v2442
        %v2444 = vsel %vm2160, %v2435, %v2443
        %v2445 = vrot.slane %v2443, 4
        %v2447 = vshrl.u32 %v2156, 16
        %v2449 = vrot.slane %v2447, 5
        %v2450 = vshll.u32 %v2156, 16
        %v2452 = vrot.slane %v2450, 6
        %v2453 = vor.u32 %v2449, %v2452
        %v2454 = vsel %vm2160, %v2445, %v2453
        %v2455 = vrot.slane %v2453, 4
        %v2457 = vshrl.u32 %v2157, 16
        %v2459 = vrot.slane %v2457, 5
        %v2460 = vshll.u32 %v2157, 16
        %v2462 = vrot.slane %v2460, 6
        %v2463 = vor.u32 %v2459, %v2462
        %v2464 = vsel %vm2160, %v2455, %v2463
        %v2465 = vld [vmem:[#allocation2] sm:$0xff]
        %v2466 = vld [vmem:[#allocation2 + $0x8] sm:$0xff]
        %v2467 = vld [vmem:[#allocation2 + $0x10] sm:$0xff]
        %v2468 = vld [vmem:[#allocation2 + $0x18] sm:$0xff]
        %v2469 = vld [vmem:[#allocation2 + $0x20] sm:$0xff]
        %v2470 = vld [vmem:[#allocation2 + $0x28] sm:$0xff]
        %v2471 = vld [vmem:[#allocation2 + $0x30] sm:$0xff]
        %v2472 = vld [vmem:[#allocation2 + $0x38] sm:$0xff]
        %v2473 = vld [vmem:[#allocation2 + $0x40] sm:$0xff]
        %v2474 = vld [vmem:[#allocation2 + $0x48] sm:$0xff]
        %v2475 = vld [vmem:[#allocation2 + $0x50] sm:$0xff]
        %v2476 = vld [vmem:[#allocation2 + $0x58] sm:$0xff]
        %v2477 = vld [vmem:[#allocation2 + $0x60] sm:$0xff]
        %v2478 = vld [vmem:[#allocation2 + $0x68] sm:$0xff]
        %v2479 = vld [vmem:[#allocation2 + $0x70] sm:$0xff]
        %v2480 = vld [vmem:[#allocation2 + $0x78] sm:$0xff]
        %v2481 = vld [vmem:[#allocation2 + $0x80] sm:$0xff]
        %v2482 = vld [vmem:[#allocation2 + $0x88] sm:$0xff]
        %v2483 = vld [vmem:[#allocation2 + $0x90] sm:$0xff]
        %v2484 = vld [vmem:[#allocation2 + $0x98] sm:$0xff]
        %v2485 = vld [vmem:[#allocation2 + $0xa0] sm:$0xff]
        %v2486 = vld [vmem:[#allocation2 + $0xa8] sm:$0xff]
        %v2487 = vld [vmem:[#allocation2 + $0xb0] sm:$0xff]
        %v2488 = vld [vmem:[#allocation2 + $0xb8] sm:$0xff]
        %v2489 = vld [vmem:[#allocation2 + $0xc0] sm:$0xff]
        %v2490 = vld [vmem:[#allocation2 + $0xc8] sm:$0xff]
        %v2491 = vld [vmem:[#allocation2 + $0xd0] sm:$0xff]
        %v2492 = vld [vmem:[#allocation2 + $0xd8] sm:$0xff]
        %v2493 = vld [vmem:[#allocation2 + $0xe0] sm:$0xff]
        %v2494 = vld [vmem:[#allocation2 + $0xe8] sm:$0xff]
        %v2495 = vld [vmem:[#allocation2 + $0xf0] sm:$0xff]
        %v2496 = vld [vmem:[#allocation2 + $0xf8] sm:$0xff]
        %v2497 = vld [vmem:[#allocation2 + $0x100] sm:$0xff]
        %v2498 = vld [vmem:[#allocation2 + $0x108] sm:$0xff]
        %v2499 = vld [vmem:[#allocation2 + $0x110] sm:$0xff]
        %v2500 = vld [vmem:[#allocation2 + $0x118] sm:$0xff]
        %v2501 = vld [vmem:[#allocation2 + $0x120] sm:$0xff]
        %v2502 = vld [vmem:[#allocation2 + $0x128] sm:$0xff]
        %v2503 = vld [vmem:[#allocation2 + $0x130] sm:$0xff]
        %v2504 = vld [vmem:[#allocation2 + $0x138] sm:$0xff]
        %v2505 = vld [vmem:[#allocation2 + $0x140] sm:$0xff]
        %v2506 = vld [vmem:[#allocation2 + $0x148] sm:$0xff]
        %v2507 = vld [vmem:[#allocation2 + $0x150] sm:$0xff]
        %v2508 = vld [vmem:[#allocation2 + $0x158] sm:$0xff]
        %v2509 = vld [vmem:[#allocation2 + $0x160] sm:$0xff]
        %v2510 = vld [vmem:[#allocation2 + $0x168] sm:$0xff]
        %v2511 = vld [vmem:[#allocation2 + $0x170] sm:$0xff]
        %v2512 = vld [vmem:[#allocation2 + $0x178] sm:$0xff]
        %s2513 = scalar_lea.vmem [#allocation7], 96
        %v2514 = vld [vmem:[%s2513] sm:$0xff]
        %v2515 = vld [vmem:[%s2513 + $0x8] sm:$0xff]
        %v2516 = vld [vmem:[%s2513 + $0x10] sm:$0xff]
        %v2517 = vld [vmem:[%s2513 + $0x18] sm:$0x33]
        %v2518 = vunpack.c.l.b16 %v2178
        %v2519 = vunpack.c.l.b16 %v2188
        %v2520 = vunpack.c.l.b16 %v2198
        %v2521 = vunpack.c.l.b16 %v2216
        %v2522 = vunpack.c.l.b16 %v2226
        %v2523 = vunpack.c.l.b16 %v2236
        %v2524 = vunpack.c.l.b16 %v2254
        %v2525 = vunpack.c.l.b16 %v2264
        %v2526 = vunpack.c.l.b16 %v2274
        %v2527 = vunpack.c.l.b16 %v2292
        %v2528 = vunpack.c.l.b16 %v2302
        %v2529 = vunpack.c.l.b16 %v2312
        %v2530 = vunpack.c.l.b16 %v2330
        %v2531 = vunpack.c.l.b16 %v2340
        %v2532 = vunpack.c.l.b16 %v2350
        %v2533 = vunpack.c.l.b16 %v2368
        %v2534 = vunpack.c.l.b16 %v2378
        %v2535 = vunpack.c.l.b16 %v2388
        %v2536 = vunpack.c.l.b16 %v2406
        %v2537 = vunpack.c.l.b16 %v2416
        %v2538 = vunpack.c.l.b16 %v2426
        %v2539 = vunpack.c.l.b16 %v2444
        %v2540 = vunpack.c.l.b16 %v2454
        %v2541 = vunpack.c.l.b16 %v2464
        %v2542 = vpack.c.b16 %v2519, %v2518
        %v2543 = vpack.c.b16 %v2521, %v2520
        %v2544 = vpack.c.b16 %v2523, %v2522
        %v2545 = vpack.c.b16 %v2525, %v2524
        %v2546 = vpack.c.b16 %v2527, %v2526
        %v2547 = vpack.c.b16 %v2529, %v2528
        %v2548 = vpack.c.b16 %v2531, %v2530
        %v2549 = vpack.c.b16 %v2533, %v2532
        %v2550 = vpack.c.b16 %v2535, %v2534
        %v2551 = vpack.c.b16 %v2537, %v2536
        %v2552 = vpack.c.b16 %v2539, %v2538
        %v2553 = vpack.c.b16 %v2541, %v2540
        %v2558 = vunpack.c.l.b16 %v2514
        %v2559 = vunpack.c.h.b16 %v2514
        %v2560 = vunpack.c.l.b16 %v2515
        %v2561 = vunpack.c.h.b16 %v2515
        %v2562 = vunpack.c.l.b16 %v2516
        %v2563 = vunpack.c.h.b16 %v2516
        %v2564 = vunpack.c.l.b16 %v2517
        %v2565 = vunpack.c.h.b16 %v2517
        %v2566 = vpack.c.b16 %v2560, %v2558
        %v2567 = vpack.c.b16 %v2561, %v2559
        %v2568 = vpack.c.b16 %v2564, %v2562
        %v2569 = vpack.c.b16 %v2565, %v2563
        %v2573 = vsel %vm583, %v2542, 0
        %v2576 = vsel %vm583, %v2543, 0
        %v2579 = vsel %vm583, %v2544, 0
        %v2582 = vsel %vm583, %v2545, 0
        %v2585 = vsel %vm583, %v2546, 0
        %v2588 = vsel %vm583, %v2547, 0
        %v2591 = vsel %vm583, %v2548, 0
        %v2594 = vsel %vm583, %v2549, 0
        %v2597 = vsel %vm583, %v2550, 0
        %v2600 = vsel %vm583, %v2551, 0
        %v2603 = vsel %vm583, %v2552, 0
        %v2606 = vsel %vm583, %v2553, 0
        %v2609 = vsel %vm620, %v2568, 0
        %v2612 = vsel %vm620, %v2569, 0
        %2614 = vmatprep.subr.bf16.mxu0 %v2567
        %2615 = vmatpush1.bf16.msra.mxu0 %v2566
        %2616 = vmatprep.subr.bf16.mxu0 %v2612
        %2617 = vmatpush1.bf16.msra.mxu0 %v2609
        %2618 = vmatprep.subr.bf16.mxu0 0
        %2619 = vmatpush1.bf16.msra.mxu0 0
        %2620 = vmatprep.subr.bf16.mxu0 0
        %2621 = vmatpush1.bf16.msra.mxu0 0
        %2622 = vmatprep.subr.bf16.mxu0 0
        %2623 = vmatpush1.bf16.msra.mxu0 0
        %2624 = vmatprep.subr.bf16.mxu0 0
        %2625 = vmatpush1.bf16.msra.mxu0 0
        %2626 = vmatprep.subr.bf16.mxu0 0
        %2627 = vmatpush1.bf16.msra.mxu0 0
        %2628 = vmatprep.subr.bf16.mxu0 0
        %2629 = vmatpush1.bf16.msra.mxu0 0
        %2630 = vmatprep.subr.bf16.mxu0 0
        %2631 = vmatpush1.bf16.msra.mxu0 0
        %2632 = vmatprep.subr.bf16.mxu0 0
        %2633 = vmatpush1.bf16.msra.mxu0 0
        %2634 = vmatprep.subr.bf16.mxu0 0
        %2635 = vmatpush1.bf16.msra.mxu0 0
        %2636 = vmatprep.subr.bf16.mxu0 0
        %2637 = vmatpush1.bf16.msra.mxu0 0
        %2638 = vmatprep.subr.bf16.mxu0 0
        %2639 = vmatpush1.bf16.msra.mxu0 0
        %2640 = vmatprep.subr.bf16.mxu0 0
        %2641 = vmatpush1.bf16.msra.mxu0 0
        %2642 = vmatprep.subr.bf16.mxu0 0
        %2643 = vmatpush1.bf16.msra.mxu0 0
        %2644 = vmatprep.subr.bf16.mxu0 0
        %2645 = vmatpush1.bf16.msra.mxu0 0
        %2646 = vmatprep.mubr.bf16.mxu0 0
        %2647 = vmatmul.mubr.bf16.gmra.mrb[0].mxu0 %v2573
        %v2648 = vpop.f32.mrb[0].mxu0
        %v2649 = vadd.f32 0.0, %v2648
        %v2650 = vpop.f32.mrb[0].mxu0
        %v2651 = vadd.f32 0.0, %v2650
        %v2652 = vpop.f32.mrb[0].mxu0
        %v2653 = vadd.f32 0.0, %v2652
        %v2654 = vpop.f32.mrb[0].mxu0
        %v2655 = vadd.f32 0.0, %v2654
        %2656 = vmatprep.mubr.bf16.mxu0 0
        %2657 = vmatmul.mubr.bf16.gmra.mrb[0].mxu0 %v2576
        %v2658 = vpop.f32.mrb[0].mxu0
        %v2659 = vadd.f32 0.0, %v2658
        %v2660 = vpop.f32.mrb[0].mxu0
        %v2661 = vadd.f32 0.0, %v2660
        %v2662 = vpop.f32.mrb[0].mxu0
        %v2663 = vadd.f32 0.0, %v2662
        %v2664 = vpop.f32.mrb[0].mxu0
        %v2665 = vadd.f32 0.0, %v2664
        %2666 = vmatprep.mubr.bf16.mxu0 0
        %2667 = vmatmul.mubr.bf16.gmra.mrb[0].mxu0 %v2579
        %v2668 = vpop.f32.mrb[0].mxu0
        %v2669 = vadd.f32 0.0, %v2668
        %v2670 = vpop.f32.mrb[0].mxu0
        %v2671 = vadd.f32 0.0, %v2670
        %v2672 = vpop.f32.mrb[0].mxu0
        %v2673 = vadd.f32 0.0, %v2672
        %v2674 = vpop.f32.mrb[0].mxu0
        %v2675 = vadd.f32 0.0, %v2674
        %2676 = vmatprep.mubr.bf16.mxu0 0
        %2677 = vmatmul.mubr.bf16.gmra.mrb[0].mxu0 %v2582
        %v2678 = vpop.f32.mrb[0].mxu0
        %v2679 = vadd.f32 0.0, %v2678
        %v2680 = vpop.f32.mrb[0].mxu0
        %v2681 = vadd.f32 0.0, %v2680
        %v2682 = vpop.f32.mrb[0].mxu0
        %v2683 = vadd.f32 0.0, %v2682
        %v2684 = vpop.f32.mrb[0].mxu0
        %v2685 = vadd.f32 0.0, %v2684
        %2686 = vmatprep.mubr.bf16.mxu0 0
        %2687 = vmatmul.mubr.bf16.gmra.mrb[0].mxu0 %v2585
        %v2688 = vpop.f32.mrb[0].mxu0
        %v2689 = vadd.f32 0.0, %v2688
        %v2690 = vpop.f32.mrb[0].mxu0
        %v2691 = vadd.f32 0.0, %v2690
        %v2692 = vpop.f32.mrb[0].mxu0
        %v2693 = vadd.f32 0.0, %v2692
        %v2694 = vpop.f32.mrb[0].mxu0
        %v2695 = vadd.f32 0.0, %v2694
        %2696 = vmatprep.mubr.bf16.mxu0 0
        %2697 = vmatmul.mubr.bf16.gmra.mrb[0].mxu0 %v2588
        %v2698 = vpop.f32.mrb[0].mxu0
        %v2699 = vadd.f32 0.0, %v2698
        %v2700 = vpop.f32.mrb[0].mxu0
        %v2701 = vadd.f32 0.0, %v2700
        %v2702 = vpop.f32.mrb[0].mxu0
        %v2703 = vadd.f32 0.0, %v2702
        %v2704 = vpop.f32.mrb[0].mxu0
        %v2705 = vadd.f32 0.0, %v2704
        %2706 = vmatprep.mubr.bf16.mxu0 0
        %2707 = vmatmul.mubr.bf16.gmra.mrb[0].mxu0 %v2591
        %v2708 = vpop.f32.mrb[0].mxu0
        %v2709 = vadd.f32 0.0, %v2708
        %v2710 = vpop.f32.mrb[0].mxu0
        %v2711 = vadd.f32 0.0, %v2710
        %v2712 = vpop.f32.mrb[0].mxu0
        %v2713 = vadd.f32 0.0, %v2712
        %v2714 = vpop.f32.mrb[0].mxu0
        %v2715 = vadd.f32 0.0, %v2714
        %2716 = vmatprep.mubr.bf16.mxu0 0
        %2717 = vmatmul.mubr.bf16.gmra.mrb[0].mxu0 %v2594
        %v2718 = vpop.f32.mrb[0].mxu0
        %v2719 = vadd.f32 0.0, %v2718
        %v2720 = vpop.f32.mrb[0].mxu0
        %v2721 = vadd.f32 0.0, %v2720
        %v2722 = vpop.f32.mrb[0].mxu0
        %v2723 = vadd.f32 0.0, %v2722
        %v2724 = vpop.f32.mrb[0].mxu0
        %v2725 = vadd.f32 0.0, %v2724
        %2726 = vmatprep.mubr.bf16.mxu0 0
        %2727 = vmatmul.mubr.bf16.gmra.mrb[0].mxu0 %v2597
        %v2728 = vpop.f32.mrb[0].mxu0
        %v2729 = vadd.f32 0.0, %v2728
        %v2730 = vpop.f32.mrb[0].mxu0
        %v2731 = vadd.f32 0.0, %v2730
        %v2732 = vpop.f32.mrb[0].mxu0
        %v2733 = vadd.f32 0.0, %v2732
        %v2734 = vpop.f32.mrb[0].mxu0
        %v2735 = vadd.f32 0.0, %v2734
        %2736 = vmatprep.mubr.bf16.mxu0 0
        %2737 = vmatmul.mubr.bf16.gmra.mrb[0].mxu0 %v2600
        %v2738 = vpop.f32.mrb[0].mxu0
        %v2739 = vadd.f32 0.0, %v2738
        %v2740 = vpop.f32.mrb[0].mxu0
        %v2741 = vadd.f32 0.0, %v2740
        %v2742 = vpop.f32.mrb[0].mxu0
        %v2743 = vadd.f32 0.0, %v2742
        %v2744 = vpop.f32.mrb[0].mxu0
        %v2745 = vadd.f32 0.0, %v2744
        %2746 = vmatprep.mubr.bf16.mxu0 0
        %2747 = vmatmul.mubr.bf16.gmra.mrb[0].mxu0 %v2603
        %v2748 = vpop.f32.mrb[0].mxu0
        %v2749 = vadd.f32 0.0, %v2748
        %v2750 = vpop.f32.mrb[0].mxu0
        %v2751 = vadd.f32 0.0, %v2750
        %v2752 = vpop.f32.mrb[0].mxu0
        %v2753 = vadd.f32 0.0, %v2752
        %v2754 = vpop.f32.mrb[0].mxu0
        %v2755 = vadd.f32 0.0, %v2754
        %2756 = vmatprep.mubr.bf16.mxu0 0
        %2757 = vmatmul.mubr.bf16.gmra.mrb[0].mxu0 %v2606
        %v2758 = vpop.f32.mrb[0].mxu0
        %v2759 = vadd.f32 0.0, %v2758
        %v2760 = vpop.f32.mrb[0].mxu0
        %v2761 = vadd.f32 0.0, %v2760
        %v2762 = vpop.f32.mrb[0].mxu0
        %v2763 = vadd.f32 0.0, %v2762
        %v2764 = vpop.f32.mrb[0].mxu0
        %v2765 = vadd.f32 0.0, %v2764
        %2766 = vdwg.mxu0
        %v2767 = vadd.f32 %v2465, %v2649
        %v2768 = vadd.f32 %v2466, %v2651
        %v2769 = vadd.f32 %v2467, %v2653
        %v2770 = vadd.f32 %v2468, %v2655
        %v2771 = vadd.f32 %v2469, %v2659
        %v2772 = vadd.f32 %v2470, %v2661
        %v2773 = vadd.f32 %v2471, %v2663
        %v2774 = vadd.f32 %v2472, %v2665
        %v2775 = vadd.f32 %v2473, %v2669
        %v2776 = vadd.f32 %v2474, %v2671
        %v2777 = vadd.f32 %v2475, %v2673
        %v2778 = vadd.f32 %v2476, %v2675
        %v2779 = vadd.f32 %v2477, %v2679
        %v2780 = vadd.f32 %v2478, %v2681
        %v2781 = vadd.f32 %v2479, %v2683
        %v2782 = vadd.f32 %v2480, %v2685
        %v2783 = vadd.f32 %v2481, %v2689
        %v2784 = vadd.f32 %v2482, %v2691
        %v2785 = vadd.f32 %v2483, %v2693
        %v2786 = vadd.f32 %v2484, %v2695
        %v2787 = vadd.f32 %v2485, %v2699
        %v2788 = vadd.f32 %v2486, %v2701
        %v2789 = vadd.f32 %v2487, %v2703
        %v2790 = vadd.f32 %v2488, %v2705
        %v2791 = vadd.f32 %v2489, %v2709
        %v2792 = vadd.f32 %v2490, %v2711
        %v2793 = vadd.f32 %v2491, %v2713
        %v2794 = vadd.f32 %v2492, %v2715
        %v2795 = vadd.f32 %v2493, %v2719
        %v2796 = vadd.f32 %v2494, %v2721
        %v2797 = vadd.f32 %v2495, %v2723
        %v2798 = vadd.f32 %v2496, %v2725
        %v2799 = vadd.f32 %v2497, %v2729
        %v2800 = vadd.f32 %v2498, %v2731
        %v2801 = vadd.f32 %v2499, %v2733
        %v2802 = vadd.f32 %v2500, %v2735
        %v2803 = vadd.f32 %v2501, %v2739
        %v2804 = vadd.f32 %v2502, %v2741
        %v2805 = vadd.f32 %v2503, %v2743
        %v2806 = vadd.f32 %v2504, %v2745
        %v2807 = vadd.f32 %v2505, %v2749
        %v2808 = vadd.f32 %v2506, %v2751
        %v2809 = vadd.f32 %v2507, %v2753
        %v2810 = vadd.f32 %v2508, %v2755
        %v2811 = vadd.f32 %v2509, %v2759
        %v2812 = vadd.f32 %v2510, %v2761
        %v2813 = vadd.f32 %v2511, %v2763
        %v2814 = vadd.f32 %v2512, %v2765
        %2815 = vst [vmem:[#allocation2] sm:$0xff] %v2767
        %2816 = vst [vmem:[#allocation2 + $0x8] sm:$0xff] %v2768
        %2817 = vst [vmem:[#allocation2 + $0x10] sm:$0xff] %v2769
        %2818 = vst [vmem:[#allocation2 + $0x18] sm:$0xff] %v2770
        %2819 = vst [vmem:[#allocation2 + $0x20] sm:$0xff] %v2771
        %2820 = vst [vmem:[#allocation2 + $0x28] sm:$0xff] %v2772
        %2821 = vst [vmem:[#allocation2 + $0x30] sm:$0xff] %v2773
        %2822 = vst [vmem:[#allocation2 + $0x38] sm:$0xff] %v2774
        %2823 = vst [vmem:[#allocation2 + $0x40] sm:$0xff] %v2775
        %2824 = vst [vmem:[#allocation2 + $0x48] sm:$0xff] %v2776
        %2825 = vst [vmem:[#allocation2 + $0x50] sm:$0xff] %v2777
        %2826 = vst [vmem:[#allocation2 + $0x58] sm:$0xff] %v2778
        %2827 = vst [vmem:[#allocation2 + $0x60] sm:$0xff] %v2779
        %2828 = vst [vmem:[#allocation2 + $0x68] sm:$0xff] %v2780
        %2829 = vst [vmem:[#allocation2 + $0x70] sm:$0xff] %v2781
        %2830 = vst [vmem:[#allocation2 + $0x78] sm:$0xff] %v2782
        %2831 = vst [vmem:[#allocation2 + $0x80] sm:$0xff] %v2783
        %2832 = vst [vmem:[#allocation2 + $0x88] sm:$0xff] %v2784
        %2833 = vst [vmem:[#allocation2 + $0x90] sm:$0xff] %v2785
        %2834 = vst [vmem:[#allocation2 + $0x98] sm:$0xff] %v2786
        %2835 = vst [vmem:[#allocation2 + $0xa0] sm:$0xff] %v2787
        %2836 = vst [vmem:[#allocation2 + $0xa8] sm:$0xff] %v2788
        %2837 = vst [vmem:[#allocation2 + $0xb0] sm:$0xff] %v2789
        %2838 = vst [vmem:[#allocation2 + $0xb8] sm:$0xff] %v2790
        %2839 = vst [vmem:[#allocation2 + $0xc0] sm:$0xff] %v2791
        %2840 = vst [vmem:[#allocation2 + $0xc8] sm:$0xff] %v2792
        %2841 = vst [vmem:[#allocation2 + $0xd0] sm:$0xff] %v2793
        %2842 = vst [vmem:[#allocation2 + $0xd8] sm:$0xff] %v2794
        %2843 = vst [vmem:[#allocation2 + $0xe0] sm:$0xff] %v2795
        %2844 = vst [vmem:[#allocation2 + $0xe8] sm:$0xff] %v2796
        %2845 = vst [vmem:[#allocation2 + $0xf0] sm:$0xff] %v2797
        %2846 = vst [vmem:[#allocation2 + $0xf8] sm:$0xff] %v2798
        %2847 = vst [vmem:[#allocation2 + $0x100] sm:$0xff] %v2799
        %2848 = vst [vmem:[#allocation2 + $0x108] sm:$0xff] %v2800
        %2849 = vst [vmem:[#allocation2 + $0x110] sm:$0xff] %v2801
        %2850 = vst [vmem:[#allocation2 + $0x118] sm:$0xff] %v2802
        %2851 = vst [vmem:[#allocation2 + $0x120] sm:$0xff] %v2803
        %2852 = vst [vmem:[#allocation2 + $0x128] sm:$0xff] %v2804
        %2853 = vst [vmem:[#allocation2 + $0x130] sm:$0xff] %v2805
        %2854 = vst [vmem:[#allocation2 + $0x138] sm:$0xff] %v2806
        %2855 = vst [vmem:[#allocation2 + $0x140] sm:$0xff] %v2807
        %2856 = vst [vmem:[#allocation2 + $0x148] sm:$0xff] %v2808
        %2857 = vst [vmem:[#allocation2 + $0x150] sm:$0xff] %v2809
        %2858 = vst [vmem:[#allocation2 + $0x158] sm:$0xff] %v2810
        %2859 = vst [vmem:[#allocation2 + $0x160] sm:$0xff] %v2811
        %2860 = vst [vmem:[#allocation2 + $0x168] sm:$0xff] %v2812
        %2861 = vst [vmem:[#allocation2 + $0x170] sm:$0xff] %v2813
        %2862 = vst [vmem:[#allocation2 + $0x178] sm:$0xff] %v2814
        %v2863 = vld [vmem:[%s378] sm:$0xc]
        %v2864 = vld [vmem:[%s378 + $0x4] sm:$0xf]
        %v2865 = vld [vmem:[%s378 + $0x8] sm:$0xf]
        %v2866 = vld [vmem:[%s378 + $0xc] sm:$0x3]
        %v2867 = vld [vmem:[%s378 + $0x10] sm:$0xc]
        %v2868 = vld [vmem:[%s378 + $0x14] sm:$0xf]
        %v2869 = vld [vmem:[%s378 + $0x18] sm:$0xf]
        %v2870 = vld [vmem:[%s378 + $0x1c] sm:$0x3]
        %v2871 = vld [vmem:[%s378 + $0x20] sm:$0xc]
        %v2872 = vld [vmem:[%s378 + $0x24] sm:$0xf]
        %v2873 = vld [vmem:[%s378 + $0x28] sm:$0xf]
        %v2874 = vld [vmem:[%s378 + $0x2c] sm:$0x3]
        %v2875 = vld [vmem:[%s378 + $0x30] sm:$0xc]
        %v2876 = vld [vmem:[%s378 + $0x34] sm:$0xf]
        %v2877 = vld [vmem:[%s378 + $0x38] sm:$0xf]
        %v2878 = vld [vmem:[%s378 + $0x3c] sm:$0x3]
        %v2879 = vld [vmem:[%s378 + $0x40] sm:$0xc]
        %v2880 = vld [vmem:[%s378 + $0x44] sm:$0xf]
        %v2881 = vld [vmem:[%s378 + $0x48] sm:$0xf]
        %v2882 = vld [vmem:[%s378 + $0x4c] sm:$0x3]
        %v2883 = vld [vmem:[%s378 + $0x50] sm:$0xc]
        %v2884 = vld [vmem:[%s378 + $0x54] sm:$0xf]
        %v2885 = vld [vmem:[%s378 + $0x58] sm:$0xf]
        %v2886 = vld [vmem:[%s378 + $0x5c] sm:$0x3]
        %v2887 = vld [vmem:[%s378 + $0x60] sm:$0xc]
        %v2888 = vld [vmem:[%s378 + $0x64] sm:$0xf]
        %v2889 = vld [vmem:[%s378 + $0x68] sm:$0xf]
        %v2890 = vld [vmem:[%s378 + $0x6c] sm:$0x3]
        %v2891 = vld [vmem:[%s378 + $0x70] sm:$0xc]
        %v2892 = vld [vmem:[%s378 + $0x74] sm:$0xf]
        %v2893 = vld [vmem:[%s378 + $0x78] sm:$0xf]
        %v2894 = vld [vmem:[%s378 + $0x7c] sm:$0x3]
        %vm2927 = vcmask 1041408
        %vm2928 = vcmask 1045508
        %vm2929 = vmor %vm2927, %vm2928
        %v2930 = vrot.slane %v2863, 6
        %v2931 = vrot.slane %v2930, 4
        %v2932 = vrot.slane %v2864, 6
        %v2933 = vsel %vm2929, %v2931, %v2932
        %v2934 = vrot.slane %v2932, 4
        %v2935 = vrot.slane %v2865, 6
        %v2936 = vsel %vm2929, %v2934, %v2935
        %v2937 = vrot.slane %v2935, 4
        %v2938 = vrot.slane %v2866, 6
        %v2939 = vsel %vm2929, %v2937, %v2938
        %v2940 = vrot.slane %v2867, 6
        %v2941 = vrot.slane %v2940, 4
        %v2942 = vrot.slane %v2868, 6
        %v2943 = vsel %vm2929, %v2941, %v2942
        %v2944 = vrot.slane %v2942, 4
        %v2945 = vrot.slane %v2869, 6
        %v2946 = vsel %vm2929, %v2944, %v2945
        %v2947 = vrot.slane %v2945, 4
        %v2948 = vrot.slane %v2870, 6
        %v2949 = vsel %vm2929, %v2947, %v2948
        %v2950 = vrot.slane %v2871, 6
        %v2951 = vrot.slane %v2950, 4
        %v2952 = vrot.slane %v2872, 6
        %v2953 = vsel %vm2929, %v2951, %v2952
        %v2954 = vrot.slane %v2952, 4
        %v2955 = vrot.slane %v2873, 6
        %v2956 = vsel %vm2929, %v2954, %v2955
        %v2957 = vrot.slane %v2955, 4
        %v2958 = vrot.slane %v2874, 6
        %v2959 = vsel %vm2929, %v2957, %v2958
        %v2960 = vrot.slane %v2875, 6
        %v2961 = vrot.slane %v2960, 4
        %v2962 = vrot.slane %v2876, 6
        %v2963 = vsel %vm2929, %v2961, %v2962
        %v2964 = vrot.slane %v2962, 4
        %v2965 = vrot.slane %v2877, 6
        %v2966 = vsel %vm2929, %v2964, %v2965
        %v2967 = vrot.slane %v2965, 4
        %v2968 = vrot.slane %v2878, 6
        %v2969 = vsel %vm2929, %v2967, %v2968
        %v2970 = vrot.slane %v2879, 6
        %v2971 = vrot.slane %v2970, 4
        %v2972 = vrot.slane %v2880, 6
        %v2973 = vsel %vm2929, %v2971, %v2972
        %v2974 = vrot.slane %v2972, 4
        %v2975 = vrot.slane %v2881, 6
        %v2976 = vsel %vm2929, %v2974, %v2975
        %v2977 = vrot.slane %v2975, 4
        %v2978 = vrot.slane %v2882, 6
        %v2979 = vsel %vm2929, %v2977, %v2978
        %v2980 = vrot.slane %v2883, 6
        %v2981 = vrot.slane %v2980, 4
        %v2982 = vrot.slane %v2884, 6
        %v2983 = vsel %vm2929, %v2981, %v2982
        %v2984 = vrot.slane %v2982, 4
        %v2985 = vrot.slane %v2885, 6
        %v2986 = vsel %vm2929, %v2984, %v2985
        %v2987 = vrot.slane %v2985, 4
        %v2988 = vrot.slane %v2886, 6
        %v2989 = vsel %vm2929, %v2987, %v2988
        %v2990 = vrot.slane %v2887, 6
        %v2991 = vrot.slane %v2990, 4
        %v2992 = vrot.slane %v2888, 6
        %v2993 = vsel %vm2929, %v2991, %v2992
        %v2994 = vrot.slane %v2992, 4
        %v2995 = vrot.slane %v2889, 6
        %v2996 = vsel %vm2929, %v2994, %v2995
        %v2997 = vrot.slane %v2995, 4
        %v2998 = vrot.slane %v2890, 6
        %v2999 = vsel %vm2929, %v2997, %v2998
        %v3000 = vrot.slane %v2891, 6
        %v3001 = vrot.slane %v3000, 4
        %v3002 = vrot.slane %v2892, 6
        %v3003 = vsel %vm2929, %v3001, %v3002
        %v3004 = vrot.slane %v3002, 4
        %v3005 = vrot.slane %v2893, 6
        %v3006 = vsel %vm2929, %v3004, %v3005
        %v3007 = vrot.slane %v3005, 4
        %v3008 = vrot.slane %v2894, 6
        %v3009 = vsel %vm2929, %v3007, %v3008
        %v3010 = vld [vmem:[#allocation2] sm:$0xff]
        %v3011 = vld [vmem:[#allocation2 + $0x8] sm:$0xff]
        %v3012 = vld [vmem:[#allocation2 + $0x10] sm:$0xff]
        %v3013 = vld [vmem:[#allocation2 + $0x18] sm:$0xff]
        %v3014 = vld [vmem:[#allocation2 + $0x20] sm:$0xff]
        %v3015 = vld [vmem:[#allocation2 + $0x28] sm:$0xff]
        %v3016 = vld [vmem:[#allocation2 + $0x30] sm:$0xff]
        %v3017 = vld [vmem:[#allocation2 + $0x38] sm:$0xff]
        %v3018 = vld [vmem:[#allocation2 + $0x40] sm:$0xff]
        %v3019 = vld [vmem:[#allocation2 + $0x48] sm:$0xff]
        %v3020 = vld [vmem:[#allocation2 + $0x50] sm:$0xff]
        %v3021 = vld [vmem:[#allocation2 + $0x58] sm:$0xff]
        %v3022 = vld [vmem:[#allocation2 + $0x60] sm:$0xff]
        %v3023 = vld [vmem:[#allocation2 + $0x68] sm:$0xff]
        %v3024 = vld [vmem:[#allocation2 + $0x70] sm:$0xff]
        %v3025 = vld [vmem:[#allocation2 + $0x78] sm:$0xff]
        %v3026 = vld [vmem:[#allocation2 + $0x80] sm:$0xff]
        %v3027 = vld [vmem:[#allocation2 + $0x88] sm:$0xff]
        %v3028 = vld [vmem:[#allocation2 + $0x90] sm:$0xff]
        %v3029 = vld [vmem:[#allocation2 + $0x98] sm:$0xff]
        %v3030 = vld [vmem:[#allocation2 + $0xa0] sm:$0xff]
        %v3031 = vld [vmem:[#allocation2 + $0xa8] sm:$0xff]
        %v3032 = vld [vmem:[#allocation2 + $0xb0] sm:$0xff]
        %v3033 = vld [vmem:[#allocation2 + $0xb8] sm:$0xff]
        %v3034 = vld [vmem:[#allocation2 + $0xc0] sm:$0xff]
        %v3035 = vld [vmem:[#allocation2 + $0xc8] sm:$0xff]
        %v3036 = vld [vmem:[#allocation2 + $0xd0] sm:$0xff]
        %v3037 = vld [vmem:[#allocation2 + $0xd8] sm:$0xff]
        %v3038 = vld [vmem:[#allocation2 + $0xe0] sm:$0xff]
        %v3039 = vld [vmem:[#allocation2 + $0xe8] sm:$0xff]
        %v3040 = vld [vmem:[#allocation2 + $0xf0] sm:$0xff]
        %v3041 = vld [vmem:[#allocation2 + $0xf8] sm:$0xff]
        %v3042 = vld [vmem:[#allocation2 + $0x100] sm:$0xff]
        %v3043 = vld [vmem:[#allocation2 + $0x108] sm:$0xff]
        %v3044 = vld [vmem:[#allocation2 + $0x110] sm:$0xff]
        %v3045 = vld [vmem:[#allocation2 + $0x118] sm:$0xff]
        %v3046 = vld [vmem:[#allocation2 + $0x120] sm:$0xff]
        %v3047 = vld [vmem:[#allocation2 + $0x128] sm:$0xff]
        %v3048 = vld [vmem:[#allocation2 + $0x130] sm:$0xff]
        %v3049 = vld [vmem:[#allocation2 + $0x138] sm:$0xff]
        %v3050 = vld [vmem:[#allocation2 + $0x140] sm:$0xff]
        %v3051 = vld [vmem:[#allocation2 + $0x148] sm:$0xff]
        %v3052 = vld [vmem:[#allocation2 + $0x150] sm:$0xff]
        %v3053 = vld [vmem:[#allocation2 + $0x158] sm:$0xff]
        %v3054 = vld [vmem:[#allocation2 + $0x160] sm:$0xff]
        %v3055 = vld [vmem:[#allocation2 + $0x168] sm:$0xff]
        %v3056 = vld [vmem:[#allocation2 + $0x170] sm:$0xff]
        %v3057 = vld [vmem:[#allocation2 + $0x178] sm:$0xff]
        %s3058 = scalar_lea.vmem [#allocation7], 128
        %v3059 = vld [vmem:[%s3058] sm:$0xff]
        %v3060 = vld [vmem:[%s3058 + $0x8] sm:$0xff]
        %v3061 = vld [vmem:[%s3058 + $0x10] sm:$0xff]
        %v3062 = vld [vmem:[%s3058 + $0x18] sm:$0x33]
        %v3063 = vunpack.c.l.b16 %v2933
        %v3064 = vunpack.c.l.b16 %v2936
        %v3065 = vunpack.c.l.b16 %v2939
        %v3066 = vunpack.c.l.b16 %v2943
        %v3067 = vunpack.c.l.b16 %v2946
        %v3068 = vunpack.c.l.b16 %v2949
        %v3069 = vunpack.c.l.b16 %v2953
        %v3070 = vunpack.c.l.b16 %v2956
        %v3071 = vunpack.c.l.b16 %v2959
        %v3072 = vunpack.c.l.b16 %v2963
        %v3073 = vunpack.c.l.b16 %v2966
        %v3074 = vunpack.c.l.b16 %v2969
        %v3075 = vunpack.c.l.b16 %v2973
        %v3076 = vunpack.c.l.b16 %v2976
        %v3077 = vunpack.c.l.b16 %v2979
        %v3078 = vunpack.c.l.b16 %v2983
        %v3079 = vunpack.c.l.b16 %v2986
        %v3080 = vunpack.c.l.b16 %v2989
        %v3081 = vunpack.c.l.b16 %v2993
        %v3082 = vunpack.c.l.b16 %v2996
        %v3083 = vunpack.c.l.b16 %v2999
        %v3084 = vunpack.c.l.b16 %v3003
        %v3085 = vunpack.c.l.b16 %v3006
        %v3086 = vunpack.c.l.b16 %v3009
        %v3087 = vpack.c.b16 %v3064, %v3063
        %v3088 = vpack.c.b16 %v3066, %v3065
        %v3089 = vpack.c.b16 %v3068, %v3067
        %v3090 = vpack.c.b16 %v3070, %v3069
        %v3091 = vpack.c.b16 %v3072, %v3071
        %v3092 = vpack.c.b16 %v3074, %v3073
        %v3093 = vpack.c.b16 %v3076, %v3075
        %v3094 = vpack.c.b16 %v3078, %v3077
        %v3095 = vpack.c.b16 %v3080, %v3079
        %v3096 = vpack.c.b16 %v3082, %v3081
        %v3097 = vpack.c.b16 %v3084, %v3083
        %v3098 = vpack.c.b16 %v3086, %v3085
        %v3103 = vunpack.c.l.b16 %v3059
        %v3104 = vunpack.c.h.b16 %v3059
        %v3105 = vunpack.c.l.b16 %v3060
        %v3106 = vunpack.c.h.b16 %v3060
        %v3107 = vunpack.c.l.b16 %v3061
        %v3108 = vunpack.c.h.b16 %v3061
        %v3109 = vunpack.c.l.b16 %v3062
        %v3110 = vunpack.c.h.b16 %v3062
        %v3111 = vpack.c.b16 %v3105, %v3103
        %v3112 = vpack.c.b16 %v3106, %v3104
        %v3113 = vpack.c.b16 %v3109, %v3107
        %v3114 = vpack.c.b16 %v3110, %v3108
        %v3118 = vsel %vm583, %v3087, 0
        %v3121 = vsel %vm583, %v3088, 0
        %v3124 = vsel %vm583, %v3089, 0
        %v3127 = vsel %vm583, %v3090, 0
        %v3130 = vsel %vm583, %v3091, 0
        %v3133 = vsel %vm583, %v3092, 0
        %v3136 = vsel %vm583, %v3093, 0
        %v3139 = vsel %vm583, %v3094, 0
        %v3142 = vsel %vm583, %v3095, 0
        %v3145 = vsel %vm583, %v3096, 0
        %v3148 = vsel %vm583, %v3097, 0
        %v3151 = vsel %vm583, %v3098, 0
        %v3154 = vsel %vm620, %v3113, 0
        %v3157 = vsel %vm620, %v3114, 0
        %3159 = vmatprep.subr.bf16.mxu0 %v3112
        %3160 = vmatpush1.bf16.msra.mxu0 %v3111
        %3161 = vmatprep.subr.bf16.mxu0 %v3157
        %3162 = vmatpush1.bf16.msra.mxu0 %v3154
        %3163 = vmatprep.subr.bf16.mxu0 0
        %3164 = vmatpush1.bf16.msra.mxu0 0
        %3165 = vmatprep.subr.bf16.mxu0 0
        %3166 = vmatpush1.bf16.msra.mxu0 0
        %3167 = vmatprep.subr.bf16.mxu0 0
        %3168 = vmatpush1.bf16.msra.mxu0 0
        %3169 = vmatprep.subr.bf16.mxu0 0
        %3170 = vmatpush1.bf16.msra.mxu0 0
        %3171 = vmatprep.subr.bf16.mxu0 0
        %3172 = vmatpush1.bf16.msra.mxu0 0
        %3173 = vmatprep.subr.bf16.mxu0 0
        %3174 = vmatpush1.bf16.msra.mxu0 0
        %3175 = vmatprep.subr.bf16.mxu0 0
        %3176 = vmatpush1.bf16.msra.mxu0 0
        %3177 = vmatprep.subr.bf16.mxu0 0
        %3178 = vmatpush1.bf16.msra.mxu0 0
        %3179 = vmatprep.subr.bf16.mxu0 0
        %3180 = vmatpush1.bf16.msra.mxu0 0
        %3181 = vmatprep.subr.bf16.mxu0 0
        %3182 = vmatpush1.bf16.msra.mxu0 0
        %3183 = vmatprep.subr.bf16.mxu0 0
        %3184 = vmatpush1.bf16.msra.mxu0 0
        %3185 = vmatprep.subr.bf16.mxu0 0
        %3186 = vmatpush1.bf16.msra.mxu0 0
        %3187 = vmatprep.subr.bf16.mxu0 0
        %3188 = vmatpush1.bf16.msra.mxu0 0
        %3189 = vmatprep.subr.bf16.mxu0 0
        %3190 = vmatpush1.bf16.msra.mxu0 0
        %3191 = vmatprep.mubr.bf16.mxu0 0
        %3192 = vmatmul.mubr.bf16.gmra.mrb[0].mxu0 %v3118
        %v3193 = vpop.f32.mrb[0].mxu0
        %v3194 = vadd.f32 0.0, %v3193
        %v3195 = vpop.f32.mrb[0].mxu0
        %v3196 = vadd.f32 0.0, %v3195
        %v3197 = vpop.f32.mrb[0].mxu0
        %v3198 = vadd.f32 0.0, %v3197
        %v3199 = vpop.f32.mrb[0].mxu0
        %v3200 = vadd.f32 0.0, %v3199
        %3201 = vmatprep.mubr.bf16.mxu0 0
        %3202 = vmatmul.mubr.bf16.gmra.mrb[0].mxu0 %v3121
        %v3203 = vpop.f32.mrb[0].mxu0
        %v3204 = vadd.f32 0.0, %v3203
        %v3205 = vpop.f32.mrb[0].mxu0
        %v3206 = vadd.f32 0.0, %v3205
        %v3207 = vpop.f32.mrb[0].mxu0
        %v3208 = vadd.f32 0.0, %v3207
        %v3209 = vpop.f32.mrb[0].mxu0
        %v3210 = vadd.f32 0.0, %v3209
        %3211 = vmatprep.mubr.bf16.mxu0 0
        %3212 = vmatmul.mubr.bf16.gmra.mrb[0].mxu0 %v3124
        %v3213 = vpop.f32.mrb[0].mxu0
        %v3214 = vadd.f32 0.0, %v3213
        %v3215 = vpop.f32.mrb[0].mxu0
        %v3216 = vadd.f32 0.0, %v3215
        %v3217 = vpop.f32.mrb[0].mxu0
        %v3218 = vadd.f32 0.0, %v3217
        %v3219 = vpop.f32.mrb[0].mxu0
        %v3220 = vadd.f32 0.0, %v3219
        %3221 = vmatprep.mubr.bf16.mxu0 0
        %3222 = vmatmul.mubr.bf16.gmra.mrb[0].mxu0 %v3127
        %v3223 = vpop.f32.mrb[0].mxu0
        %v3224 = vadd.f32 0.0, %v3223
        %v3225 = vpop.f32.mrb[0].mxu0
        %v3226 = vadd.f32 0.0, %v3225
        %v3227 = vpop.f32.mrb[0].mxu0
        %v3228 = vadd.f32 0.0, %v3227
        %v3229 = vpop.f32.mrb[0].mxu0
        %v3230 = vadd.f32 0.0, %v3229
        %3231 = vmatprep.mubr.bf16.mxu0 0
        %3232 = vmatmul.mubr.bf16.gmra.mrb[0].mxu0 %v3130
        %v3233 = vpop.f32.mrb[0].mxu0
        %v3234 = vadd.f32 0.0, %v3233
        %v3235 = vpop.f32.mrb[0].mxu0
        %v3236 = vadd.f32 0.0, %v3235
        %v3237 = vpop.f32.mrb[0].mxu0
        %v3238 = vadd.f32 0.0, %v3237
        %v3239 = vpop.f32.mrb[0].mxu0
        %v3240 = vadd.f32 0.0, %v3239
        %3241 = vmatprep.mubr.bf16.mxu0 0
        %3242 = vmatmul.mubr.bf16.gmra.mrb[0].mxu0 %v3133
        %v3243 = vpop.f32.mrb[0].mxu0
        %v3244 = vadd.f32 0.0, %v3243
        %v3245 = vpop.f32.mrb[0].mxu0
        %v3246 = vadd.f32 0.0, %v3245
        %v3247 = vpop.f32.mrb[0].mxu0
        %v3248 = vadd.f32 0.0, %v3247
        %v3249 = vpop.f32.mrb[0].mxu0
        %v3250 = vadd.f32 0.0, %v3249
        %3251 = vmatprep.mubr.bf16.mxu0 0
        %3252 = vmatmul.mubr.bf16.gmra.mrb[0].mxu0 %v3136
        %v3253 = vpop.f32.mrb[0].mxu0
        %v3254 = vadd.f32 0.0, %v3253
        %v3255 = vpop.f32.mrb[0].mxu0
        %v3256 = vadd.f32 0.0, %v3255
        %v3257 = vpop.f32.mrb[0].mxu0
        %v3258 = vadd.f32 0.0, %v3257
        %v3259 = vpop.f32.mrb[0].mxu0
        %v3260 = vadd.f32 0.0, %v3259
        %3261 = vmatprep.mubr.bf16.mxu0 0
        %3262 = vmatmul.mubr.bf16.gmra.mrb[0].mxu0 %v3139
        %v3263 = vpop.f32.mrb[0].mxu0
        %v3264 = vadd.f32 0.0, %v3263
        %v3265 = vpop.f32.mrb[0].mxu0
        %v3266 = vadd.f32 0.0, %v3265
        %v3267 = vpop.f32.mrb[0].mxu0
        %v3268 = vadd.f32 0.0, %v3267
        %v3269 = vpop.f32.mrb[0].mxu0
        %v3270 = vadd.f32 0.0, %v3269
        %3271 = vmatprep.mubr.bf16.mxu0 0
        %3272 = vmatmul.mubr.bf16.gmra.mrb[0].mxu0 %v3142
        %v3273 = vpop.f32.mrb[0].mxu0
        %v3274 = vadd.f32 0.0, %v3273
        %v3275 = vpop.f32.mrb[0].mxu0
        %v3276 = vadd.f32 0.0, %v3275
        %v3277 = vpop.f32.mrb[0].mxu0
        %v3278 = vadd.f32 0.0, %v3277
        %v3279 = vpop.f32.mrb[0].mxu0
        %v3280 = vadd.f32 0.0, %v3279
        %3281 = vmatprep.mubr.bf16.mxu0 0
        %3282 = vmatmul.mubr.bf16.gmra.mrb[0].mxu0 %v3145
        %v3283 = vpop.f32.mrb[0].mxu0
        %v3284 = vadd.f32 0.0, %v3283
        %v3285 = vpop.f32.mrb[0].mxu0
        %v3286 = vadd.f32 0.0, %v3285
        %v3287 = vpop.f32.mrb[0].mxu0
        %v3288 = vadd.f32 0.0, %v3287
        %v3289 = vpop.f32.mrb[0].mxu0
        %v3290 = vadd.f32 0.0, %v3289
        %3291 = vmatprep.mubr.bf16.mxu0 0
        %3292 = vmatmul.mubr.bf16.gmra.mrb[0].mxu0 %v3148
        %v3293 = vpop.f32.mrb[0].mxu0
        %v3294 = vadd.f32 0.0, %v3293
        %v3295 = vpop.f32.mrb[0].mxu0
        %v3296 = vadd.f32 0.0, %v3295
        %v3297 = vpop.f32.mrb[0].mxu0
        %v3298 = vadd.f32 0.0, %v3297
        %v3299 = vpop.f32.mrb[0].mxu0
        %v3300 = vadd.f32 0.0, %v3299
        %3301 = vmatprep.mubr.bf16.mxu0 0
        %3302 = vmatmul.mubr.bf16.gmra.mrb[0].mxu0 %v3151
        %v3303 = vpop.f32.mrb[0].mxu0
        %v3304 = vadd.f32 0.0, %v3303
        %v3305 = vpop.f32.mrb[0].mxu0
        %v3306 = vadd.f32 0.0, %v3305
        %v3307 = vpop.f32.mrb[0].mxu0
        %v3308 = vadd.f32 0.0, %v3307
        %v3309 = vpop.f32.mrb[0].mxu0
        %v3310 = vadd.f32 0.0, %v3309
        %3311 = vdwg.mxu0
        %v3312 = vadd.f32 %v3010, %v3194
        %v3313 = vadd.f32 %v3011, %v3196
        %v3314 = vadd.f32 %v3012, %v3198
        %v3315 = vadd.f32 %v3013, %v3200
        %v3316 = vadd.f32 %v3014, %v3204
        %v3317 = vadd.f32 %v3015, %v3206
        %v3318 = vadd.f32 %v3016, %v3208
        %v3319 = vadd.f32 %v3017, %v3210
        %v3320 = vadd.f32 %v3018, %v3214
        %v3321 = vadd.f32 %v3019, %v3216
        %v3322 = vadd.f32 %v3020, %v3218
        %v3323 = vadd.f32 %v3021, %v3220
        %v3324 = vadd.f32 %v3022, %v3224
        %v3325 = vadd.f32 %v3023, %v3226
        %v3326 = vadd.f32 %v3024, %v3228
        %v3327 = vadd.f32 %v3025, %v3230
        %v3328 = vadd.f32 %v3026, %v3234
        %v3329 = vadd.f32 %v3027, %v3236
        %v3330 = vadd.f32 %v3028, %v3238
        %v3331 = vadd.f32 %v3029, %v3240
        %v3332 = vadd.f32 %v3030, %v3244
        %v3333 = vadd.f32 %v3031, %v3246
        %v3334 = vadd.f32 %v3032, %v3248
        %v3335 = vadd.f32 %v3033, %v3250
        %v3336 = vadd.f32 %v3034, %v3254
        %v3337 = vadd.f32 %v3035, %v3256
        %v3338 = vadd.f32 %v3036, %v3258
        %v3339 = vadd.f32 %v3037, %v3260
        %v3340 = vadd.f32 %v3038, %v3264
        %v3341 = vadd.f32 %v3039, %v3266
        %v3342 = vadd.f32 %v3040, %v3268
        %v3343 = vadd.f32 %v3041, %v3270
        %v3344 = vadd.f32 %v3042, %v3274
        %v3345 = vadd.f32 %v3043, %v3276
        %v3346 = vadd.f32 %v3044, %v3278
        %v3347 = vadd.f32 %v3045, %v3280
        %v3348 = vadd.f32 %v3046, %v3284
        %v3349 = vadd.f32 %v3047, %v3286
        %v3350 = vadd.f32 %v3048, %v3288
        %v3351 = vadd.f32 %v3049, %v3290
        %v3352 = vadd.f32 %v3050, %v3294
        %v3353 = vadd.f32 %v3051, %v3296
        %v3354 = vadd.f32 %v3052, %v3298
        %v3355 = vadd.f32 %v3053, %v3300
        %v3356 = vadd.f32 %v3054, %v3304
        %v3357 = vadd.f32 %v3055, %v3306
        %v3358 = vadd.f32 %v3056, %v3308
        %v3359 = vadd.f32 %v3057, %v3310
        %3360 = vst [vmem:[#allocation2] sm:$0xff] %v3312
        %3361 = vst [vmem:[#allocation2 + $0x8] sm:$0xff] %v3313
        %3362 = vst [vmem:[#allocation2 + $0x10] sm:$0xff] %v3314
        %3363 = vst [vmem:[#allocation2 + $0x18] sm:$0xff] %v3315
        %3364 = vst [vmem:[#allocation2 + $0x20] sm:$0xff] %v3316
        %3365 = vst [vmem:[#allocation2 + $0x28] sm:$0xff] %v3317
        %3366 = vst [vmem:[#allocation2 + $0x30] sm:$0xff] %v3318
        %3367 = vst [vmem:[#allocation2 + $0x38] sm:$0xff] %v3319
        %3368 = vst [vmem:[#allocation2 + $0x40] sm:$0xff] %v3320
        %3369 = vst [vmem:[#allocation2 + $0x48] sm:$0xff] %v3321
        %3370 = vst [vmem:[#allocation2 + $0x50] sm:$0xff] %v3322
        %3371 = vst [vmem:[#allocation2 + $0x58] sm:$0xff] %v3323
        %3372 = vst [vmem:[#allocation2 + $0x60] sm:$0xff] %v3324
        %3373 = vst [vmem:[#allocation2 + $0x68] sm:$0xff] %v3325
        %3374 = vst [vmem:[#allocation2 + $0x70] sm:$0xff] %v3326
        %3375 = vst [vmem:[#allocation2 + $0x78] sm:$0xff] %v3327
        %3376 = vst [vmem:[#allocation2 + $0x80] sm:$0xff] %v3328
        %3377 = vst [vmem:[#allocation2 + $0x88] sm:$0xff] %v3329
        %3378 = vst [vmem:[#allocation2 + $0x90] sm:$0xff] %v3330
        %3379 = vst [vmem:[#allocation2 + $0x98] sm:$0xff] %v3331
        %3380 = vst [vmem:[#allocation2 + $0xa0] sm:$0xff] %v3332
        %3381 = vst [vmem:[#allocation2 + $0xa8] sm:$0xff] %v3333
        %3382 = vst [vmem:[#allocation2 + $0xb0] sm:$0xff] %v3334
        %3383 = vst [vmem:[#allocation2 + $0xb8] sm:$0xff] %v3335
        %3384 = vst [vmem:[#allocation2 + $0xc0] sm:$0xff] %v3336
        %3385 = vst [vmem:[#allocation2 + $0xc8] sm:$0xff] %v3337
        %3386 = vst [vmem:[#allocation2 + $0xd0] sm:$0xff] %v3338
        %3387 = vst [vmem:[#allocation2 + $0xd8] sm:$0xff] %v3339
        %3388 = vst [vmem:[#allocation2 + $0xe0] sm:$0xff] %v3340
        %3389 = vst [vmem:[#allocation2 + $0xe8] sm:$0xff] %v3341
        %3390 = vst [vmem:[#allocation2 + $0xf0] sm:$0xff] %v3342
        %3391 = vst [vmem:[#allocation2 + $0xf8] sm:$0xff] %v3343
        %3392 = vst [vmem:[#allocation2 + $0x100] sm:$0xff] %v3344
        %3393 = vst [vmem:[#allocation2 + $0x108] sm:$0xff] %v3345
        %3394 = vst [vmem:[#allocation2 + $0x110] sm:$0xff] %v3346
        %3395 = vst [vmem:[#allocation2 + $0x118] sm:$0xff] %v3347
        %3396 = vst [vmem:[#allocation2 + $0x120] sm:$0xff] %v3348
        %3397 = vst [vmem:[#allocation2 + $0x128] sm:$0xff] %v3349
        %3398 = vst [vmem:[#allocation2 + $0x130] sm:$0xff] %v3350
        %3399 = vst [vmem:[#allocation2 + $0x138] sm:$0xff] %v3351
        %3400 = vst [vmem:[#allocation2 + $0x140] sm:$0xff] %v3352
        %3401 = vst [vmem:[#allocation2 + $0x148] sm:$0xff] %v3353
        %3402 = vst [vmem:[#allocation2 + $0x150] sm:$0xff] %v3354
        %3403 = vst [vmem:[#allocation2 + $0x158] sm:$0xff] %v3355
        %3404 = vst [vmem:[#allocation2 + $0x160] sm:$0xff] %v3356
        %3405 = vst [vmem:[#allocation2 + $0x168] sm:$0xff] %v3357
        %3406 = vst [vmem:[#allocation2 + $0x170] sm:$0xff] %v3358
        %3407 = vst [vmem:[#allocation2 + $0x178] sm:$0xff] %v3359
        %v3408 = vld [vmem:[#allocation2] sm:$0xff]
        %v3409 = vld [vmem:[#allocation2 + $0x10] sm:$0xff]
        %v3410 = vld [vmem:[#allocation2 + $0x20] sm:$0xff]
        %v3411 = vld [vmem:[#allocation2 + $0x30] sm:$0xff]
        %v3412 = vld [vmem:[#allocation2 + $0x40] sm:$0xff]
        %v3413 = vld [vmem:[#allocation2 + $0x50] sm:$0xff]
        %v3414 = vld [vmem:[#allocation2 + $0x60] sm:$0xff]
        %v3415 = vld [vmem:[#allocation2 + $0x70] sm:$0xff]
        %v3416 = vld [vmem:[#allocation2 + $0x80] sm:$0xff]
        %v3417 = vld [vmem:[#allocation2 + $0x90] sm:$0xff]
        %v3418 = vld [vmem:[#allocation2 + $0xa0] sm:$0xff]
        %v3419 = vld [vmem:[#allocation2 + $0xb0] sm:$0xff]
        %v3420 = vld [vmem:[#allocation2 + $0xc0] sm:$0xff]
        %v3421 = vld [vmem:[#allocation2 + $0xd0] sm:$0xff]
        %v3422 = vld [vmem:[#allocation2 + $0xe0] sm:$0xff]
        %v3423 = vld [vmem:[#allocation2 + $0xf0] sm:$0xff]
        %v3424 = vld [vmem:[#allocation2 + $0x100] sm:$0xff]
        %v3425 = vld [vmem:[#allocation2 + $0x110] sm:$0xff]
        %v3426 = vld [vmem:[#allocation2 + $0x120] sm:$0xff]
        %v3427 = vld [vmem:[#allocation2 + $0x130] sm:$0xff]
        %v3428 = vld [vmem:[#allocation2 + $0x140] sm:$0xff]
        %v3429 = vld [vmem:[#allocation2 + $0x150] sm:$0xff]
        %v3430 = vld [vmem:[#allocation2 + $0x160] sm:$0xff]
        %v3431 = vld [vmem:[#allocation2 + $0x170] sm:$0xff]
        %v3432 = vld [vmem:[#allocation2 + $0x8] sm:$0xff]
        %v3433 = vld [vmem:[#allocation2 + $0x18] sm:$0xff]
        %v3434 = vld [vmem:[#allocation2 + $0x28] sm:$0xff]
        %v3435 = vld [vmem:[#allocation2 + $0x38] sm:$0xff]
        %v3436 = vld [vmem:[#allocation2 + $0x48] sm:$0xff]
        %v3437 = vld [vmem:[#allocation2 + $0x58] sm:$0xff]
        %v3438 = vld [vmem:[#allocation2 + $0x68] sm:$0xff]
        %v3439 = vld [vmem:[#allocation2 + $0x78] sm:$0xff]
        %v3440 = vld [vmem:[#allocation2 + $0x88] sm:$0xff]
        %v3441 = vld [vmem:[#allocation2 + $0x98] sm:$0xff]
        %v3442 = vld [vmem:[#allocation2 + $0xa8] sm:$0xff]
        %v3443 = vld [vmem:[#allocation2 + $0xb8] sm:$0xff]
        %v3444 = vld [vmem:[#allocation2 + $0xc8] sm:$0xff]
        %v3445 = vld [vmem:[#allocation2 + $0xd8] sm:$0xff]
        %v3446 = vld [vmem:[#allocation2 + $0xe8] sm:$0xff]
        %v3447 = vld [vmem:[#allocation2 + $0xf8] sm:$0xff]
        %v3448 = vld [vmem:[#allocation2 + $0x108] sm:$0xff]
        %v3449 = vld [vmem:[#allocation2 + $0x118] sm:$0xff]
        %v3450 = vld [vmem:[#allocation2 + $0x128] sm:$0xff]
        %v3451 = vld [vmem:[#allocation2 + $0x138] sm:$0xff]
        %v3452 = vld [vmem:[#allocation2 + $0x148] sm:$0xff]
        %v3453 = vld [vmem:[#allocation2 + $0x158] sm:$0xff]
        %v3454 = vld [vmem:[#allocation2 + $0x168] sm:$0xff]
        %v3455 = vld [vmem:[#allocation2 + $0x178] sm:$0xff]
        %v3456 = vmax.f32 %v3408, %v3432
        %v3457 = vmax.f32 %v3409, %v3433
        %v3458 = vmax.f32 %v3410, %v3434
        %v3459 = vmax.f32 %v3411, %v3435
        %v3460 = vmax.f32 %v3412, %v3436
        %v3461 = vmax.f32 %v3413, %v3437
        %v3462 = vmax.f32 %v3414, %v3438
        %v3463 = vmax.f32 %v3415, %v3439
        %v3464 = vmax.f32 %v3416, %v3440
        %v3465 = vmax.f32 %v3417, %v3441
        %v3466 = vmax.f32 %v3418, %v3442
        %v3467 = vmax.f32 %v3419, %v3443
        %v3468 = vmax.f32 %v3420, %v3444
        %v3469 = vmax.f32 %v3421, %v3445
        %v3470 = vmax.f32 %v3422, %v3446
        %v3471 = vmax.f32 %v3423, %v3447
        %v3472 = vmax.f32 %v3424, %v3448
        %v3473 = vmax.f32 %v3425, %v3449
        %v3474 = vmax.f32 %v3426, %v3450
        %v3475 = vmax.f32 %v3427, %v3451
        %v3476 = vmax.f32 %v3428, %v3452
        %v3477 = vmax.f32 %v3429, %v3453
        %v3478 = vmax.f32 %v3430, %v3454
        %v3479 = vmax.f32 %v3431, %v3455
        %v3480 = vld [vmem:[%s2] sm:$0x1]
        %v3482 = vlaneseq
        %v3483 = vshrl.u32 %v3482, 7
        %v3484 = vsub.s32 0, %v3483
        %v3485 = vrot.slane %v3480, %v3484
        %v3487 = vadd.f32 %v3456, %v3485
        %v3488 = vadd.f32 %v3457, %v3485
        %v3489 = vadd.f32 %v3458, %v3485
        %v3490 = vadd.f32 %v3459, %v3485
        %v3491 = vadd.f32 %v3460, %v3485
        %v3492 = vadd.f32 %v3461, %v3485
        %v3493 = vadd.f32 %v3462, %v3485
        %v3494 = vadd.f32 %v3463, %v3485
        %v3495 = vadd.f32 %v3464, %v3485
        %v3496 = vadd.f32 %v3465, %v3485
        %v3497 = vadd.f32 %v3466, %v3485
        %v3498 = vadd.f32 %v3467, %v3485
        %v3499 = vadd.f32 %v3468, %v3485
        %v3500 = vadd.f32 %v3469, %v3485
        %v3501 = vadd.f32 %v3470, %v3485
        %v3502 = vadd.f32 %v3471, %v3485
        %v3503 = vadd.f32 %v3472, %v3485
        %v3504 = vadd.f32 %v3473, %v3485
        %v3505 = vadd.f32 %v3474, %v3485
        %v3506 = vadd.f32 %v3475, %v3485
        %v3507 = vadd.f32 %v3476, %v3485
        %v3508 = vadd.f32 %v3477, %v3485
        %v3509 = vadd.f32 %v3478, %v3485
        %v3510 = vadd.f32 %v3479, %v3485
        %3511 = vst [vmem:[#allocation4] sm:$0xff] %v3487
        %3512 = vst [vmem:[#allocation4 + $0x8] sm:$0xff] %v3488
        %3513 = vst [vmem:[#allocation4 + $0x10] sm:$0xff] %v3489
        %3514 = vst [vmem:[#allocation4 + $0x18] sm:$0xff] %v3490
        %3515 = vst [vmem:[#allocation4 + $0x20] sm:$0xff] %v3491
        %3516 = vst [vmem:[#allocation4 + $0x28] sm:$0xff] %v3492
        %3517 = vst [vmem:[#allocation4 + $0x30] sm:$0xff] %v3493
        %3518 = vst [vmem:[#allocation4 + $0x38] sm:$0xff] %v3494
        %3519 = vst [vmem:[#allocation4 + $0x40] sm:$0xff] %v3495
        %3520 = vst [vmem:[#allocation4 + $0x48] sm:$0xff] %v3496
        %3521 = vst [vmem:[#allocation4 + $0x50] sm:$0xff] %v3497
        %3522 = vst [vmem:[#allocation4 + $0x58] sm:$0xff] %v3498
        %3523 = vst [vmem:[#allocation4 + $0x60] sm:$0xff] %v3499
        %3524 = vst [vmem:[#allocation4 + $0x68] sm:$0xff] %v3500
        %3525 = vst [vmem:[#allocation4 + $0x70] sm:$0xff] %v3501
        %3526 = vst [vmem:[#allocation4 + $0x78] sm:$0xff] %v3502
        %3527 = vst [vmem:[#allocation4 + $0x80] sm:$0xff] %v3503
        %3528 = vst [vmem:[#allocation4 + $0x88] sm:$0xff] %v3504
        %3529 = vst [vmem:[#allocation4 + $0x90] sm:$0xff] %v3505
        %3530 = vst [vmem:[#allocation4 + $0x98] sm:$0xff] %v3506
        %3531 = vst [vmem:[#allocation4 + $0xa0] sm:$0xff] %v3507
        %3532 = vst [vmem:[#allocation4 + $0xa8] sm:$0xff] %v3508
        %3533 = vst [vmem:[#allocation4 + $0xb0] sm:$0xff] %v3509
        %3534 = vst [vmem:[#allocation4 + $0xb8] sm:$0xff] %v3510
        %v3535 = vld [vmem:[#allocation4] ss:$2 sm:$0xff]
        %s3536 = scalar_lea.vmem [#allocation4], 16
        %v3537 = vld [vmem:[%s3536] ss:$2 sm:$0xff]
        %s3538 = scalar_lea.vmem [#allocation4], 32
        %v3539 = vld [vmem:[%s3538] ss:$2 sm:$0xff]
        %s3540 = scalar_lea.vmem [#allocation4], 48
        %v3541 = vld [vmem:[%s3540] ss:$2 sm:$0xff]
        %s3542 = scalar_lea.vmem [#allocation4], 64
        %v3543 = vld [vmem:[%s3542] ss:$2 sm:$0xff]
        %s3544 = scalar_lea.vmem [#allocation4], 80
        %v3545 = vld [vmem:[%s3544] ss:$2 sm:$0xff]
        %s3546 = scalar_lea.vmem [#allocation4], 96
        %v3547 = vld [vmem:[%s3546] ss:$2 sm:$0xff]
        %s3548 = scalar_lea.vmem [#allocation4], 112
        %v3549 = vld [vmem:[%s3548] ss:$2 sm:$0xff]
        %s3550 = scalar_lea.vmem [#allocation4], 128
        %v3551 = vld [vmem:[%s3550] ss:$2 sm:$0xff]
        %s3552 = scalar_lea.vmem [#allocation4], 144
        %v3553 = vld [vmem:[%s3552] ss:$2 sm:$0xff]
        %s3554 = scalar_lea.vmem [#allocation4], 160
        %v3555 = vld [vmem:[%s3554] ss:$2 sm:$0xff]
        %s3556 = scalar_lea.vmem [#allocation4], 176
        %v3557 = vld [vmem:[%s3556] ss:$2 sm:$0xff]
        %s3558 = scalar_lea.vmem [#allocation4], 1
        %v3559 = vld [vmem:[%s3558] ss:$2 sm:$0xff]
        %s3560 = scalar_lea.vmem [#allocation4], 17
        %v3561 = vld [vmem:[%s3560] ss:$2 sm:$0xff]
        %s3562 = scalar_lea.vmem [#allocation4], 33
        %v3563 = vld [vmem:[%s3562] ss:$2 sm:$0xff]
        %s3564 = scalar_lea.vmem [#allocation4], 49
        %v3565 = vld [vmem:[%s3564] ss:$2 sm:$0xff]
        %s3566 = scalar_lea.vmem [#allocation4], 65
        %v3567 = vld [vmem:[%s3566] ss:$2 sm:$0xff]
        %s3568 = scalar_lea.vmem [#allocation4], 81
        %v3569 = vld [vmem:[%s3568] ss:$2 sm:$0xff]
        %s3570 = scalar_lea.vmem [#allocation4], 97
        %v3571 = vld [vmem:[%s3570] ss:$2 sm:$0xff]
        %s3572 = scalar_lea.vmem [#allocation4], 113
        %v3573 = vld [vmem:[%s3572] ss:$2 sm:$0xff]
        %s3574 = scalar_lea.vmem [#allocation4], 129
        %v3575 = vld [vmem:[%s3574] ss:$2 sm:$0xff]
        %s3576 = scalar_lea.vmem [#allocation4], 145
        %v3577 = vld [vmem:[%s3576] ss:$2 sm:$0xff]
        %s3578 = scalar_lea.vmem [#allocation4], 161
        %v3579 = vld [vmem:[%s3578] ss:$2 sm:$0xff]
        %s3580 = scalar_lea.vmem [#allocation4], 177
        %v3581 = vld [vmem:[%s3580] ss:$2 sm:$0xff]
        %v3582 = vmax.f32 %v3535, %v3559
        %v3583 = vmax.f32 %v3537, %v3561
        %v3584 = vmax.f32 %v3539, %v3563
        %v3585 = vmax.f32 %v3541, %v3565
        %v3586 = vmax.f32 %v3543, %v3567
        %v3587 = vmax.f32 %v3545, %v3569
        %v3588 = vmax.f32 %v3547, %v3571
        %v3589 = vmax.f32 %v3549, %v3573
        %v3590 = vmax.f32 %v3551, %v3575
        %v3591 = vmax.f32 %v3553, %v3577
        %v3592 = vmax.f32 %v3555, %v3579
        %v3593 = vmax.f32 %v3557, %v3581
        %v3594 = vmax.f32 %v3582, 0.0
        %v3595 = vmax.f32 %v3583, 0.0
        %v3596 = vmax.f32 %v3584, 0.0
        %v3597 = vmax.f32 %v3585, 0.0
        %v3598 = vmax.f32 %v3586, 0.0
        %v3599 = vmax.f32 %v3587, 0.0
        %v3600 = vmax.f32 %v3588, 0.0
        %v3601 = vmax.f32 %v3589, 0.0
        %v3602 = vmax.f32 %v3590, 0.0
        %v3603 = vmax.f32 %v3591, 0.0
        %v3604 = vmax.f32 %v3592, 0.0
        %v3605 = vmax.f32 %v3593, 0.0
        %v3606 = vpack.c.bf16 %v3595, %v3594
        %v3607 = vpack.c.bf16 %v3597, %v3596
        %v3608 = vpack.c.bf16 %v3599, %v3598
        %v3609 = vpack.c.bf16 %v3601, %v3600
        %v3610 = vpack.c.bf16 %v3603, %v3602
        %v3611 = vpack.c.bf16 %v3605, %v3604
        %v3618 = vunpack.c.l.b16 %v3606
        %v3619 = vunpack.c.h.b16 %v3606
        %v3620 = vunpack.c.l.b16 %v3607
        %v3621 = vunpack.c.h.b16 %v3607
        %v3622 = vunpack.c.l.b16 %v3608
        %v3623 = vunpack.c.h.b16 %v3608
        %v3624 = vunpack.c.l.b16 %v3609
        %v3625 = vunpack.c.h.b16 %v3609
        %v3626 = vunpack.c.l.b16 %v3610
        %v3627 = vunpack.c.h.b16 %v3610
        %v3628 = vunpack.c.l.b16 %v3611
        %v3629 = vunpack.c.h.b16 %v3611
        %v3630 = vpack.c.b16 %v3618, %v3618
        %v3631 = vpack.c.b16 %v3619, %v3619
        %v3632 = vpack.c.b16 %v3620, %v3620
        %v3633 = vpack.c.b16 %v3621, %v3621
        %v3634 = vpack.c.b16 %v3622, %v3622
        %v3635 = vpack.c.b16 %v3623, %v3623
        %v3636 = vpack.c.b16 %v3624, %v3624
        %v3637 = vpack.c.b16 %v3625, %v3625
        %v3638 = vpack.c.b16 %v3626, %v3626
        %v3639 = vpack.c.b16 %v3627, %v3627
        %v3640 = vpack.c.b16 %v3628, %v3628
        %v3641 = vpack.c.b16 %v3629, %v3629
        %3654 = vst [vmem:[#allocation5] sm:$0xf] %v3630
        %3655 = vst [vmem:[#allocation5 + $0x4] sm:$0xf] %v3631
        %3656 = vst [vmem:[#allocation5 + $0x8] sm:$0xf] %v3632
        %3657 = vst [vmem:[#allocation5 + $0xc] sm:$0xf] %v3633
        %3658 = vst [vmem:[#allocation5 + $0x10] sm:$0xf] %v3634
        %3659 = vst [vmem:[#allocation5 + $0x14] sm:$0xf] %v3635
        %3660 = vst [vmem:[#allocation5 + $0x18] sm:$0xf] %v3636
        %3661 = vst [vmem:[#allocation5 + $0x1c] sm:$0xf] %v3637
        %3662 = vst [vmem:[#allocation5 + $0x20] sm:$0xf] %v3638
        %3663 = vst [vmem:[#allocation5 + $0x24] sm:$0xf] %v3639
        %3664 = vst [vmem:[#allocation5 + $0x28] sm:$0xf] %v3640
        %3665 = vst [vmem:[#allocation5 + $0x2c] sm:$0xf] %v3641
        %3666 = vst [vmem:[#allocation5 + $0x30] sm:$0xf] 0
        %3667 = vst [vmem:[#allocation3] sm:$0xff] 0.0
        %3668 = vst [vmem:[#allocation3 + $0x8] sm:$0xff] 0.0
        %3669 = vst [vmem:[#allocation3 + $0x10] sm:$0xff] 0.0
        %3670 = vst [vmem:[#allocation3 + $0x18] sm:$0xff] 0.0
        %3671 = vst [vmem:[#allocation3 + $0x20] sm:$0xff] 0.0
        %3672 = vst [vmem:[#allocation3 + $0x28] sm:$0xff] 0.0
        %3673 = vst [vmem:[#allocation3 + $0x30] sm:$0xff] 0.0
        %3674 = vst [vmem:[#allocation3 + $0x38] sm:$0xff] 0.0
        %3675 = vst [vmem:[#allocation3 + $0x40] sm:$0xff] 0.0
        %3676 = vst [vmem:[#allocation3 + $0x48] sm:$0xff] 0.0
        %3677 = vst [vmem:[#allocation3 + $0x50] sm:$0xff] 0.0
        %3678 = vst [vmem:[#allocation3 + $0x58] sm:$0xff] 0.0
        %3679 = vst [vmem:[#allocation3 + $0x60] sm:$0xff] 0.0
        %3680 = vst [vmem:[#allocation3 + $0x68] sm:$0xff] 0.0
        %3681 = vst [vmem:[#allocation3 + $0x70] sm:$0xff] 0.0
        %3682 = vst [vmem:[#allocation3 + $0x78] sm:$0xff] 0.0
        %3683 = vst [vmem:[#allocation3 + $0x80] sm:$0xff] 0.0
        %3684 = vst [vmem:[#allocation3 + $0x88] sm:$0xff] 0.0
        %3685 = vst [vmem:[#allocation3 + $0x90] sm:$0xff] 0.0
        %3686 = vst [vmem:[#allocation3 + $0x98] sm:$0xff] 0.0
        %3687 = vst [vmem:[#allocation3 + $0xa0] sm:$0xff] 0.0
        %3688 = vst [vmem:[#allocation3 + $0xa8] sm:$0xff] 0.0
        %3689 = vst [vmem:[#allocation3 + $0xb0] sm:$0xff] 0.0
        %3690 = vst [vmem:[#allocation3 + $0xb8] sm:$0xff] 0.0
        %v3691 = vld [vmem:[#allocation5] sm:$0xf]
        %v3692 = vld [vmem:[#allocation5 + $0x4] sm:$0xf]
        %v3693 = vld [vmem:[#allocation5 + $0x8] sm:$0xf]
        %v3694 = vld [vmem:[#allocation5 + $0xc] sm:$0xf]
        %v3695 = vld [vmem:[#allocation5 + $0x10] sm:$0xf]
        %v3696 = vld [vmem:[#allocation5 + $0x14] sm:$0xf]
        %v3697 = vld [vmem:[#allocation5 + $0x18] sm:$0xf]
        %v3698 = vld [vmem:[#allocation5 + $0x1c] sm:$0xf]
        %v3699 = vld [vmem:[#allocation5 + $0x20] sm:$0xf]
        %v3700 = vld [vmem:[#allocation5 + $0x24] sm:$0xf]
        %v3701 = vld [vmem:[#allocation5 + $0x28] sm:$0xf]
        %v3702 = vld [vmem:[#allocation5 + $0x2c] sm:$0xf]
        %v3703 = vld [vmem:[#allocation3] sm:$0xff]
        %v3704 = vld [vmem:[#allocation3 + $0x8] sm:$0xff]
        %v3705 = vld [vmem:[#allocation3 + $0x10] sm:$0xff]
        %v3706 = vld [vmem:[#allocation3 + $0x18] sm:$0xff]
        %v3707 = vld [vmem:[#allocation3 + $0x20] sm:$0xff]
        %v3708 = vld [vmem:[#allocation3 + $0x28] sm:$0xff]
        %v3709 = vld [vmem:[#allocation3 + $0x30] sm:$0xff]
        %v3710 = vld [vmem:[#allocation3 + $0x38] sm:$0xff]
        %v3711 = vld [vmem:[#allocation3 + $0x40] sm:$0xff]
        %v3712 = vld [vmem:[#allocation3 + $0x48] sm:$0xff]
        %v3713 = vld [vmem:[#allocation3 + $0x50] sm:$0xff]
        %v3714 = vld [vmem:[#allocation3 + $0x58] sm:$0xff]
        %v3715 = vld [vmem:[#allocation3 + $0x60] sm:$0xff]
        %v3716 = vld [vmem:[#allocation3 + $0x68] sm:$0xff]
        %v3717 = vld [vmem:[#allocation3 + $0x70] sm:$0xff]
        %v3718 = vld [vmem:[#allocation3 + $0x78] sm:$0xff]
        %v3719 = vld [vmem:[#allocation3 + $0x80] sm:$0xff]
        %v3720 = vld [vmem:[#allocation3 + $0x88] sm:$0xff]
        %v3721 = vld [vmem:[#allocation3 + $0x90] sm:$0xff]
        %v3722 = vld [vmem:[#allocation3 + $0x98] sm:$0xff]
        %v3723 = vld [vmem:[#allocation3 + $0xa0] sm:$0xff]
        %v3724 = vld [vmem:[#allocation3 + $0xa8] sm:$0xff]
        %v3725 = vld [vmem:[#allocation3 + $0xb0] sm:$0xff]
        %v3726 = vld [vmem:[#allocation3 + $0xb8] sm:$0xff]
        %v3727 = vld [vmem:[%s3] sm:$0xff]
        %v3728 = vld [vmem:[%s3 + $0x8] sm:$0xff]
        %v3729 = vld [vmem:[%s3 + $0x10] sm:$0xff]
        %v3730 = vld [vmem:[%s3 + $0x18] sm:$0xff]
        %v3731 = vld [vmem:[%s3 + $0x20] sm:$0xff]
        %v3732 = vld [vmem:[%s3 + $0x28] sm:$0xff]
        %v3733 = vld [vmem:[%s3 + $0x30] sm:$0xff]
        %v3734 = vld [vmem:[%s3 + $0x38] sm:$0xff]
        %v3735 = vld [vmem:[%s3 + $0x40] sm:$0xff]
        %v3736 = vld [vmem:[%s3 + $0x48] sm:$0xff]
        %v3737 = vld [vmem:[%s3 + $0x50] sm:$0xff]
        %v3738 = vld [vmem:[%s3 + $0x58] sm:$0xff]
        %v3739 = vld [vmem:[%s3 + $0x60] sm:$0xff]
        %v3740 = vld [vmem:[%s3 + $0x68] sm:$0xff]
        %v3741 = vld [vmem:[%s3 + $0x70] sm:$0xff]
        %v3742 = vld [vmem:[%s3 + $0x78] sm:$0xff]
        %v3755 = vunpack.c.l.b16 %v3691
        %v3756 = vunpack.c.l.b16 %v3692
        %v3757 = vunpack.c.l.b16 %v3693
        %v3758 = vunpack.c.l.b16 %v3694
        %v3759 = vunpack.c.l.b16 %v3695
        %v3760 = vunpack.c.l.b16 %v3696
        %v3761 = vunpack.c.l.b16 %v3697
        %v3762 = vunpack.c.l.b16 %v3698
        %v3763 = vunpack.c.l.b16 %v3699
        %v3764 = vunpack.c.l.b16 %v3700
        %v3765 = vunpack.c.l.b16 %v3701
        %v3766 = vunpack.c.l.b16 %v3702
        %v3767 = vpack.c.b16 %v3756, %v3755
        %v3768 = vpack.c.b16 %v3758, %v3757
        %v3769 = vpack.c.b16 %v3760, %v3759
        %v3770 = vpack.c.b16 %v3762, %v3761
        %v3771 = vpack.c.b16 %v3764, %v3763
        %v3772 = vpack.c.b16 %v3766, %v3765
        %v3795 = vunpack.c.l.b16 %v3727
        %v3796 = vunpack.c.h.b16 %v3727
        %v3797 = vunpack.c.l.b16 %v3728
        %v3798 = vunpack.c.h.b16 %v3728
        %v3799 = vunpack.c.l.b16 %v3729
        %v3800 = vunpack.c.h.b16 %v3729
        %v3801 = vunpack.c.l.b16 %v3730
        %v3802 = vunpack.c.h.b16 %v3730
        %v3803 = vunpack.c.l.b16 %v3731
        %v3804 = vunpack.c.h.b16 %v3731
        %v3805 = vunpack.c.l.b16 %v3732
        %v3806 = vunpack.c.h.b16 %v3732
        %v3807 = vunpack.c.l.b16 %v3733
        %v3808 = vunpack.c.h.b16 %v3733
        %v3809 = vunpack.c.l.b16 %v3734
        %v3810 = vunpack.c.h.b16 %v3734
        %v3811 = vunpack.c.l.b16 %v3735
        %v3812 = vunpack.c.h.b16 %v3735
        %v3813 = vunpack.c.l.b16 %v3736
        %v3814 = vunpack.c.h.b16 %v3736
        %v3815 = vunpack.c.l.b16 %v3737
        %v3816 = vunpack.c.h.b16 %v3737
        %v3817 = vunpack.c.l.b16 %v3738
        %v3818 = vunpack.c.h.b16 %v3738
        %v3819 = vunpack.c.l.b16 %v3739
        %v3820 = vunpack.c.h.b16 %v3739
        %v3821 = vunpack.c.l.b16 %v3740
        %v3822 = vunpack.c.h.b16 %v3740
        %v3823 = vunpack.c.l.b16 %v3741
        %v3824 = vunpack.c.h.b16 %v3741
        %v3825 = vunpack.c.l.b16 %v3742
        %v3826 = vunpack.c.h.b16 %v3742
        %v3827 = vpack.c.b16 %v3797, %v3795
        %v3828 = vpack.c.b16 %v3798, %v3796
        %v3829 = vpack.c.b16 %v3801, %v3799
        %v3830 = vpack.c.b16 %v3802, %v3800
        %v3831 = vpack.c.b16 %v3805, %v3803
        %v3832 = vpack.c.b16 %v3806, %v3804
        %v3833 = vpack.c.b16 %v3809, %v3807
        %v3834 = vpack.c.b16 %v3810, %v3808
        %v3835 = vpack.c.b16 %v3813, %v3811
        %v3836 = vpack.c.b16 %v3814, %v3812
        %v3837 = vpack.c.b16 %v3817, %v3815
        %v3838 = vpack.c.b16 %v3818, %v3816
        %v3839 = vpack.c.b16 %v3821, %v3819
        %v3840 = vpack.c.b16 %v3822, %v3820
        %v3841 = vpack.c.b16 %v3825, %v3823
        %v3842 = vpack.c.b16 %v3826, %v3824
        %3859 = vmatprep.subr.bf16.mxu0 %v3828
        %3860 = vmatpush1.bf16.msra.mxu0 %v3827
        %3861 = vmatprep.subr.bf16.mxu0 %v3830
        %3862 = vmatpush1.bf16.msra.mxu0 %v3829
        %3863 = vmatprep.subr.bf16.mxu0 %v3832
        %3864 = vmatpush1.bf16.msra.mxu0 %v3831
        %3865 = vmatprep.subr.bf16.mxu0 %v3834
        %3866 = vmatpush1.bf16.msra.mxu0 %v3833
        %3867 = vmatprep.subr.bf16.mxu0 %v3836
        %3868 = vmatpush1.bf16.msra.mxu0 %v3835
        %3869 = vmatprep.subr.bf16.mxu0 %v3838
        %3870 = vmatpush1.bf16.msra.mxu0 %v3837
        %3871 = vmatprep.subr.bf16.mxu0 %v3840
        %3872 = vmatpush1.bf16.msra.mxu0 %v3839
        %3873 = vmatprep.subr.bf16.mxu0 %v3842
        %3874 = vmatpush1.bf16.msra.mxu0 %v3841
        %3875 = vmatprep.subr.bf16.mxu0 0
        %3876 = vmatpush1.bf16.msra.mxu0 0
        %3877 = vmatprep.subr.bf16.mxu0 0
        %3878 = vmatpush1.bf16.msra.mxu0 0
        %3879 = vmatprep.subr.bf16.mxu0 0
        %3880 = vmatpush1.bf16.msra.mxu0 0
        %3881 = vmatprep.subr.bf16.mxu0 0
        %3882 = vmatpush1.bf16.msra.mxu0 0
        %3883 = vmatprep.subr.bf16.mxu0 0
        %3884 = vmatpush1.bf16.msra.mxu0 0
        %3885 = vmatprep.subr.bf16.mxu0 0
        %3886 = vmatpush1.bf16.msra.mxu0 0
        %3887 = vmatprep.subr.bf16.mxu0 0
        %3888 = vmatpush1.bf16.msra.mxu0 0
        %3889 = vmatprep.subr.bf16.mxu0 0
        %3890 = vmatpush1.bf16.msra.mxu0 0
        %3891 = vmatprep.mubr.bf16.mxu0 0
        %3892 = vmatmul.mubr.bf16.gmra.mrb[0].mxu0 %v3767
        %v3893 = vpop.f32.mrb[0].mxu0
        %v3894 = vadd.f32 0.0, %v3893
        %v3895 = vpop.f32.mrb[0].mxu0
        %v3896 = vadd.f32 0.0, %v3895
        %v3897 = vpop.f32.mrb[0].mxu0
        %v3898 = vadd.f32 0.0, %v3897
        %v3899 = vpop.f32.mrb[0].mxu0
        %v3900 = vadd.f32 0.0, %v3899
        %3901 = vmatprep.mubr.bf16.mxu0 0
        %3902 = vmatmul.mubr.bf16.gmra.mrb[0].mxu0 %v3768
        %v3903 = vpop.f32.mrb[0].mxu0
        %v3904 = vadd.f32 0.0, %v3903
        %v3905 = vpop.f32.mrb[0].mxu0
        %v3906 = vadd.f32 0.0, %v3905
        %v3907 = vpop.f32.mrb[0].mxu0
        %v3908 = vadd.f32 0.0, %v3907
        %v3909 = vpop.f32.mrb[0].mxu0
        %v3910 = vadd.f32 0.0, %v3909
        %3911 = vmatprep.mubr.bf16.mxu0 0
        %3912 = vmatmul.mubr.bf16.gmra.mrb[0].mxu0 %v3769
        %v3913 = vpop.f32.mrb[0].mxu0
        %v3914 = vadd.f32 0.0, %v3913
        %v3915 = vpop.f32.mrb[0].mxu0
        %v3916 = vadd.f32 0.0, %v3915
        %v3917 = vpop.f32.mrb[0].mxu0
        %v3918 = vadd.f32 0.0, %v3917
        %v3919 = vpop.f32.mrb[0].mxu0
        %v3920 = vadd.f32 0.0, %v3919
        %3921 = vmatprep.mubr.bf16.mxu0 0
        %3922 = vmatmul.mubr.bf16.gmra.mrb[0].mxu0 %v3770
        %v3923 = vpop.f32.mrb[0].mxu0
        %v3924 = vadd.f32 0.0, %v3923
        %v3925 = vpop.f32.mrb[0].mxu0
        %v3926 = vadd.f32 0.0, %v3925
        %v3927 = vpop.f32.mrb[0].mxu0
        %v3928 = vadd.f32 0.0, %v3927
        %v3929 = vpop.f32.mrb[0].mxu0
        %v3930 = vadd.f32 0.0, %v3929
        %3931 = vmatprep.mubr.bf16.mxu0 0
        %3932 = vmatmul.mubr.bf16.gmra.mrb[0].mxu0 %v3771
        %v3933 = vpop.f32.mrb[0].mxu0
        %v3934 = vadd.f32 0.0, %v3933
        %v3935 = vpop.f32.mrb[0].mxu0
        %v3936 = vadd.f32 0.0, %v3935
        %v3937 = vpop.f32.mrb[0].mxu0
        %v3938 = vadd.f32 0.0, %v3937
        %v3939 = vpop.f32.mrb[0].mxu0
        %v3940 = vadd.f32 0.0, %v3939
        %3941 = vmatprep.mubr.bf16.mxu0 0
        %3942 = vmatmul.mubr.bf16.gmra.mrb[0].mxu0 %v3772
        %v3943 = vpop.f32.mrb[0].mxu0
        %v3944 = vadd.f32 0.0, %v3943
        %v3945 = vpop.f32.mrb[0].mxu0
        %v3946 = vadd.f32 0.0, %v3945
        %v3947 = vpop.f32.mrb[0].mxu0
        %v3948 = vadd.f32 0.0, %v3947
        %v3949 = vpop.f32.mrb[0].mxu0
        %v3950 = vadd.f32 0.0, %v3949
        %3951 = vdwg.mxu0
        %v3952 = vadd.f32 %v3703, %v3894
        %v3953 = vadd.f32 %v3704, %v3896
        %v3954 = vadd.f32 %v3705, %v3898
        %v3955 = vadd.f32 %v3706, %v3900
        %v3956 = vadd.f32 %v3707, %v3904
        %v3957 = vadd.f32 %v3708, %v3906
        %v3958 = vadd.f32 %v3709, %v3908
        %v3959 = vadd.f32 %v3710, %v3910
        %v3960 = vadd.f32 %v3711, %v3914
        %v3961 = vadd.f32 %v3712, %v3916
        %v3962 = vadd.f32 %v3713, %v3918
        %v3963 = vadd.f32 %v3714, %v3920
        %v3964 = vadd.f32 %v3715, %v3924
        %v3965 = vadd.f32 %v3716, %v3926
        %v3966 = vadd.f32 %v3717, %v3928
        %v3967 = vadd.f32 %v3718, %v3930
        %v3968 = vadd.f32 %v3719, %v3934
        %v3969 = vadd.f32 %v3720, %v3936
        %v3970 = vadd.f32 %v3721, %v3938
        %v3971 = vadd.f32 %v3722, %v3940
        %v3972 = vadd.f32 %v3723, %v3944
        %v3973 = vadd.f32 %v3724, %v3946
        %v3974 = vadd.f32 %v3725, %v3948
        %v3975 = vadd.f32 %v3726, %v3950
        %3976 = vst [vmem:[#allocation3] sm:$0xff] %v3952
        %3977 = vst [vmem:[#allocation3 + $0x8] sm:$0xff] %v3953
        %3978 = vst [vmem:[#allocation3 + $0x10] sm:$0xff] %v3954
        %3979 = vst [vmem:[#allocation3 + $0x18] sm:$0xff] %v3955
        %3980 = vst [vmem:[#allocation3 + $0x20] sm:$0xff] %v3956
        %3981 = vst [vmem:[#allocation3 + $0x28] sm:$0xff] %v3957
        %3982 = vst [vmem:[#allocation3 + $0x30] sm:$0xff] %v3958
        %3983 = vst [vmem:[#allocation3 + $0x38] sm:$0xff] %v3959
        %3984 = vst [vmem:[#allocation3 + $0x40] sm:$0xff] %v3960
        %3985 = vst [vmem:[#allocation3 + $0x48] sm:$0xff] %v3961
        %3986 = vst [vmem:[#allocation3 + $0x50] sm:$0xff] %v3962
        %3987 = vst [vmem:[#allocation3 + $0x58] sm:$0xff] %v3963
        %3988 = vst [vmem:[#allocation3 + $0x60] sm:$0xff] %v3964
        %3989 = vst [vmem:[#allocation3 + $0x68] sm:$0xff] %v3965
        %3990 = vst [vmem:[#allocation3 + $0x70] sm:$0xff] %v3966
        %3991 = vst [vmem:[#allocation3 + $0x78] sm:$0xff] %v3967
        %3992 = vst [vmem:[#allocation3 + $0x80] sm:$0xff] %v3968
        %3993 = vst [vmem:[#allocation3 + $0x88] sm:$0xff] %v3969
        %3994 = vst [vmem:[#allocation3 + $0x90] sm:$0xff] %v3970
        %3995 = vst [vmem:[#allocation3 + $0x98] sm:$0xff] %v3971
        %3996 = vst [vmem:[#allocation3 + $0xa0] sm:$0xff] %v3972
        %3997 = vst [vmem:[#allocation3 + $0xa8] sm:$0xff] %v3973
        %3998 = vst [vmem:[#allocation3 + $0xb0] sm:$0xff] %v3974
        %3999 = vst [vmem:[#allocation3 + $0xb8] sm:$0xff] %v3975
        %v4000 = vld [vmem:[#allocation5] sm:$0xf]
        %v4001 = vld [vmem:[#allocation5 + $0x4] sm:$0xf]
        %v4002 = vld [vmem:[#allocation5 + $0x8] sm:$0xf]
        %v4003 = vld [vmem:[#allocation5 + $0xc] sm:$0xf]
        %v4004 = vld [vmem:[#allocation5 + $0x10] sm:$0xf]
        %v4005 = vld [vmem:[#allocation5 + $0x14] sm:$0xf]
        %v4006 = vld [vmem:[#allocation5 + $0x18] sm:$0xf]
        %v4007 = vld [vmem:[#allocation5 + $0x1c] sm:$0xf]
        %v4008 = vld [vmem:[#allocation5 + $0x20] sm:$0xf]
        %v4009 = vld [vmem:[#allocation5 + $0x24] sm:$0xf]
        %v4010 = vld [vmem:[#allocation5 + $0x28] sm:$0xf]
        %v4011 = vld [vmem:[#allocation5 + $0x2c] sm:$0xf]
        %v4012 = vld [vmem:[#allocation5 + $0x30] sm:$0x1]
        %v4013 = vld [vmem:[#allocation3] sm:$0xff]
        %v4014 = vld [vmem:[#allocation3 + $0x8] sm:$0xff]
        %v4015 = vld [vmem:[#allocation3 + $0x10] sm:$0xff]
        %v4016 = vld [vmem:[#allocation3 + $0x18] sm:$0xff]
        %v4017 = vld [vmem:[#allocation3 + $0x20] sm:$0xff]
        %v4018 = vld [vmem:[#allocation3 + $0x28] sm:$0xff]
        %v4019 = vld [vmem:[#allocation3 + $0x30] sm:$0xff]
        %v4020 = vld [vmem:[#allocation3 + $0x38] sm:$0xff]
        %v4021 = vld [vmem:[#allocation3 + $0x40] sm:$0xff]
        %v4022 = vld [vmem:[#allocation3 + $0x48] sm:$0xff]
        %v4023 = vld [vmem:[#allocation3 + $0x50] sm:$0xff]
        %v4024 = vld [vmem:[#allocation3 + $0x58] sm:$0xff]
        %v4025 = vld [vmem:[#allocation3 + $0x60] sm:$0xff]
        %v4026 = vld [vmem:[#allocation3 + $0x68] sm:$0xff]
        %v4027 = vld [vmem:[#allocation3 + $0x70] sm:$0xff]
        %v4028 = vld [vmem:[#allocation3 + $0x78] sm:$0xff]
        %v4029 = vld [vmem:[#allocation3 + $0x80] sm:$0xff]
        %v4030 = vld [vmem:[#allocation3 + $0x88] sm:$0xff]
        %v4031 = vld [vmem:[#allocation3 + $0x90] sm:$0xff]
        %v4032 = vld [vmem:[#allocation3 + $0x98] sm:$0xff]
        %v4033 = vld [vmem:[#allocation3 + $0xa0] sm:$0xff]
        %v4034 = vld [vmem:[#allocation3 + $0xa8] sm:$0xff]
        %v4035 = vld [vmem:[#allocation3 + $0xb0] sm:$0xff]
        %v4036 = vld [vmem:[#allocation3 + $0xb8] sm:$0xff]
        %s4037 = scalar_lea.vmem %s3, 128
        %v4038 = vld [vmem:[%s4037] sm:$0xff]
        %v4039 = vld [vmem:[%s4037 + $0x8] sm:$0xff]
        %v4040 = vld [vmem:[%s4037 + $0x10] sm:$0xff]
        %v4041 = vld [vmem:[%s4037 + $0x18] sm:$0xff]
        %v4042 = vld [vmem:[%s4037 + $0x20] sm:$0xff]
        %v4043 = vld [vmem:[%s4037 + $0x28] sm:$0xff]
        %v4044 = vld [vmem:[%s4037 + $0x30] sm:$0xff]
        %v4045 = vld [vmem:[%s4037 + $0x38] sm:$0xff]
        %v4046 = vld [vmem:[%s4037 + $0x40] sm:$0xff]
        %v4047 = vld [vmem:[%s4037 + $0x48] sm:$0xff]
        %v4048 = vld [vmem:[%s4037 + $0x50] sm:$0xff]
        %v4049 = vld [vmem:[%s4037 + $0x58] sm:$0xff]
        %v4050 = vld [vmem:[%s4037 + $0x60] sm:$0xff]
        %v4051 = vld [vmem:[%s4037 + $0x68] sm:$0xff]
        %v4052 = vld [vmem:[%s4037 + $0x70] sm:$0xff]
        %v4053 = vld [vmem:[%s4037 + $0x78] sm:$0xff]
        %v4067 = vunpack.c.l.b16 %v4000
        %v4068 = vunpack.c.l.b16 %v4001
        %v4069 = vunpack.c.l.b16 %v4002
        %v4070 = vunpack.c.l.b16 %v4003
        %v4071 = vunpack.c.l.b16 %v4004
        %v4072 = vunpack.c.l.b16 %v4005
        %v4073 = vunpack.c.l.b16 %v4006
        %v4074 = vunpack.c.l.b16 %v4007
        %v4075 = vunpack.c.l.b16 %v4008
        %v4076 = vunpack.c.l.b16 %v4009
        %v4077 = vunpack.c.l.b16 %v4010
        %v4078 = vunpack.c.l.b16 %v4011
        %v4079 = vunpack.c.l.b16 %v4012
        %v4080 = vpack.c.b16 %v4068, %v4067
        %v4081 = vpack.c.b16 %v4070, %v4069
        %v4082 = vpack.c.b16 %v4072, %v4071
        %v4083 = vpack.c.b16 %v4074, %v4073
        %v4084 = vpack.c.b16 %v4076, %v4075
        %v4085 = vpack.c.b16 %v4078, %v4077
        %v4086 = vpack.c.b16 %v4079, %v4079
        %vm4087 = vsmask.f32 7424
        %v4089 = vshrl.u32 %v4080, 16
        %v4091 = vshll.u32 %v4080, 16
        %v4093 = vrot.slane %v4091, 1
        %v4094 = vor.u32 %v4089, %v4093
        %v4096 = vshll.u32 %v4081, 16
        %v4098 = vrot.slane %v4096, 1
        %v4099 = vsel %vm4087, %v4094, %v4098
        %v4100 = vshrl.u32 %v4081, 16
        %v4102 = vor.u32 %v4100, %v4098
        %v4104 = vshll.u32 %v4082, 16
        %v4106 = vrot.slane %v4104, 1
        %v4107 = vsel %vm4087, %v4102, %v4106
        %v4108 = vshrl.u32 %v4082, 16
        %v4110 = vor.u32 %v4108, %v4106
        %v4112 = vshll.u32 %v4083, 16
        %v4114 = vrot.slane %v4112, 1
        %v4115 = vsel %vm4087, %v4110, %v4114
        %v4116 = vshrl.u32 %v4083, 16
        %v4118 = vor.u32 %v4116, %v4114
        %v4120 = vshll.u32 %v4084, 16
        %v4122 = vrot.slane %v4120, 1
        %v4123 = vsel %vm4087, %v4118, %v4122
        %v4124 = vshrl.u32 %v4084, 16
        %v4126 = vor.u32 %v4124, %v4122
        %v4128 = vshll.u32 %v4085, 16
        %v4130 = vrot.slane %v4128, 1
        %v4131 = vsel %vm4087, %v4126, %v4130
        %v4132 = vshrl.u32 %v4085, 16
        %v4134 = vor.u32 %v4132, %v4130
        %v4136 = vshll.u32 %v4086, 16
        %v4138 = vrot.slane %v4136, 1
        %v4139 = vsel %vm4087, %v4134, %v4138
        %v4162 = vunpack.c.l.b16 %v4038
        %v4163 = vunpack.c.h.b16 %v4038
        %v4164 = vunpack.c.l.b16 %v4039
        %v4165 = vunpack.c.h.b16 %v4039
        %v4166 = vunpack.c.l.b16 %v4040
        %v4167 = vunpack.c.h.b16 %v4040
        %v4168 = vunpack.c.l.b16 %v4041
        %v4169 = vunpack.c.h.b16 %v4041
        %v4170 = vunpack.c.l.b16 %v4042
        %v4171 = vunpack.c.h.b16 %v4042
        %v4172 = vunpack.c.l.b16 %v4043
        %v4173 = vunpack.c.h.b16 %v4043
        %v4174 = vunpack.c.l.b16 %v4044
        %v4175 = vunpack.c.h.b16 %v4044
        %v4176 = vunpack.c.l.b16 %v4045
        %v4177 = vunpack.c.h.b16 %v4045
        %v4178 = vunpack.c.l.b16 %v4046
        %v4179 = vunpack.c.h.b16 %v4046
        %v4180 = vunpack.c.l.b16 %v4047
        %v4181 = vunpack.c.h.b16 %v4047
        %v4182 = vunpack.c.l.b16 %v4048
        %v4183 = vunpack.c.h.b16 %v4048
        %v4184 = vunpack.c.l.b16 %v4049
        %v4185 = vunpack.c.h.b16 %v4049
        %v4186 = vunpack.c.l.b16 %v4050
        %v4187 = vunpack.c.h.b16 %v4050
        %v4188 = vunpack.c.l.b16 %v4051
        %v4189 = vunpack.c.h.b16 %v4051
        %v4190 = vunpack.c.l.b16 %v4052
        %v4191 = vunpack.c.h.b16 %v4052
        %v4192 = vunpack.c.l.b16 %v4053
        %v4193 = vunpack.c.h.b16 %v4053
        %v4194 = vpack.c.b16 %v4164, %v4162
        %v4195 = vpack.c.b16 %v4165, %v4163
        %v4196 = vpack.c.b16 %v4168, %v4166
        %v4197 = vpack.c.b16 %v4169, %v4167
        %v4198 = vpack.c.b16 %v4172, %v4170
        %v4199 = vpack.c.b16 %v4173, %v4171
        %v4200 = vpack.c.b16 %v4176, %v4174
        %v4201 = vpack.c.b16 %v4177, %v4175
        %v4202 = vpack.c.b16 %v4180, %v4178
        %v4203 = vpack.c.b16 %v4181, %v4179
        %v4204 = vpack.c.b16 %v4184, %v4182
        %v4205 = vpack.c.b16 %v4185, %v4183
        %v4206 = vpack.c.b16 %v4188, %v4186
        %v4207 = vpack.c.b16 %v4189, %v4187
        %v4208 = vpack.c.b16 %v4192, %v4190
        %v4209 = vpack.c.b16 %v4193, %v4191
        %4226 = vmatprep.subr.bf16.mxu0 %v4195
        %4227 = vmatpush1.bf16.msra.mxu0 %v4194
        %4228 = vmatprep.subr.bf16.mxu0 %v4197
        %4229 = vmatpush1.bf16.msra.mxu0 %v4196
        %4230 = vmatprep.subr.bf16.mxu0 %v4199
        %4231 = vmatpush1.bf16.msra.mxu0 %v4198
        %4232 = vmatprep.subr.bf16.mxu0 %v4201
        %4233 = vmatpush1.bf16.msra.mxu0 %v4200
        %4234 = vmatprep.subr.bf16.mxu0 %v4203
        %4235 = vmatpush1.bf16.msra.mxu0 %v4202
        %4236 = vmatprep.subr.bf16.mxu0 %v4205
        %4237 = vmatpush1.bf16.msra.mxu0 %v4204
        %4238 = vmatprep.subr.bf16.mxu0 %v4207
        %4239 = vmatpush1.bf16.msra.mxu0 %v4206
        %4240 = vmatprep.subr.bf16.mxu0 %v4209
        %4241 = vmatpush1.bf16.msra.mxu0 %v4208
        %4242 = vmatprep.subr.bf16.mxu0 0
        %4243 = vmatpush1.bf16.msra.mxu0 0
        %4244 = vmatprep.subr.bf16.mxu0 0
        %4245 = vmatpush1.bf16.msra.mxu0 0
        %4246 = vmatprep.subr.bf16.mxu0 0
        %4247 = vmatpush1.bf16.msra.mxu0 0
        %4248 = vmatprep.subr.bf16.mxu0 0
        %4249 = vmatpush1.bf16.msra.mxu0 0
        %4250 = vmatprep.subr.bf16.mxu0 0
        %4251 = vmatpush1.bf16.msra.mxu0 0
        %4252 = vmatprep.subr.bf16.mxu0 0
        %4253 = vmatpush1.bf16.msra.mxu0 0
        %4254 = vmatprep.subr.bf16.mxu0 0
        %4255 = vmatpush1.bf16.msra.mxu0 0
        %4256 = vmatprep.subr.bf16.mxu0 0
        %4257 = vmatpush1.bf16.msra.mxu0 0
        %4258 = vmatprep.mubr.bf16.mxu0 0
        %4259 = vmatmul.mubr.bf16.gmra.mrb[0].mxu0 %v4099
        %v4260 = vpop.f32.mrb[0].mxu0
        %v4261 = vadd.f32 0.0, %v4260
        %v4262 = vpop.f32.mrb[0].mxu0
        %v4263 = vadd.f32 0.0, %v4262
        %v4264 = vpop.f32.mrb[0].mxu0
        %v4265 = vadd.f32 0.0, %v4264
        %v4266 = vpop.f32.mrb[0].mxu0
        %v4267 = vadd.f32 0.0, %v4266
        %4268 = vmatprep.mubr.bf16.mxu0 0
        %4269 = vmatmul.mubr.bf16.gmra.mrb[0].mxu0 %v4107
        %v4270 = vpop.f32.mrb[0].mxu0
        %v4271 = vadd.f32 0.0, %v4270
        %v4272 = vpop.f32.mrb[0].mxu0
        %v4273 = vadd.f32 0.0, %v4272
        %v4274 = vpop.f32.mrb[0].mxu0
        %v4275 = vadd.f32 0.0, %v4274
        %v4276 = vpop.f32.mrb[0].mxu0
        %v4277 = vadd.f32 0.0, %v4276
        %4278 = vmatprep.mubr.bf16.mxu0 0
        %4279 = vmatmul.mubr.bf16.gmra.mrb[0].mxu0 %v4115
        %v4280 = vpop.f32.mrb[0].mxu0
        %v4281 = vadd.f32 0.0, %v4280
        %v4282 = vpop.f32.mrb[0].mxu0
        %v4283 = vadd.f32 0.0, %v4282
        %v4284 = vpop.f32.mrb[0].mxu0
        %v4285 = vadd.f32 0.0, %v4284
        %v4286 = vpop.f32.mrb[0].mxu0
        %v4287 = vadd.f32 0.0, %v4286
        %4288 = vmatprep.mubr.bf16.mxu0 0
        %4289 = vmatmul.mubr.bf16.gmra.mrb[0].mxu0 %v4123
        %v4290 = vpop.f32.mrb[0].mxu0
        %v4291 = vadd.f32 0.0, %v4290
        %v4292 = vpop.f32.mrb[0].mxu0
        %v4293 = vadd.f32 0.0, %v4292
        %v4294 = vpop.f32.mrb[0].mxu0
        %v4295 = vadd.f32 0.0, %v4294
        %v4296 = vpop.f32.mrb[0].mxu0
        %v4297 = vadd.f32 0.0, %v4296
        %4298 = vmatprep.mubr.bf16.mxu0 0
        %4299 = vmatmul.mubr.bf16.gmra.mrb[0].mxu0 %v4131
        %v4300 = vpop.f32.mrb[0].mxu0
        %v4301 = vadd.f32 0.0, %v4300
        %v4302 = vpop.f32.mrb[0].mxu0
        %v4303 = vadd.f32 0.0, %v4302
        %v4304 = vpop.f32.mrb[0].mxu0
        %v4305 = vadd.f32 0.0, %v4304
        %v4306 = vpop.f32.mrb[0].mxu0
        %v4307 = vadd.f32 0.0, %v4306
        %4308 = vmatprep.mubr.bf16.mxu0 0
        %4309 = vmatmul.mubr.bf16.gmra.mrb[0].mxu0 %v4139
        %v4310 = vpop.f32.mrb[0].mxu0
        %v4311 = vadd.f32 0.0, %v4310
        %v4312 = vpop.f32.mrb[0].mxu0
        %v4313 = vadd.f32 0.0, %v4312
        %v4314 = vpop.f32.mrb[0].mxu0
        %v4315 = vadd.f32 0.0, %v4314
        %v4316 = vpop.f32.mrb[0].mxu0
        %v4317 = vadd.f32 0.0, %v4316
        %4318 = vdwg.mxu0
        %v4319 = vadd.f32 %v4013, %v4261
        %v4320 = vadd.f32 %v4014, %v4263
        %v4321 = vadd.f32 %v4015, %v4265
        %v4322 = vadd.f32 %v4016, %v4267
        %v4323 = vadd.f32 %v4017, %v4271
        %v4324 = vadd.f32 %v4018, %v4273
        %v4325 = vadd.f32 %v4019, %v4275
        %v4326 = vadd.f32 %v4020, %v4277
        %v4327 = vadd.f32 %v4021, %v4281
        %v4328 = vadd.f32 %v4022, %v4283
        %v4329 = vadd.f32 %v4023, %v4285
        %v4330 = vadd.f32 %v4024, %v4287
        %v4331 = vadd.f32 %v4025, %v4291
        %v4332 = vadd.f32 %v4026, %v4293
        %v4333 = vadd.f32 %v4027, %v4295
        %v4334 = vadd.f32 %v4028, %v4297
        %v4335 = vadd.f32 %v4029, %v4301
        %v4336 = vadd.f32 %v4030, %v4303
        %v4337 = vadd.f32 %v4031, %v4305
        %v4338 = vadd.f32 %v4032, %v4307
        %v4339 = vadd.f32 %v4033, %v4311
        %v4340 = vadd.f32 %v4034, %v4313
        %v4341 = vadd.f32 %v4035, %v4315
        %v4342 = vadd.f32 %v4036, %v4317
        %4343 = vst [vmem:[#allocation3] sm:$0xff] %v4319
        %4344 = vst [vmem:[#allocation3 + $0x8] sm:$0xff] %v4320
        %4345 = vst [vmem:[#allocation3 + $0x10] sm:$0xff] %v4321
        %4346 = vst [vmem:[#allocation3 + $0x18] sm:$0xff] %v4322
        %4347 = vst [vmem:[#allocation3 + $0x20] sm:$0xff] %v4323
        %4348 = vst [vmem:[#allocation3 + $0x28] sm:$0xff] %v4324
        %4349 = vst [vmem:[#allocation3 + $0x30] sm:$0xff] %v4325
        %4350 = vst [vmem:[#allocation3 + $0x38] sm:$0xff] %v4326
        %4351 = vst [vmem:[#allocation3 + $0x40] sm:$0xff] %v4327
        %4352 = vst [vmem:[#allocation3 + $0x48] sm:$0xff] %v4328
        %4353 = vst [vmem:[#allocation3 + $0x50] sm:$0xff] %v4329
        %4354 = vst [vmem:[#allocation3 + $0x58] sm:$0xff] %v4330
        %4355 = vst [vmem:[#allocation3 + $0x60] sm:$0xff] %v4331
        %4356 = vst [vmem:[#allocation3 + $0x68] sm:$0xff] %v4332
        %4357 = vst [vmem:[#allocation3 + $0x70] sm:$0xff] %v4333
        %4358 = vst [vmem:[#allocation3 + $0x78] sm:$0xff] %v4334
        %4359 = vst [vmem:[#allocation3 + $0x80] sm:$0xff] %v4335
        %4360 = vst [vmem:[#allocation3 + $0x88] sm:$0xff] %v4336
        %4361 = vst [vmem:[#allocation3 + $0x90] sm:$0xff] %v4337
        %4362 = vst [vmem:[#allocation3 + $0x98] sm:$0xff] %v4338
        %4363 = vst [vmem:[#allocation3 + $0xa0] sm:$0xff] %v4339
        %4364 = vst [vmem:[#allocation3 + $0xa8] sm:$0xff] %v4340
        %4365 = vst [vmem:[#allocation3 + $0xb0] sm:$0xff] %v4341
        %4366 = vst [vmem:[#allocation3 + $0xb8] sm:$0xff] %v4342
        %v4367 = vld [vmem:[#allocation5] sm:$0xe]
        %v4368 = vld [vmem:[#allocation5 + $0x4] sm:$0xf]
        %v4369 = vld [vmem:[#allocation5 + $0x8] sm:$0xf]
        %v4370 = vld [vmem:[#allocation5 + $0xc] sm:$0xf]
        %v4371 = vld [vmem:[#allocation5 + $0x10] sm:$0xf]
        %v4372 = vld [vmem:[#allocation5 + $0x14] sm:$0xf]
        %v4373 = vld [vmem:[#allocation5 + $0x18] sm:$0xf]
        %v4374 = vld [vmem:[#allocation5 + $0x1c] sm:$0xf]
        %v4375 = vld [vmem:[#allocation5 + $0x20] sm:$0xf]
        %v4376 = vld [vmem:[#allocation5 + $0x24] sm:$0xf]
        %v4377 = vld [vmem:[#allocation5 + $0x28] sm:$0xf]
        %v4378 = vld [vmem:[#allocation5 + $0x2c] sm:$0xf]
        %v4379 = vld [vmem:[#allocation5 + $0x30] sm:$0x1]
        %v4380 = vld [vmem:[#allocation3] sm:$0xff]
        %v4381 = vld [vmem:[#allocation3 + $0x8] sm:$0xff]
        %v4382 = vld [vmem:[#allocation3 + $0x10] sm:$0xff]
        %v4383 = vld [vmem:[#allocation3 + $0x18] sm:$0xff]
        %v4384 = vld [vmem:[#allocation3 + $0x20] sm:$0xff]
        %v4385 = vld [vmem:[#allocation3 + $0x28] sm:$0xff]
        %v4386 = vld [vmem:[#allocation3 + $0x30] sm:$0xff]
        %v4387 = vld [vmem:[#allocation3 + $0x38] sm:$0xff]
        %v4388 = vld [vmem:[#allocation3 + $0x40] sm:$0xff]
        %v4389 = vld [vmem:[#allocation3 + $0x48] sm:$0xff]
        %v4390 = vld [vmem:[#allocation3 + $0x50] sm:$0xff]
        %v4391 = vld [vmem:[#allocation3 + $0x58] sm:$0xff]
        %v4392 = vld [vmem:[#allocation3 + $0x60] sm:$0xff]
        %v4393 = vld [vmem:[#allocation3 + $0x68] sm:$0xff]
        %v4394 = vld [vmem:[#allocation3 + $0x70] sm:$0xff]
        %v4395 = vld [vmem:[#allocation3 + $0x78] sm:$0xff]
        %v4396 = vld [vmem:[#allocation3 + $0x80] sm:$0xff]
        %v4397 = vld [vmem:[#allocation3 + $0x88] sm:$0xff]
        %v4398 = vld [vmem:[#allocation3 + $0x90] sm:$0xff]
        %v4399 = vld [vmem:[#allocation3 + $0x98] sm:$0xff]
        %v4400 = vld [vmem:[#allocation3 + $0xa0] sm:$0xff]
        %v4401 = vld [vmem:[#allocation3 + $0xa8] sm:$0xff]
        %v4402 = vld [vmem:[#allocation3 + $0xb0] sm:$0xff]
        %v4403 = vld [vmem:[#allocation3 + $0xb8] sm:$0xff]
        %s4404 = scalar_lea.vmem %s3, 256
        %v4405 = vld [vmem:[%s4404] sm:$0xff]
        %v4406 = vld [vmem:[%s4404 + $0x8] sm:$0xff]
        %v4407 = vld [vmem:[%s4404 + $0x10] sm:$0xff]
        %v4408 = vld [vmem:[%s4404 + $0x18] sm:$0xff]
        %v4409 = vld [vmem:[%s4404 + $0x20] sm:$0xff]
        %v4410 = vld [vmem:[%s4404 + $0x28] sm:$0xff]
        %v4411 = vld [vmem:[%s4404 + $0x30] sm:$0xff]
        %v4412 = vld [vmem:[%s4404 + $0x38] sm:$0xff]
        %v4413 = vld [vmem:[%s4404 + $0x40] sm:$0xff]
        %v4414 = vld [vmem:[%s4404 + $0x48] sm:$0xff]
        %v4415 = vld [vmem:[%s4404 + $0x50] sm:$0xff]
        %v4416 = vld [vmem:[%s4404 + $0x58] sm:$0xff]
        %v4417 = vld [vmem:[%s4404 + $0x60] sm:$0xff]
        %v4418 = vld [vmem:[%s4404 + $0x68] sm:$0xff]
        %v4419 = vld [vmem:[%s4404 + $0x70] sm:$0xff]
        %v4420 = vld [vmem:[%s4404 + $0x78] sm:$0xff]
        %v4434 = vunpack.c.l.b16 %v4367
        %v4435 = vunpack.c.l.b16 %v4368
        %v4436 = vunpack.c.l.b16 %v4369
        %v4437 = vunpack.c.l.b16 %v4370
        %v4438 = vunpack.c.l.b16 %v4371
        %v4439 = vunpack.c.l.b16 %v4372
        %v4440 = vunpack.c.l.b16 %v4373
        %v4441 = vunpack.c.l.b16 %v4374
        %v4442 = vunpack.c.l.b16 %v4375
        %v4443 = vunpack.c.l.b16 %v4376
        %v4444 = vunpack.c.l.b16 %v4377
        %v4445 = vunpack.c.l.b16 %v4378
        %v4446 = vunpack.c.l.b16 %v4379
        %v4447 = vpack.c.b16 %v4435, %v4434
        %v4448 = vpack.c.b16 %v4437, %v4436
        %v4449 = vpack.c.b16 %v4439, %v4438
        %v4450 = vpack.c.b16 %v4441, %v4440
        %v4451 = vpack.c.b16 %v4443, %v4442
        %v4452 = vpack.c.b16 %v4445, %v4444
        %v4453 = vpack.c.b16 %v4446, %v4446
        %vm4454 = vcmask 1046528
        %v4455 = vrot.slane %v4447, 1
        %v4456 = vrot.slane %v4448, 1
        %v4457 = vsel %vm4454, %v4455, %v4456
        %v4458 = vrot.slane %v4449, 1
        %v4459 = vsel %vm4454, %v4456, %v4458
        %v4460 = vrot.slane %v4450, 1
        %v4461 = vsel %vm4454, %v4458, %v4460
        %v4462 = vrot.slane %v4451, 1
        %v4463 = vsel %vm4454, %v4460, %v4462
        %v4464 = vrot.slane %v4452, 1
        %v4465 = vsel %vm4454, %v4462, %v4464
        %v4466 = vrot.slane %v4453, 1
        %v4467 = vsel %vm4454, %v4464, %v4466
        %v4490 = vunpack.c.l.b16 %v4405
        %v4491 = vunpack.c.h.b16 %v4405
        %v4492 = vunpack.c.l.b16 %v4406
        %v4493 = vunpack.c.h.b16 %v4406
        %v4494 = vunpack.c.l.b16 %v4407
        %v4495 = vunpack.c.h.b16 %v4407
        %v4496 = vunpack.c.l.b16 %v4408
        %v4497 = vunpack.c.h.b16 %v4408
        %v4498 = vunpack.c.l.b16 %v4409
        %v4499 = vunpack.c.h.b16 %v4409
        %v4500 = vunpack.c.l.b16 %v4410
        %v4501 = vunpack.c.h.b16 %v4410
        %v4502 = vunpack.c.l.b16 %v4411
        %v4503 = vunpack.c.h.b16 %v4411
        %v4504 = vunpack.c.l.b16 %v4412
        %v4505 = vunpack.c.h.b16 %v4412
        %v4506 = vunpack.c.l.b16 %v4413
        %v4507 = vunpack.c.h.b16 %v4413
        %v4508 = vunpack.c.l.b16 %v4414
        %v4509 = vunpack.c.h.b16 %v4414
        %v4510 = vunpack.c.l.b16 %v4415
        %v4511 = vunpack.c.h.b16 %v4415
        %v4512 = vunpack.c.l.b16 %v4416
        %v4513 = vunpack.c.h.b16 %v4416
        %v4514 = vunpack.c.l.b16 %v4417
        %v4515 = vunpack.c.h.b16 %v4417
        %v4516 = vunpack.c.l.b16 %v4418
        %v4517 = vunpack.c.h.b16 %v4418
        %v4518 = vunpack.c.l.b16 %v4419
        %v4519 = vunpack.c.h.b16 %v4419
        %v4520 = vunpack.c.l.b16 %v4420
        %v4521 = vunpack.c.h.b16 %v4420
        %v4522 = vpack.c.b16 %v4492, %v4490
        %v4523 = vpack.c.b16 %v4493, %v4491
        %v4524 = vpack.c.b16 %v4496, %v4494
        %v4525 = vpack.c.b16 %v4497, %v4495
        %v4526 = vpack.c.b16 %v4500, %v4498
        %v4527 = vpack.c.b16 %v4501, %v4499
        %v4528 = vpack.c.b16 %v4504, %v4502
        %v4529 = vpack.c.b16 %v4505, %v4503
        %v4530 = vpack.c.b16 %v4508, %v4506
        %v4531 = vpack.c.b16 %v4509, %v4507
        %v4532 = vpack.c.b16 %v4512, %v4510
        %v4533 = vpack.c.b16 %v4513, %v4511
        %v4534 = vpack.c.b16 %v4516, %v4514
        %v4535 = vpack.c.b16 %v4517, %v4515
        %v4536 = vpack.c.b16 %v4520, %v4518
        %v4537 = vpack.c.b16 %v4521, %v4519
        %4554 = vmatprep.subr.bf16.mxu0 %v4523
        %4555 = vmatpush1.bf16.msra.mxu0 %v4522
        %4556 = vmatprep.subr.bf16.mxu0 %v4525
        %4557 = vmatpush1.bf16.msra.mxu0 %v4524
        %4558 = vmatprep.subr.bf16.mxu0 %v4527
        %4559 = vmatpush1.bf16.msra.mxu0 %v4526
        %4560 = vmatprep.subr.bf16.mxu0 %v4529
        %4561 = vmatpush1.bf16.msra.mxu0 %v4528
        %4562 = vmatprep.subr.bf16.mxu0 %v4531
        %4563 = vmatpush1.bf16.msra.mxu0 %v4530
        %4564 = vmatprep.subr.bf16.mxu0 %v4533
        %4565 = vmatpush1.bf16.msra.mxu0 %v4532
        %4566 = vmatprep.subr.bf16.mxu0 %v4535
        %4567 = vmatpush1.bf16.msra.mxu0 %v4534
        %4568 = vmatprep.subr.bf16.mxu0 %v4537
        %4569 = vmatpush1.bf16.msra.mxu0 %v4536
        %4570 = vmatprep.subr.bf16.mxu0 0
        %4571 = vmatpush1.bf16.msra.mxu0 0
        %4572 = vmatprep.subr.bf16.mxu0 0
        %4573 = vmatpush1.bf16.msra.mxu0 0
        %4574 = vmatprep.subr.bf16.mxu0 0
        %4575 = vmatpush1.bf16.msra.mxu0 0
        %4576 = vmatprep.subr.bf16.mxu0 0
        %4577 = vmatpush1.bf16.msra.mxu0 0
        %4578 = vmatprep.subr.bf16.mxu0 0
        %4579 = vmatpush1.bf16.msra.mxu0 0
        %4580 = vmatprep.subr.bf16.mxu0 0
        %4581 = vmatpush1.bf16.msra.mxu0 0
        %4582 = vmatprep.subr.bf16.mxu0 0
        %4583 = vmatpush1.bf16.msra.mxu0 0
        %4584 = vmatprep.subr.bf16.mxu0 0
        %4585 = vmatpush1.bf16.msra.mxu0 0
        %4586 = vmatprep.mubr.bf16.mxu0 0
        %4587 = vmatmul.mubr.bf16.gmra.mrb[0].mxu0 %v4457
        %v4588 = vpop.f32.mrb[0].mxu0
        %v4589 = vadd.f32 0.0, %v4588
        %v4590 = vpop.f32.mrb[0].mxu0
        %v4591 = vadd.f32 0.0, %v4590
        %v4592 = vpop.f32.mrb[0].mxu0
        %v4593 = vadd.f32 0.0, %v4592
        %v4594 = vpop.f32.mrb[0].mxu0
        %v4595 = vadd.f32 0.0, %v4594
        %4596 = vmatprep.mubr.bf16.mxu0 0
        %4597 = vmatmul.mubr.bf16.gmra.mrb[0].mxu0 %v4459
        %v4598 = vpop.f32.mrb[0].mxu0
        %v4599 = vadd.f32 0.0, %v4598
        %v4600 = vpop.f32.mrb[0].mxu0
        %v4601 = vadd.f32 0.0, %v4600
        %v4602 = vpop.f32.mrb[0].mxu0
        %v4603 = vadd.f32 0.0, %v4602
        %v4604 = vpop.f32.mrb[0].mxu0
        %v4605 = vadd.f32 0.0, %v4604
        %4606 = vmatprep.mubr.bf16.mxu0 0
        %4607 = vmatmul.mubr.bf16.gmra.mrb[0].mxu0 %v4461
        %v4608 = vpop.f32.mrb[0].mxu0
        %v4609 = vadd.f32 0.0, %v4608
        %v4610 = vpop.f32.mrb[0].mxu0
        %v4611 = vadd.f32 0.0, %v4610
        %v4612 = vpop.f32.mrb[0].mxu0
        %v4613 = vadd.f32 0.0, %v4612
        %v4614 = vpop.f32.mrb[0].mxu0
        %v4615 = vadd.f32 0.0, %v4614
        %4616 = vmatprep.mubr.bf16.mxu0 0
        %4617 = vmatmul.mubr.bf16.gmra.mrb[0].mxu0 %v4463
        %v4618 = vpop.f32.mrb[0].mxu0
        %v4619 = vadd.f32 0.0, %v4618
        %v4620 = vpop.f32.mrb[0].mxu0
        %v4621 = vadd.f32 0.0, %v4620
        %v4622 = vpop.f32.mrb[0].mxu0
        %v4623 = vadd.f32 0.0, %v4622
        %v4624 = vpop.f32.mrb[0].mxu0
        %v4625 = vadd.f32 0.0, %v4624
        %4626 = vmatprep.mubr.bf16.mxu0 0
        %4627 = vmatmul.mubr.bf16.gmra.mrb[0].mxu0 %v4465
        %v4628 = vpop.f32.mrb[0].mxu0
        %v4629 = vadd.f32 0.0, %v4628
        %v4630 = vpop.f32.mrb[0].mxu0
        %v4631 = vadd.f32 0.0, %v4630
        %v4632 = vpop.f32.mrb[0].mxu0
        %v4633 = vadd.f32 0.0, %v4632
        %v4634 = vpop.f32.mrb[0].mxu0
        %v4635 = vadd.f32 0.0, %v4634
        %4636 = vmatprep.mubr.bf16.mxu0 0
        %4637 = vmatmul.mubr.bf16.gmra.mrb[0].mxu0 %v4467
        %v4638 = vpop.f32.mrb[0].mxu0
        %v4639 = vadd.f32 0.0, %v4638
        %v4640 = vpop.f32.mrb[0].mxu0
        %v4641 = vadd.f32 0.0, %v4640
        %v4642 = vpop.f32.mrb[0].mxu0
        %v4643 = vadd.f32 0.0, %v4642
        %v4644 = vpop.f32.mrb[0].mxu0
        %v4645 = vadd.f32 0.0, %v4644
        %4646 = vdwg.mxu0
        %v4647 = vadd.f32 %v4380, %v4589
        %v4648 = vadd.f32 %v4381, %v4591
        %v4649 = vadd.f32 %v4382, %v4593
        %v4650 = vadd.f32 %v4383, %v4595
        %v4651 = vadd.f32 %v4384, %v4599
        %v4652 = vadd.f32 %v4385, %v4601
        %v4653 = vadd.f32 %v4386, %v4603
        %v4654 = vadd.f32 %v4387, %v4605
        %v4655 = vadd.f32 %v4388, %v4609
        %v4656 = vadd.f32 %v4389, %v4611
        %v4657 = vadd.f32 %v4390, %v4613
        %v4658 = vadd.f32 %v4391, %v4615
        %v4659 = vadd.f32 %v4392, %v4619
        %v4660 = vadd.f32 %v4393, %v4621
        %v4661 = vadd.f32 %v4394, %v4623
        %v4662 = vadd.f32 %v4395, %v4625
        %v4663 = vadd.f32 %v4396, %v4629
        %v4664 = vadd.f32 %v4397, %v4631
        %v4665 = vadd.f32 %v4398, %v4633
        %v4666 = vadd.f32 %v4399, %v4635
        %v4667 = vadd.f32 %v4400, %v4639
        %v4668 = vadd.f32 %v4401, %v4641
        %v4669 = vadd.f32 %v4402, %v4643
        %v4670 = vadd.f32 %v4403, %v4645
        %4671 = vst [vmem:[#allocation3] sm:$0xff] %v4647
        %4672 = vst [vmem:[#allocation3 + $0x8] sm:$0xff] %v4648
        %4673 = vst [vmem:[#allocation3 + $0x10] sm:$0xff] %v4649
        %4674 = vst [vmem:[#allocation3 + $0x18] sm:$0xff] %v4650
        %4675 = vst [vmem:[#allocation3 + $0x20] sm:$0xff] %v4651
        %4676 = vst [vmem:[#allocation3 + $0x28] sm:$0xff] %v4652
        %4677 = vst [vmem:[#allocation3 + $0x30] sm:$0xff] %v4653
        %4678 = vst [vmem:[#allocation3 + $0x38] sm:$0xff] %v4654
        %4679 = vst [vmem:[#allocation3 + $0x40] sm:$0xff] %v4655
        %4680 = vst [vmem:[#allocation3 + $0x48] sm:$0xff] %v4656
        %4681 = vst [vmem:[#allocation3 + $0x50] sm:$0xff] %v4657
        %4682 = vst [vmem:[#allocation3 + $0x58] sm:$0xff] %v4658
        %4683 = vst [vmem:[#allocation3 + $0x60] sm:$0xff] %v4659
        %4684 = vst [vmem:[#allocation3 + $0x68] sm:$0xff] %v4660
        %4685 = vst [vmem:[#allocation3 + $0x70] sm:$0xff] %v4661
        %4686 = vst [vmem:[#allocation3 + $0x78] sm:$0xff] %v4662
        %4687 = vst [vmem:[#allocation3 + $0x80] sm:$0xff] %v4663
        %4688 = vst [vmem:[#allocation3 + $0x88] sm:$0xff] %v4664
        %4689 = vst [vmem:[#allocation3 + $0x90] sm:$0xff] %v4665
        %4690 = vst [vmem:[#allocation3 + $0x98] sm:$0xff] %v4666
        %4691 = vst [vmem:[#allocation3 + $0xa0] sm:$0xff] %v4667
        %4692 = vst [vmem:[#allocation3 + $0xa8] sm:$0xff] %v4668
        %4693 = vst [vmem:[#allocation3 + $0xb0] sm:$0xff] %v4669
        %4694 = vst [vmem:[#allocation3 + $0xb8] sm:$0xff] %v4670
        %v4695 = vld [vmem:[#allocation5] sm:$0xe]
        %v4696 = vld [vmem:[#allocation5 + $0x4] sm:$0xf]
        %v4697 = vld [vmem:[#allocation5 + $0x8] sm:$0xf]
        %v4698 = vld [vmem:[#allocation5 + $0xc] sm:$0xf]
        %v4699 = vld [vmem:[#allocation5 + $0x10] sm:$0xf]
        %v4700 = vld [vmem:[#allocation5 + $0x14] sm:$0xf]
        %v4701 = vld [vmem:[#allocation5 + $0x18] sm:$0xf]
        %v4702 = vld [vmem:[#allocation5 + $0x1c] sm:$0xf]
        %v4703 = vld [vmem:[#allocation5 + $0x20] sm:$0xf]
        %v4704 = vld [vmem:[#allocation5 + $0x24] sm:$0xf]
        %v4705 = vld [vmem:[#allocation5 + $0x28] sm:$0xf]
        %v4706 = vld [vmem:[#allocation5 + $0x2c] sm:$0xf]
        %v4707 = vld [vmem:[#allocation5 + $0x30] sm:$0x3]
        %v4708 = vld [vmem:[#allocation3] sm:$0xff]
        %v4709 = vld [vmem:[#allocation3 + $0x8] sm:$0xff]
        %v4710 = vld [vmem:[#allocation3 + $0x10] sm:$0xff]
        %v4711 = vld [vmem:[#allocation3 + $0x18] sm:$0xff]
        %v4712 = vld [vmem:[#allocation3 + $0x20] sm:$0xff]
        %v4713 = vld [vmem:[#allocation3 + $0x28] sm:$0xff]
        %v4714 = vld [vmem:[#allocation3 + $0x30] sm:$0xff]
        %v4715 = vld [vmem:[#allocation3 + $0x38] sm:$0xff]
        %v4716 = vld [vmem:[#allocation3 + $0x40] sm:$0xff]
        %v4717 = vld [vmem:[#allocation3 + $0x48] sm:$0xff]
        %v4718 = vld [vmem:[#allocation3 + $0x50] sm:$0xff]
        %v4719 = vld [vmem:[#allocation3 + $0x58] sm:$0xff]
        %v4720 = vld [vmem:[#allocation3 + $0x60] sm:$0xff]
        %v4721 = vld [vmem:[#allocation3 + $0x68] sm:$0xff]
        %v4722 = vld [vmem:[#allocation3 + $0x70] sm:$0xff]
        %v4723 = vld [vmem:[#allocation3 + $0x78] sm:$0xff]
        %v4724 = vld [vmem:[#allocation3 + $0x80] sm:$0xff]
        %v4725 = vld [vmem:[#allocation3 + $0x88] sm:$0xff]
        %v4726 = vld [vmem:[#allocation3 + $0x90] sm:$0xff]
        %v4727 = vld [vmem:[#allocation3 + $0x98] sm:$0xff]
        %v4728 = vld [vmem:[#allocation3 + $0xa0] sm:$0xff]
        %v4729 = vld [vmem:[#allocation3 + $0xa8] sm:$0xff]
        %v4730 = vld [vmem:[#allocation3 + $0xb0] sm:$0xff]
        %v4731 = vld [vmem:[#allocation3 + $0xb8] sm:$0xff]
        %s4732 = scalar_lea.vmem %s3, 384
        %v4733 = vld [vmem:[%s4732] sm:$0xff]
        %v4734 = vld [vmem:[%s4732 + $0x8] sm:$0xff]
        %v4735 = vld [vmem:[%s4732 + $0x10] sm:$0xff]
        %v4736 = vld [vmem:[%s4732 + $0x18] sm:$0xff]
        %v4737 = vld [vmem:[%s4732 + $0x20] sm:$0xff]
        %v4738 = vld [vmem:[%s4732 + $0x28] sm:$0xff]
        %v4739 = vld [vmem:[%s4732 + $0x30] sm:$0xff]
        %v4740 = vld [vmem:[%s4732 + $0x38] sm:$0xff]
        %v4741 = vld [vmem:[%s4732 + $0x40] sm:$0xff]
        %v4742 = vld [vmem:[%s4732 + $0x48] sm:$0xff]
        %v4743 = vld [vmem:[%s4732 + $0x50] sm:$0xff]
        %v4744 = vld [vmem:[%s4732 + $0x58] sm:$0xff]
        %v4745 = vld [vmem:[%s4732 + $0x60] sm:$0xff]
        %v4746 = vld [vmem:[%s4732 + $0x68] sm:$0xff]
        %v4747 = vld [vmem:[%s4732 + $0x70] sm:$0xff]
        %v4748 = vld [vmem:[%s4732 + $0x78] sm:$0xff]
        %v4762 = vunpack.c.l.b16 %v4695
        %v4763 = vunpack.c.l.b16 %v4696
        %v4764 = vunpack.c.l.b16 %v4697
        %v4765 = vunpack.c.l.b16 %v4698
        %v4766 = vunpack.c.l.b16 %v4699
        %v4767 = vunpack.c.l.b16 %v4700
        %v4768 = vunpack.c.l.b16 %v4701
        %v4769 = vunpack.c.l.b16 %v4702
        %v4770 = vunpack.c.l.b16 %v4703
        %v4771 = vunpack.c.l.b16 %v4704
        %v4772 = vunpack.c.l.b16 %v4705
        %v4773 = vunpack.c.l.b16 %v4706
        %v4774 = vunpack.c.l.b16 %v4707
        %v4775 = vpack.c.b16 %v4763, %v4762
        %v4776 = vpack.c.b16 %v4765, %v4764
        %v4777 = vpack.c.b16 %v4767, %v4766
        %v4778 = vpack.c.b16 %v4769, %v4768
        %v4779 = vpack.c.b16 %v4771, %v4770
        %v4780 = vpack.c.b16 %v4773, %v4772
        %v4781 = vpack.c.b16 %v4774, %v4774
        %vm4782 = vsmask.f32 6400
        %v4784 = vshrl.u32 %v4775, 16
        %v4786 = vrot.slane %v4784, 1
        %v4787 = vshll.u32 %v4775, 16
        %v4789 = vrot.slane %v4787, 2
        %v4790 = vor.u32 %v4786, %v4789
        %v4792 = vshrl.u32 %v4776, 16
        %v4794 = vrot.slane %v4792, 1
        %v4795 = vshll.u32 %v4776, 16
        %v4797 = vrot.slane %v4795, 2
        %v4798 = vor.u32 %v4794, %v4797
        %v4799 = vsel %vm4782, %v4790, %v4798
        %v4801 = vshrl.u32 %v4777, 16
        %v4803 = vrot.slane %v4801, 1
        %v4804 = vshll.u32 %v4777, 16
        %v4806 = vrot.slane %v4804, 2
        %v4807 = vor.u32 %v4803, %v4806
        %v4808 = vsel %vm4782, %v4798, %v4807
        %v4810 = vshrl.u32 %v4778, 16
        %v4812 = vrot.slane %v4810, 1
        %v4813 = vshll.u32 %v4778, 16
        %v4815 = vrot.slane %v4813, 2
        %v4816 = vor.u32 %v4812, %v4815
        %v4817 = vsel %vm4782, %v4807, %v4816
        %v4819 = vshrl.u32 %v4779, 16
        %v4821 = vrot.slane %v4819, 1
        %v4822 = vshll.u32 %v4779, 16
        %v4824 = vrot.slane %v4822, 2
        %v4825 = vor.u32 %v4821, %v4824
        %v4826 = vsel %vm4782, %v4816, %v4825
        %v4828 = vshrl.u32 %v4780, 16
        %v4830 = vrot.slane %v4828, 1
        %v4831 = vshll.u32 %v4780, 16
        %v4833 = vrot.slane %v4831, 2
        %v4834 = vor.u32 %v4830, %v4833
        %v4835 = vsel %vm4782, %v4825, %v4834
        %v4837 = vshrl.u32 %v4781, 16
        %v4839 = vrot.slane %v4837, 1
        %v4840 = vshll.u32 %v4781, 16
        %v4842 = vrot.slane %v4840, 2
        %v4843 = vor.u32 %v4839, %v4842
        %v4844 = vsel %vm4782, %v4834, %v4843
        %v4867 = vunpack.c.l.b16 %v4733
        %v4868 = vunpack.c.h.b16 %v4733
        %v4869 = vunpack.c.l.b16 %v4734
        %v4870 = vunpack.c.h.b16 %v4734
        %v4871 = vunpack.c.l.b16 %v4735
        %v4872 = vunpack.c.h.b16 %v4735
        %v4873 = vunpack.c.l.b16 %v4736
        %v4874 = vunpack.c.h.b16 %v4736
        %v4875 = vunpack.c.l.b16 %v4737
        %v4876 = vunpack.c.h.b16 %v4737
        %v4877 = vunpack.c.l.b16 %v4738
        %v4878 = vunpack.c.h.b16 %v4738
        %v4879 = vunpack.c.l.b16 %v4739
        %v4880 = vunpack.c.h.b16 %v4739
        %v4881 = vunpack.c.l.b16 %v4740
        %v4882 = vunpack.c.h.b16 %v4740
        %v4883 = vunpack.c.l.b16 %v4741
        %v4884 = vunpack.c.h.b16 %v4741
        %v4885 = vunpack.c.l.b16 %v4742
        %v4886 = vunpack.c.h.b16 %v4742
        %v4887 = vunpack.c.l.b16 %v4743
        %v4888 = vunpack.c.h.b16 %v4743
        %v4889 = vunpack.c.l.b16 %v4744
        %v4890 = vunpack.c.h.b16 %v4744
        %v4891 = vunpack.c.l.b16 %v4745
        %v4892 = vunpack.c.h.b16 %v4745
        %v4893 = vunpack.c.l.b16 %v4746
        %v4894 = vunpack.c.h.b16 %v4746
        %v4895 = vunpack.c.l.b16 %v4747
        %v4896 = vunpack.c.h.b16 %v4747
        %v4897 = vunpack.c.l.b16 %v4748
        %v4898 = vunpack.c.h.b16 %v4748
        %v4899 = vpack.c.b16 %v4869, %v4867
        %v4900 = vpack.c.b16 %v4870, %v4868
        %v4901 = vpack.c.b16 %v4873, %v4871
        %v4902 = vpack.c.b16 %v4874, %v4872
        %v4903 = vpack.c.b16 %v4877, %v4875
        %v4904 = vpack.c.b16 %v4878, %v4876
        %v4905 = vpack.c.b16 %v4881, %v4879
        %v4906 = vpack.c.b16 %v4882, %v4880
        %v4907 = vpack.c.b16 %v4885, %v4883
        %v4908 = vpack.c.b16 %v4886, %v4884
        %v4909 = vpack.c.b16 %v4889, %v4887
        %v4910 = vpack.c.b16 %v4890, %v4888
        %v4911 = vpack.c.b16 %v4893, %v4891
        %v4912 = vpack.c.b16 %v4894, %v4892
        %v4913 = vpack.c.b16 %v4897, %v4895
        %v4914 = vpack.c.b16 %v4898, %v4896
        %4931 = vmatprep.subr.bf16.mxu0 %v4900
        %4932 = vmatpush1.bf16.msra.mxu0 %v4899
        %4933 = vmatprep.subr.bf16.mxu0 %v4902
        %4934 = vmatpush1.bf16.msra.mxu0 %v4901
        %4935 = vmatprep.subr.bf16.mxu0 %v4904
        %4936 = vmatpush1.bf16.msra.mxu0 %v4903
        %4937 = vmatprep.subr.bf16.mxu0 %v4906
        %4938 = vmatpush1.bf16.msra.mxu0 %v4905
        %4939 = vmatprep.subr.bf16.mxu0 %v4908
        %4940 = vmatpush1.bf16.msra.mxu0 %v4907
        %4941 = vmatprep.subr.bf16.mxu0 %v4910
        %4942 = vmatpush1.bf16.msra.mxu0 %v4909
        %4943 = vmatprep.subr.bf16.mxu0 %v4912
        %4944 = vmatpush1.bf16.msra.mxu0 %v4911
        %4945 = vmatprep.subr.bf16.mxu0 %v4914
        %4946 = vmatpush1.bf16.msra.mxu0 %v4913
        %4947 = vmatprep.subr.bf16.mxu0 0
        %4948 = vmatpush1.bf16.msra.mxu0 0
        %4949 = vmatprep.subr.bf16.mxu0 0
        %4950 = vmatpush1.bf16.msra.mxu0 0
        %4951 = vmatprep.subr.bf16.mxu0 0
        %4952 = vmatpush1.bf16.msra.mxu0 0
        %4953 = vmatprep.subr.bf16.mxu0 0
        %4954 = vmatpush1.bf16.msra.mxu0 0
        %4955 = vmatprep.subr.bf16.mxu0 0
        %4956 = vmatpush1.bf16.msra.mxu0 0
        %4957 = vmatprep.subr.bf16.mxu0 0
        %4958 = vmatpush1.bf16.msra.mxu0 0
        %4959 = vmatprep.subr.bf16.mxu0 0
        %4960 = vmatpush1.bf16.msra.mxu0 0
        %4961 = vmatprep.subr.bf16.mxu0 0
        %4962 = vmatpush1.bf16.msra.mxu0 0
        %4963 = vmatprep.mubr.bf16.mxu0 0
        %4964 = vmatmul.mubr.bf16.gmra.mrb[0].mxu0 %v4799
        %v4965 = vpop.f32.mrb[0].mxu0
        %v4966 = vadd.f32 0.0, %v4965
        %v4967 = vpop.f32.mrb[0].mxu0
        %v4968 = vadd.f32 0.0, %v4967
        %v4969 = vpop.f32.mrb[0].mxu0
        %v4970 = vadd.f32 0.0, %v4969
        %v4971 = vpop.f32.mrb[0].mxu0
        %v4972 = vadd.f32 0.0, %v4971
        %4973 = vmatprep.mubr.bf16.mxu0 0
        %4974 = vmatmul.mubr.bf16.gmra.mrb[0].mxu0 %v4808
        %v4975 = vpop.f32.mrb[0].mxu0
        %v4976 = vadd.f32 0.0, %v4975
        %v4977 = vpop.f32.mrb[0].mxu0
        %v4978 = vadd.f32 0.0, %v4977
        %v4979 = vpop.f32.mrb[0].mxu0
        %v4980 = vadd.f32 0.0, %v4979
        %v4981 = vpop.f32.mrb[0].mxu0
        %v4982 = vadd.f32 0.0, %v4981
        %4983 = vmatprep.mubr.bf16.mxu0 0
        %4984 = vmatmul.mubr.bf16.gmra.mrb[0].mxu0 %v4817
        %v4985 = vpop.f32.mrb[0].mxu0
        %v4986 = vadd.f32 0.0, %v4985
        %v4987 = vpop.f32.mrb[0].mxu0
        %v4988 = vadd.f32 0.0, %v4987
        %v4989 = vpop.f32.mrb[0].mxu0
        %v4990 = vadd.f32 0.0, %v4989
        %v4991 = vpop.f32.mrb[0].mxu0
        %v4992 = vadd.f32 0.0, %v4991
        %4993 = vmatprep.mubr.bf16.mxu0 0
        %4994 = vmatmul.mubr.bf16.gmra.mrb[0].mxu0 %v4826
        %v4995 = vpop.f32.mrb[0].mxu0
        %v4996 = vadd.f32 0.0, %v4995
        %v4997 = vpop.f32.mrb[0].mxu0
        %v4998 = vadd.f32 0.0, %v4997
        %v4999 = vpop.f32.mrb[0].mxu0
        %v5000 = vadd.f32 0.0, %v4999
        %v5001 = vpop.f32.mrb[0].mxu0
        %v5002 = vadd.f32 0.0, %v5001
        %5003 = vmatprep.mubr.bf16.mxu0 0
        %5004 = vmatmul.mubr.bf16.gmra.mrb[0].mxu0 %v4835
        %v5005 = vpop.f32.mrb[0].mxu0
        %v5006 = vadd.f32 0.0, %v5005
        %v5007 = vpop.f32.mrb[0].mxu0
        %v5008 = vadd.f32 0.0, %v5007
        %v5009 = vpop.f32.mrb[0].mxu0
        %v5010 = vadd.f32 0.0, %v5009
        %v5011 = vpop.f32.mrb[0].mxu0
        %v5012 = vadd.f32 0.0, %v5011
        %5013 = vmatprep.mubr.bf16.mxu0 0
        %5014 = vmatmul.mubr.bf16.gmra.mrb[0].mxu0 %v4844
        %v5015 = vpop.f32.mrb[0].mxu0
        %v5016 = vadd.f32 0.0, %v5015
        %v5017 = vpop.f32.mrb[0].mxu0
        %v5018 = vadd.f32 0.0, %v5017
        %v5019 = vpop.f32.mrb[0].mxu0
        %v5020 = vadd.f32 0.0, %v5019
        %v5021 = vpop.f32.mrb[0].mxu0
        %v5022 = vadd.f32 0.0, %v5021
        %5023 = vdwg.mxu0
        %v5024 = vadd.f32 %v4708, %v4966
        %v5025 = vadd.f32 %v4709, %v4968
        %v5026 = vadd.f32 %v4710, %v4970
        %v5027 = vadd.f32 %v4711, %v4972
        %v5028 = vadd.f32 %v4712, %v4976
        %v5029 = vadd.f32 %v4713, %v4978
        %v5030 = vadd.f32 %v4714, %v4980
        %v5031 = vadd.f32 %v4715, %v4982
        %v5032 = vadd.f32 %v4716, %v4986
        %v5033 = vadd.f32 %v4717, %v4988
        %v5034 = vadd.f32 %v4718, %v4990
        %v5035 = vadd.f32 %v4719, %v4992
        %v5036 = vadd.f32 %v4720, %v4996
        %v5037 = vadd.f32 %v4721, %v4998
        %v5038 = vadd.f32 %v4722, %v5000
        %v5039 = vadd.f32 %v4723, %v5002
        %v5040 = vadd.f32 %v4724, %v5006
        %v5041 = vadd.f32 %v4725, %v5008
        %v5042 = vadd.f32 %v4726, %v5010
        %v5043 = vadd.f32 %v4727, %v5012
        %v5044 = vadd.f32 %v4728, %v5016
        %v5045 = vadd.f32 %v4729, %v5018
        %v5046 = vadd.f32 %v4730, %v5020
        %v5047 = vadd.f32 %v4731, %v5022
        %5048 = vst [vmem:[#allocation3] sm:$0xff] %v5024
        %5049 = vst [vmem:[#allocation3 + $0x8] sm:$0xff] %v5025
        %5050 = vst [vmem:[#allocation3 + $0x10] sm:$0xff] %v5026
        %5051 = vst [vmem:[#allocation3 + $0x18] sm:$0xff] %v5027
        %5052 = vst [vmem:[#allocation3 + $0x20] sm:$0xff] %v5028
        %5053 = vst [vmem:[#allocation3 + $0x28] sm:$0xff] %v5029
        %5054 = vst [vmem:[#allocation3 + $0x30] sm:$0xff] %v5030
        %5055 = vst [vmem:[#allocation3 + $0x38] sm:$0xff] %v5031
        %5056 = vst [vmem:[#allocation3 + $0x40] sm:$0xff] %v5032
        %5057 = vst [vmem:[#allocation3 + $0x48] sm:$0xff] %v5033
        %5058 = vst [vmem:[#allocation3 + $0x50] sm:$0xff] %v5034
        %5059 = vst [vmem:[#allocation3 + $0x58] sm:$0xff] %v5035
        %5060 = vst [vmem:[#allocation3 + $0x60] sm:$0xff] %v5036
        %5061 = vst [vmem:[#allocation3 + $0x68] sm:$0xff] %v5037
        %5062 = vst [vmem:[#allocation3 + $0x70] sm:$0xff] %v5038
        %5063 = vst [vmem:[#allocation3 + $0x78] sm:$0xff] %v5039
        %5064 = vst [vmem:[#allocation3 + $0x80] sm:$0xff] %v5040
        %5065 = vst [vmem:[#allocation3 + $0x88] sm:$0xff] %v5041
        %5066 = vst [vmem:[#allocation3 + $0x90] sm:$0xff] %v5042
        %5067 = vst [vmem:[#allocation3 + $0x98] sm:$0xff] %v5043
        %5068 = vst [vmem:[#allocation3 + $0xa0] sm:$0xff] %v5044
        %5069 = vst [vmem:[#allocation3 + $0xa8] sm:$0xff] %v5045
        %5070 = vst [vmem:[#allocation3 + $0xb0] sm:$0xff] %v5046
        %5071 = vst [vmem:[#allocation3 + $0xb8] sm:$0xff] %v5047
        %v5072 = vld [vmem:[#allocation5] sm:$0xc]
        %v5073 = vld [vmem:[#allocation5 + $0x4] sm:$0xf]
        %v5074 = vld [vmem:[#allocation5 + $0x8] sm:$0xf]
        %v5075 = vld [vmem:[#allocation5 + $0xc] sm:$0xf]
        %v5076 = vld [vmem:[#allocation5 + $0x10] sm:$0xf]
        %v5077 = vld [vmem:[#allocation5 + $0x14] sm:$0xf]
        %v5078 = vld [vmem:[#allocation5 + $0x18] sm:$0xf]
        %v5079 = vld [vmem:[#allocation5 + $0x1c] sm:$0xf]
        %v5080 = vld [vmem:[#allocation5 + $0x20] sm:$0xf]
        %v5081 = vld [vmem:[#allocation5 + $0x24] sm:$0xf]
        %v5082 = vld [vmem:[#allocation5 + $0x28] sm:$0xf]
        %v5083 = vld [vmem:[#allocation5 + $0x2c] sm:$0xf]
        %v5084 = vld [vmem:[#allocation5 + $0x30] sm:$0x3]
        %v5085 = vld [vmem:[#allocation3] sm:$0xff]
        %v5086 = vld [vmem:[#allocation3 + $0x8] sm:$0xff]
        %v5087 = vld [vmem:[#allocation3 + $0x10] sm:$0xff]
        %v5088 = vld [vmem:[#allocation3 + $0x18] sm:$0xff]
        %v5089 = vld [vmem:[#allocation3 + $0x20] sm:$0xff]
        %v5090 = vld [vmem:[#allocation3 + $0x28] sm:$0xff]
        %v5091 = vld [vmem:[#allocation3 + $0x30] sm:$0xff]
        %v5092 = vld [vmem:[#allocation3 + $0x38] sm:$0xff]
        %v5093 = vld [vmem:[#allocation3 + $0x40] sm:$0xff]
        %v5094 = vld [vmem:[#allocation3 + $0x48] sm:$0xff]
        %v5095 = vld [vmem:[#allocation3 + $0x50] sm:$0xff]
        %v5096 = vld [vmem:[#allocation3 + $0x58] sm:$0xff]
        %v5097 = vld [vmem:[#allocation3 + $0x60] sm:$0xff]
        %v5098 = vld [vmem:[#allocation3 + $0x68] sm:$0xff]
        %v5099 = vld [vmem:[#allocation3 + $0x70] sm:$0xff]
        %v5100 = vld [vmem:[#allocation3 + $0x78] sm:$0xff]
        %v5101 = vld [vmem:[#allocation3 + $0x80] sm:$0xff]
        %v5102 = vld [vmem:[#allocation3 + $0x88] sm:$0xff]
        %v5103 = vld [vmem:[#allocation3 + $0x90] sm:$0xff]
        %v5104 = vld [vmem:[#allocation3 + $0x98] sm:$0xff]
        %v5105 = vld [vmem:[#allocation3 + $0xa0] sm:$0xff]
        %v5106 = vld [vmem:[#allocation3 + $0xa8] sm:$0xff]
        %v5107 = vld [vmem:[#allocation3 + $0xb0] sm:$0xff]
        %v5108 = vld [vmem:[#allocation3 + $0xb8] sm:$0xff]
        %s5109 = scalar_lea.vmem %s3, 512
        %v5110 = vld [vmem:[%s5109] sm:$0xff]
        %v5111 = vld [vmem:[%s5109 + $0x8] sm:$0xff]
        %v5112 = vld [vmem:[%s5109 + $0x10] sm:$0xff]
        %v5113 = vld [vmem:[%s5109 + $0x18] sm:$0xff]
        %v5114 = vld [vmem:[%s5109 + $0x20] sm:$0xff]
        %v5115 = vld [vmem:[%s5109 + $0x28] sm:$0xff]
        %v5116 = vld [vmem:[%s5109 + $0x30] sm:$0xff]
        %v5117 = vld [vmem:[%s5109 + $0x38] sm:$0xff]
        %v5118 = vld [vmem:[%s5109 + $0x40] sm:$0xff]
        %v5119 = vld [vmem:[%s5109 + $0x48] sm:$0xff]
        %v5120 = vld [vmem:[%s5109 + $0x50] sm:$0xff]
        %v5121 = vld [vmem:[%s5109 + $0x58] sm:$0xff]
        %v5122 = vld [vmem:[%s5109 + $0x60] sm:$0xff]
        %v5123 = vld [vmem:[%s5109 + $0x68] sm:$0xff]
        %v5124 = vld [vmem:[%s5109 + $0x70] sm:$0xff]
        %v5125 = vld [vmem:[%s5109 + $0x78] sm:$0xff]
        %v5139 = vunpack.c.l.b16 %v5072
        %v5140 = vunpack.c.l.b16 %v5073
        %v5141 = vunpack.c.l.b16 %v5074
        %v5142 = vunpack.c.l.b16 %v5075
        %v5143 = vunpack.c.l.b16 %v5076
        %v5144 = vunpack.c.l.b16 %v5077
        %v5145 = vunpack.c.l.b16 %v5078
        %v5146 = vunpack.c.l.b16 %v5079
        %v5147 = vunpack.c.l.b16 %v5080
        %v5148 = vunpack.c.l.b16 %v5081
        %v5149 = vunpack.c.l.b16 %v5082
        %v5150 = vunpack.c.l.b16 %v5083
        %v5151 = vunpack.c.l.b16 %v5084
        %v5152 = vpack.c.b16 %v5140, %v5139
        %v5153 = vpack.c.b16 %v5142, %v5141
        %v5154 = vpack.c.b16 %v5144, %v5143
        %v5155 = vpack.c.b16 %v5146, %v5145
        %v5156 = vpack.c.b16 %v5148, %v5147
        %v5157 = vpack.c.b16 %v5150, %v5149
        %v5158 = vpack.c.b16 %v5151, %v5151
        %vm5159 = vcmask 1045504
        %v5160 = vrot.slane %v5152, 2
        %v5161 = vrot.slane %v5153, 2
        %v5162 = vsel %vm5159, %v5160, %v5161
        %v5163 = vrot.slane %v5154, 2
        %v5164 = vsel %vm5159, %v5161, %v5163
        %v5165 = vrot.slane %v5155, 2
        %v5166 = vsel %vm5159, %v5163, %v5165
        %v5167 = vrot.slane %v5156, 2
        %v5168 = vsel %vm5159, %v5165, %v5167
        %v5169 = vrot.slane %v5157, 2
        %v5170 = vsel %vm5159, %v5167, %v5169
        %v5171 = vrot.slane %v5158, 2
        %v5172 = vsel %vm5159, %v5169, %v5171
        %v5195 = vunpack.c.l.b16 %v5110
        %v5196 = vunpack.c.h.b16 %v5110
        %v5197 = vunpack.c.l.b16 %v5111
        %v5198 = vunpack.c.h.b16 %v5111
        %v5199 = vunpack.c.l.b16 %v5112
        %v5200 = vunpack.c.h.b16 %v5112
        %v5201 = vunpack.c.l.b16 %v5113
        %v5202 = vunpack.c.h.b16 %v5113
        %v5203 = vunpack.c.l.b16 %v5114
        %v5204 = vunpack.c.h.b16 %v5114
        %v5205 = vunpack.c.l.b16 %v5115
        %v5206 = vunpack.c.h.b16 %v5115
        %v5207 = vunpack.c.l.b16 %v5116
        %v5208 = vunpack.c.h.b16 %v5116
        %v5209 = vunpack.c.l.b16 %v5117
        %v5210 = vunpack.c.h.b16 %v5117
        %v5211 = vunpack.c.l.b16 %v5118
        %v5212 = vunpack.c.h.b16 %v5118
        %v5213 = vunpack.c.l.b16 %v5119
        %v5214 = vunpack.c.h.b16 %v5119
        %v5215 = vunpack.c.l.b16 %v5120
        %v5216 = vunpack.c.h.b16 %v5120
        %v5217 = vunpack.c.l.b16 %v5121
        %v5218 = vunpack.c.h.b16 %v5121
        %v5219 = vunpack.c.l.b16 %v5122
        %v5220 = vunpack.c.h.b16 %v5122
        %v5221 = vunpack.c.l.b16 %v5123
        %v5222 = vunpack.c.h.b16 %v5123
        %v5223 = vunpack.c.l.b16 %v5124
        %v5224 = vunpack.c.h.b16 %v5124
        %v5225 = vunpack.c.l.b16 %v5125
        %v5226 = vunpack.c.h.b16 %v5125
        %v5227 = vpack.c.b16 %v5197, %v5195
        %v5228 = vpack.c.b16 %v5198, %v5196
        %v5229 = vpack.c.b16 %v5201, %v5199
        %v5230 = vpack.c.b16 %v5202, %v5200
        %v5231 = vpack.c.b16 %v5205, %v5203
        %v5232 = vpack.c.b16 %v5206, %v5204
        %v5233 = vpack.c.b16 %v5209, %v5207
        %v5234 = vpack.c.b16 %v5210, %v5208
        %v5235 = vpack.c.b16 %v5213, %v5211
        %v5236 = vpack.c.b16 %v5214, %v5212
        %v5237 = vpack.c.b16 %v5217, %v5215
        %v5238 = vpack.c.b16 %v5218, %v5216
        %v5239 = vpack.c.b16 %v5221, %v5219
        %v5240 = vpack.c.b16 %v5222, %v5220
        %v5241 = vpack.c.b16 %v5225, %v5223
        %v5242 = vpack.c.b16 %v5226, %v5224
        %5259 = vmatprep.subr.bf16.mxu0 %v5228
        %5260 = vmatpush1.bf16.msra.mxu0 %v5227
        %5261 = vmatprep.subr.bf16.mxu0 %v5230
        %5262 = vmatpush1.bf16.msra.mxu0 %v5229
        %5263 = vmatprep.subr.bf16.mxu0 %v5232
        %5264 = vmatpush1.bf16.msra.mxu0 %v5231
        %5265 = vmatprep.subr.bf16.mxu0 %v5234
        %5266 = vmatpush1.bf16.msra.mxu0 %v5233
        %5267 = vmatprep.subr.bf16.mxu0 %v5236
        %5268 = vmatpush1.bf16.msra.mxu0 %v5235
        %5269 = vmatprep.subr.bf16.mxu0 %v5238
        %5270 = vmatpush1.bf16.msra.mxu0 %v5237
        %5271 = vmatprep.subr.bf16.mxu0 %v5240
        %5272 = vmatpush1.bf16.msra.mxu0 %v5239
        %5273 = vmatprep.subr.bf16.mxu0 %v5242
        %5274 = vmatpush1.bf16.msra.mxu0 %v5241
        %5275 = vmatprep.subr.bf16.mxu0 0
        %5276 = vmatpush1.bf16.msra.mxu0 0
        %5277 = vmatprep.subr.bf16.mxu0 0
        %5278 = vmatpush1.bf16.msra.mxu0 0
        %5279 = vmatprep.subr.bf16.mxu0 0
        %5280 = vmatpush1.bf16.msra.mxu0 0
        %5281 = vmatprep.subr.bf16.mxu0 0
        %5282 = vmatpush1.bf16.msra.mxu0 0
        %5283 = vmatprep.subr.bf16.mxu0 0
        %5284 = vmatpush1.bf16.msra.mxu0 0
        %5285 = vmatprep.subr.bf16.mxu0 0
        %5286 = vmatpush1.bf16.msra.mxu0 0
        %5287 = vmatprep.subr.bf16.mxu0 0
        %5288 = vmatpush1.bf16.msra.mxu0 0
        %5289 = vmatprep.subr.bf16.mxu0 0
        %5290 = vmatpush1.bf16.msra.mxu0 0
        %5291 = vmatprep.mubr.bf16.mxu0 0
        %5292 = vmatmul.mubr.bf16.gmra.mrb[0].mxu0 %v5162
        %v5293 = vpop.f32.mrb[0].mxu0
        %v5294 = vadd.f32 0.0, %v5293
        %v5295 = vpop.f32.mrb[0].mxu0
        %v5296 = vadd.f32 0.0, %v5295
        %v5297 = vpop.f32.mrb[0].mxu0
        %v5298 = vadd.f32 0.0, %v5297
        %v5299 = vpop.f32.mrb[0].mxu0
        %v5300 = vadd.f32 0.0, %v5299
        %5301 = vmatprep.mubr.bf16.mxu0 0
        %5302 = vmatmul.mubr.bf16.gmra.mrb[0].mxu0 %v5164
        %v5303 = vpop.f32.mrb[0].mxu0
        %v5304 = vadd.f32 0.0, %v5303
        %v5305 = vpop.f32.mrb[0].mxu0
        %v5306 = vadd.f32 0.0, %v5305
        %v5307 = vpop.f32.mrb[0].mxu0
        %v5308 = vadd.f32 0.0, %v5307
        %v5309 = vpop.f32.mrb[0].mxu0
        %v5310 = vadd.f32 0.0, %v5309
        %5311 = vmatprep.mubr.bf16.mxu0 0
        %5312 = vmatmul.mubr.bf16.gmra.mrb[0].mxu0 %v5166
        %v5313 = vpop.f32.mrb[0].mxu0
        %v5314 = vadd.f32 0.0, %v5313
        %v5315 = vpop.f32.mrb[0].mxu0
        %v5316 = vadd.f32 0.0, %v5315
        %v5317 = vpop.f32.mrb[0].mxu0
        %v5318 = vadd.f32 0.0, %v5317
        %v5319 = vpop.f32.mrb[0].mxu0
        %v5320 = vadd.f32 0.0, %v5319
        %5321 = vmatprep.mubr.bf16.mxu0 0
        %5322 = vmatmul.mubr.bf16.gmra.mrb[0].mxu0 %v5168
        %v5323 = vpop.f32.mrb[0].mxu0
        %v5324 = vadd.f32 0.0, %v5323
        %v5325 = vpop.f32.mrb[0].mxu0
        %v5326 = vadd.f32 0.0, %v5325
        %v5327 = vpop.f32.mrb[0].mxu0
        %v5328 = vadd.f32 0.0, %v5327
        %v5329 = vpop.f32.mrb[0].mxu0
        %v5330 = vadd.f32 0.0, %v5329
        %5331 = vmatprep.mubr.bf16.mxu0 0
        %5332 = vmatmul.mubr.bf16.gmra.mrb[0].mxu0 %v5170
        %v5333 = vpop.f32.mrb[0].mxu0
        %v5334 = vadd.f32 0.0, %v5333
        %v5335 = vpop.f32.mrb[0].mxu0
        %v5336 = vadd.f32 0.0, %v5335
        %v5337 = vpop.f32.mrb[0].mxu0
        %v5338 = vadd.f32 0.0, %v5337
        %v5339 = vpop.f32.mrb[0].mxu0
        %v5340 = vadd.f32 0.0, %v5339
        %5341 = vmatprep.mubr.bf16.mxu0 0
        %5342 = vmatmul.mubr.bf16.gmra.mrb[0].mxu0 %v5172
        %v5343 = vpop.f32.mrb[0].mxu0
        %v5344 = vadd.f32 0.0, %v5343
        %v5345 = vpop.f32.mrb[0].mxu0
        %v5346 = vadd.f32 0.0, %v5345
        %v5347 = vpop.f32.mrb[0].mxu0
        %v5348 = vadd.f32 0.0, %v5347
        %v5349 = vpop.f32.mrb[0].mxu0
        %v5350 = vadd.f32 0.0, %v5349
        %5351 = vdwg.mxu0
        %v5352 = vadd.f32 %v5085, %v5294
        %v5353 = vadd.f32 %v5086, %v5296
        %v5354 = vadd.f32 %v5087, %v5298
        %v5355 = vadd.f32 %v5088, %v5300
        %v5356 = vadd.f32 %v5089, %v5304
        %v5357 = vadd.f32 %v5090, %v5306
        %v5358 = vadd.f32 %v5091, %v5308
        %v5359 = vadd.f32 %v5092, %v5310
        %v5360 = vadd.f32 %v5093, %v5314
        %v5361 = vadd.f32 %v5094, %v5316
        %v5362 = vadd.f32 %v5095, %v5318
        %v5363 = vadd.f32 %v5096, %v5320
        %v5364 = vadd.f32 %v5097, %v5324
        %v5365 = vadd.f32 %v5098, %v5326
        %v5366 = vadd.f32 %v5099, %v5328
        %v5367 = vadd.f32 %v5100, %v5330
        %v5368 = vadd.f32 %v5101, %v5334
        %v5369 = vadd.f32 %v5102, %v5336
        %v5370 = vadd.f32 %v5103, %v5338
        %v5371 = vadd.f32 %v5104, %v5340
        %v5372 = vadd.f32 %v5105, %v5344
        %v5373 = vadd.f32 %v5106, %v5346
        %v5374 = vadd.f32 %v5107, %v5348
        %v5375 = vadd.f32 %v5108, %v5350
        %5376 = vst [vmem:[#allocation3] sm:$0xff] %v5352
        %5377 = vst [vmem:[#allocation3 + $0x8] sm:$0xff] %v5353
        %5378 = vst [vmem:[#allocation3 + $0x10] sm:$0xff] %v5354
        %5379 = vst [vmem:[#allocation3 + $0x18] sm:$0xff] %v5355
        %5380 = vst [vmem:[#allocation3 + $0x20] sm:$0xff] %v5356
        %5381 = vst [vmem:[#allocation3 + $0x28] sm:$0xff] %v5357
        %5382 = vst [vmem:[#allocation3 + $0x30] sm:$0xff] %v5358
        %5383 = vst [vmem:[#allocation3 + $0x38] sm:$0xff] %v5359
        %5384 = vst [vmem:[#allocation3 + $0x40] sm:$0xff] %v5360
        %5385 = vst [vmem:[#allocation3 + $0x48] sm:$0xff] %v5361
        %5386 = vst [vmem:[#allocation3 + $0x50] sm:$0xff] %v5362
        %5387 = vst [vmem:[#allocation3 + $0x58] sm:$0xff] %v5363
        %5388 = vst [vmem:[#allocation3 + $0x60] sm:$0xff] %v5364
        %5389 = vst [vmem:[#allocation3 + $0x68] sm:$0xff] %v5365
        %5390 = vst [vmem:[#allocation3 + $0x70] sm:$0xff] %v5366
        %5391 = vst [vmem:[#allocation3 + $0x78] sm:$0xff] %v5367
        %5392 = vst [vmem:[#allocation3 + $0x80] sm:$0xff] %v5368
        %5393 = vst [vmem:[#allocation3 + $0x88] sm:$0xff] %v5369
        %5394 = vst [vmem:[#allocation3 + $0x90] sm:$0xff] %v5370
        %5395 = vst [vmem:[#allocation3 + $0x98] sm:$0xff] %v5371
        %5396 = vst [vmem:[#allocation3 + $0xa0] sm:$0xff] %v5372
        %5397 = vst [vmem:[#allocation3 + $0xa8] sm:$0xff] %v5373
        %5398 = vst [vmem:[#allocation3 + $0xb0] sm:$0xff] %v5374
        %5399 = vst [vmem:[#allocation3 + $0xb8] sm:$0xff] %v5375
        %v5400 = vld [vmem:[#allocation3] sm:$0xff]
        %v5401 = vld [vmem:[#allocation3 + $0x10] sm:$0xff]
        %v5402 = vld [vmem:[#allocation3 + $0x20] sm:$0xff]
        %v5403 = vld [vmem:[#allocation3 + $0x30] sm:$0xff]
        %v5404 = vld [vmem:[#allocation3 + $0x40] sm:$0xff]
        %v5405 = vld [vmem:[#allocation3 + $0x50] sm:$0xff]
        %v5406 = vld [vmem:[#allocation3 + $0x60] sm:$0xff]
        %v5407 = vld [vmem:[#allocation3 + $0x70] sm:$0xff]
        %v5408 = vld [vmem:[#allocation3 + $0x80] sm:$0xff]
        %v5409 = vld [vmem:[#allocation3 + $0x90] sm:$0xff]
        %v5410 = vld [vmem:[#allocation3 + $0xa0] sm:$0xff]
        %v5411 = vld [vmem:[#allocation3 + $0xb0] sm:$0xff]
        %v5412 = vld [vmem:[#allocation3 + $0x8] sm:$0xff]
        %v5413 = vld [vmem:[#allocation3 + $0x18] sm:$0xff]
        %v5414 = vld [vmem:[#allocation3 + $0x28] sm:$0xff]
        %v5415 = vld [vmem:[#allocation3 + $0x38] sm:$0xff]
        %v5416 = vld [vmem:[#allocation3 + $0x48] sm:$0xff]
        %v5417 = vld [vmem:[#allocation3 + $0x58] sm:$0xff]
        %v5418 = vld [vmem:[#allocation3 + $0x68] sm:$0xff]
        %v5419 = vld [vmem:[#allocation3 + $0x78] sm:$0xff]
        %v5420 = vld [vmem:[#allocation3 + $0x88] sm:$0xff]
        %v5421 = vld [vmem:[#allocation3 + $0x98] sm:$0xff]
        %v5422 = vld [vmem:[#allocation3 + $0xa8] sm:$0xff]
        %v5423 = vld [vmem:[#allocation3 + $0xb8] sm:$0xff]
        %v5424 = vmax.f32 %v5400, %v5412
        %v5425 = vmax.f32 %v5401, %v5413
        %v5426 = vmax.f32 %v5402, %v5414
        %v5427 = vmax.f32 %v5403, %v5415
        %v5428 = vmax.f32 %v5404, %v5416
        %v5429 = vmax.f32 %v5405, %v5417
        %v5430 = vmax.f32 %v5406, %v5418
        %v5431 = vmax.f32 %v5407, %v5419
        %v5432 = vmax.f32 %v5408, %v5420
        %v5433 = vmax.f32 %v5409, %v5421
        %v5434 = vmax.f32 %v5410, %v5422
        %v5435 = vmax.f32 %v5411, %v5423
        %v5436 = vld [vmem:[%s4] sm:$0x1]
        %v5438 = vlaneseq
        %v5439 = vshrl.u32 %v5438, 7
        %v5440 = vsub.s32 0, %v5439
        %v5441 = vrot.slane %v5436, %v5440
        %v5443 = vadd.f32 %v5424, %v5441
        %v5444 = vadd.f32 %v5425, %v5441
        %v5445 = vadd.f32 %v5426, %v5441
        %v5446 = vadd.f32 %v5427, %v5441
        %v5447 = vadd.f32 %v5428, %v5441
        %v5448 = vadd.f32 %v5429, %v5441
        %v5449 = vadd.f32 %v5430, %v5441
        %v5450 = vadd.f32 %v5431, %v5441
        %v5451 = vadd.f32 %v5432, %v5441
        %v5452 = vadd.f32 %v5433, %v5441
        %v5453 = vadd.f32 %v5434, %v5441
        %v5454 = vadd.f32 %v5435, %v5441
        %5455 = vst [vmem:[#allocation6] sm:$0xff] %v5443
        %5456 = vst [vmem:[#allocation6 + $0x8] sm:$0xff] %v5444
        %5457 = vst [vmem:[#allocation6 + $0x10] sm:$0xff] %v5445
        %5458 = vst [vmem:[#allocation6 + $0x18] sm:$0xff] %v5446
        %5459 = vst [vmem:[#allocation6 + $0x20] sm:$0xff] %v5447
        %5460 = vst [vmem:[#allocation6 + $0x28] sm:$0xff] %v5448
        %5461 = vst [vmem:[#allocation6 + $0x30] sm:$0xff] %v5449
        %5462 = vst [vmem:[#allocation6 + $0x38] sm:$0xff] %v5450
        %5463 = vst [vmem:[#allocation6 + $0x40] sm:$0xff] %v5451
        %5464 = vst [vmem:[#allocation6 + $0x48] sm:$0xff] %v5452
        %5465 = vst [vmem:[#allocation6 + $0x50] sm:$0xff] %v5453
        %5466 = vst [vmem:[#allocation6 + $0x58] sm:$0xff] %v5454
        %v5467 = vld [vmem:[#allocation6] ss:$12 sm:$0xff]
        %s5468 = scalar_lea.vmem [#allocation6], 1
        %v5469 = vld [vmem:[%s5468] ss:$12 sm:$0xff]
        %v5470 = vmax.f32 %v5467, %v5469
        %v5471 = vmax.f32 %v5470, 0.0
        %v5472 = vpack.c.bf16 %v5471, %v5471
        %v5473 = vld [vmem:[#allocation10] sm:$0xf]
        %v5474 = vld [vmem:[#allocation10 + $0x4] sm:$0xf]
        %v5475 = vld [vmem:[#allocation10 + $0x8] sm:$0xf]
        %v5476 = vld [vmem:[#allocation10 + $0xc] sm:$0xf]
        %v5477 = vld [vmem:[#allocation10 + $0x10] sm:$0xf]
        %v5478 = vld [vmem:[#allocation10 + $0x14] sm:$0xf]
        %v5479 = vld [vmem:[#allocation10 + $0x18] sm:$0xf]
        %v5480 = vld [vmem:[#allocation10 + $0x1c] sm:$0xf]
        %v5481 = vld [vmem:[#allocation10 + $0x20] sm:$0xf]
        %v5482 = vld [vmem:[#allocation10 + $0x24] sm:$0xf]
        %v5483 = vld [vmem:[#allocation10 + $0x28] sm:$0xf]
        %v5484 = vld [vmem:[#allocation10 + $0x2c] sm:$0xf]
        %v5485 = vld [vmem:[#allocation10 + $0x30] sm:$0xf]
        %v5486 = vld [vmem:[#allocation10 + $0x34] sm:$0xf]
        %v5487 = vld [vmem:[#allocation10 + $0x38] sm:$0xf]
        %v5488 = vld [vmem:[#allocation10 + $0x3c] sm:$0xf]
        %s5489 = scalar_lea.vmem [#allocation6], 2
        %v5490 = vld [vmem:[%s5489] ss:$12 sm:$0xff]
        %s5491 = scalar_lea.vmem [#allocation6], 3
        %v5492 = vld [vmem:[%s5491] ss:$12 sm:$0xff]
        %v5493 = vmax.f32 %v5490, %v5492
        %v5494 = vmax.f32 %v5493, 0.0
        %v5495 = vpack.c.bf16 %v5494, %v5494
        %s5496 = scalar_lea.vmem [#allocation10], 64
        %v5497 = vld [vmem:[%s5496] sm:$0xf]
        %v5498 = vld [vmem:[%s5496 + $0x4] sm:$0xf]
        %v5499 = vld [vmem:[%s5496 + $0x8] sm:$0xf]
        %v5500 = vld [vmem:[%s5496 + $0xc] sm:$0xf]
        %v5501 = vld [vmem:[%s5496 + $0x10] sm:$0xf]
        %v5502 = vld [vmem:[%s5496 + $0x14] sm:$0xf]
        %v5503 = vld [vmem:[%s5496 + $0x18] sm:$0xf]
        %v5504 = vld [vmem:[%s5496 + $0x1c] sm:$0xf]
        %v5505 = vld [vmem:[%s5496 + $0x20] sm:$0xf]
        %v5506 = vld [vmem:[%s5496 + $0x24] sm:$0xf]
        %v5507 = vld [vmem:[%s5496 + $0x28] sm:$0xf]
        %v5508 = vld [vmem:[%s5496 + $0x2c] sm:$0xf]
        %v5509 = vld [vmem:[%s5496 + $0x30] sm:$0xf]
        %v5510 = vld [vmem:[%s5496 + $0x34] sm:$0xf]
        %v5511 = vld [vmem:[%s5496 + $0x38] sm:$0xf]
        %v5512 = vld [vmem:[%s5496 + $0x3c] sm:$0xf]
        %v5529 = vunpack.c.l.b16 %v5497
        %v5530 = vunpack.c.l.b16 %v5498
        %v5531 = vunpack.c.l.b16 %v5499
        %v5532 = vunpack.c.l.b16 %v5500
        %v5533 = vunpack.c.l.b16 %v5501
        %v5534 = vunpack.c.l.b16 %v5502
        %v5535 = vunpack.c.l.b16 %v5503
        %v5536 = vunpack.c.l.b16 %v5504
        %v5537 = vunpack.c.l.b16 %v5505
        %v5538 = vunpack.c.l.b16 %v5506
        %v5539 = vunpack.c.l.b16 %v5507
        %v5540 = vunpack.c.l.b16 %v5508
        %v5541 = vunpack.c.l.b16 %v5509
        %v5542 = vunpack.c.l.b16 %v5510
        %v5543 = vunpack.c.l.b16 %v5511
        %v5544 = vunpack.c.l.b16 %v5512
        %v5545 = vpack.c.b16 %v5530, %v5529
        %v5546 = vpack.c.b16 %v5532, %v5531
        %v5547 = vpack.c.b16 %v5534, %v5533
        %v5548 = vpack.c.b16 %v5536, %v5535
        %v5549 = vpack.c.b16 %v5538, %v5537
        %v5550 = vpack.c.b16 %v5540, %v5539
        %v5551 = vpack.c.b16 %v5542, %v5541
        %v5552 = vpack.c.b16 %v5544, %v5543
        %5561 = vmatprep.subr.bf16.mxu0 0
        %5562 = vmatpush1.bf16.msra.mxu0 %v5545
        %5563 = vmatprep.subr.bf16.mxu0 0
        %5564 = vmatpush1.bf16.msra.mxu0 %v5546
        %5565 = vmatprep.subr.bf16.mxu0 0
        %5566 = vmatpush1.bf16.msra.mxu0 %v5547
        %5567 = vmatprep.subr.bf16.mxu0 0
        %5568 = vmatpush1.bf16.msra.mxu0 %v5548
        %5569 = vmatprep.subr.bf16.mxu0 0
        %5570 = vmatpush1.bf16.msra.mxu0 %v5549
        %5571 = vmatprep.subr.bf16.mxu0 0
        %5572 = vmatpush1.bf16.msra.mxu0 %v5550
        %5573 = vmatprep.subr.bf16.mxu0 0
        %5574 = vmatpush1.bf16.msra.mxu0 %v5551
        %5575 = vmatprep.subr.bf16.mxu0 0
        %5576 = vmatpush1.bf16.msra.mxu0 %v5552
        %5577 = vmatprep.subr.bf16.mxu0 0
        %5578 = vmatpush1.bf16.msra.mxu0 0
        %5579 = vmatprep.subr.bf16.mxu0 0
        %5580 = vmatpush1.bf16.msra.mxu0 0
        %5581 = vmatprep.subr.bf16.mxu0 0
        %5582 = vmatpush1.bf16.msra.mxu0 0
        %5583 = vmatprep.subr.bf16.mxu0 0
        %5584 = vmatpush1.bf16.msra.mxu0 0
        %5585 = vmatprep.subr.bf16.mxu0 0
        %5586 = vmatpush1.bf16.msra.mxu0 0
        %5587 = vmatprep.subr.bf16.mxu0 0
        %5588 = vmatpush1.bf16.msra.mxu0 0
        %5589 = vmatprep.subr.bf16.mxu0 0
        %5590 = vmatpush1.bf16.msra.mxu0 0
        %5591 = vmatprep.subr.bf16.mxu0 0
        %5592 = vmatpush1.bf16.msra.mxu0 0
        %5593 = vmatprep.mubr.bf16.mxu0 0
        %5594 = vmatmul.mubr.bf16.gmra.mrb[0].mxu0 %v5495
        %v5595 = vpop.f32.mrb[0].mxu0
        %v5596 = vadd.f32 0.0, %v5595
        %v5597 = vpop.f32.mrb[0].mxu0
        %v5598 = vpop.f32.mrb[0].mxu0
        %v5599 = vpop.f32.mrb[0].mxu0
        %5600 = vdwg.mxu0
        %v5617 = vunpack.c.l.b16 %v5473
        %v5618 = vunpack.c.l.b16 %v5474
        %v5619 = vunpack.c.l.b16 %v5475
        %v5620 = vunpack.c.l.b16 %v5476
        %v5621 = vunpack.c.l.b16 %v5477
        %v5622 = vunpack.c.l.b16 %v5478
        %v5623 = vunpack.c.l.b16 %v5479
        %v5624 = vunpack.c.l.b16 %v5480
        %v5625 = vunpack.c.l.b16 %v5481
        %v5626 = vunpack.c.l.b16 %v5482
        %v5627 = vunpack.c.l.b16 %v5483
        %v5628 = vunpack.c.l.b16 %v5484
        %v5629 = vunpack.c.l.b16 %v5485
        %v5630 = vunpack.c.l.b16 %v5486
        %v5631 = vunpack.c.l.b16 %v5487
        %v5632 = vunpack.c.l.b16 %v5488
        %v5633 = vpack.c.b16 %v5618, %v5617
        %v5634 = vpack.c.b16 %v5620, %v5619
        %v5635 = vpack.c.b16 %v5622, %v5621
        %v5636 = vpack.c.b16 %v5624, %v5623
        %v5637 = vpack.c.b16 %v5626, %v5625
        %v5638 = vpack.c.b16 %v5628, %v5627
        %v5639 = vpack.c.b16 %v5630, %v5629
        %v5640 = vpack.c.b16 %v5632, %v5631
        %5649 = vmatprep.subr.bf16.mxu0 0
        %5650 = vmatpush1.bf16.msra.mxu0 %v5633
        %5651 = vmatprep.subr.bf16.mxu0 0
        %5652 = vmatpush1.bf16.msra.mxu0 %v5634
        %5653 = vmatprep.subr.bf16.mxu0 0
        %5654 = vmatpush1.bf16.msra.mxu0 %v5635
        %5655 = vmatprep.subr.bf16.mxu0 0
        %5656 = vmatpush1.bf16.msra.mxu0 %v5636
        %5657 = vmatprep.subr.bf16.mxu0 0
        %5658 = vmatpush1.bf16.msra.mxu0 %v5637
        %5659 = vmatprep.subr.bf16.mxu0 0
        %5660 = vmatpush1.bf16.msra.mxu0 %v5638
        %5661 = vmatprep.subr.bf16.mxu0 0
        %5662 = vmatpush1.bf16.msra.mxu0 %v5639
        %5663 = vmatprep.subr.bf16.mxu0 0
        %5664 = vmatpush1.bf16.msra.mxu0 %v5640
        %5665 = vmatprep.subr.bf16.mxu0 0
        %5666 = vmatpush1.bf16.msra.mxu0 0
        %5667 = vmatprep.subr.bf16.mxu0 0
        %5668 = vmatpush1.bf16.msra.mxu0 0
        %5669 = vmatprep.subr.bf16.mxu0 0
        %5670 = vmatpush1.bf16.msra.mxu0 0
        %5671 = vmatprep.subr.bf16.mxu0 0
        %5672 = vmatpush1.bf16.msra.mxu0 0
        %5673 = vmatprep.subr.bf16.mxu0 0
        %5674 = vmatpush1.bf16.msra.mxu0 0
        %5675 = vmatprep.subr.bf16.mxu0 0
        %5676 = vmatpush1.bf16.msra.mxu0 0
        %5677 = vmatprep.subr.bf16.mxu0 0
        %5678 = vmatpush1.bf16.msra.mxu0 0
        %5679 = vmatprep.subr.bf16.mxu0 0
        %5680 = vmatpush1.bf16.msra.mxu0 0
        %5681 = vmatprep.mubr.bf16.mxu0 0
        %5682 = vmatmul.mubr.bf16.gmra.mrb[0].mxu0 %v5472
        %v5683 = vpop.f32.mrb[0].mxu0
        %v5684 = vadd.f32 %v5596, %v5683
        %v5685 = vpop.f32.mrb[0].mxu0
        %v5686 = vpop.f32.mrb[0].mxu0
        %v5687 = vpop.f32.mrb[0].mxu0
        %5688 = vdwg.mxu0
        %s5689 = scalar_lea.vmem [#allocation6], 4
        %v5690 = vld [vmem:[%s5689] ss:$12 sm:$0xff]
        %s5691 = scalar_lea.vmem [#allocation6], 5
        %v5692 = vld [vmem:[%s5691] ss:$12 sm:$0xff]
        %v5693 = vmax.f32 %v5690, %v5692
        %v5694 = vmax.f32 %v5693, 0.0
        %v5695 = vpack.c.bf16 %v5694, %v5694
        %s5696 = scalar_lea.vmem [#allocation10], 128
        %v5697 = vld [vmem:[%s5696] sm:$0xf]
        %v5698 = vld [vmem:[%s5696 + $0x4] sm:$0xf]
        %v5699 = vld [vmem:[%s5696 + $0x8] sm:$0xf]
        %v5700 = vld [vmem:[%s5696 + $0xc] sm:$0xf]
        %v5701 = vld [vmem:[%s5696 + $0x10] sm:$0xf]
        %v5702 = vld [vmem:[%s5696 + $0x14] sm:$0xf]
        %v5703 = vld [vmem:[%s5696 + $0x18] sm:$0xf]
        %v5704 = vld [vmem:[%s5696 + $0x1c] sm:$0xf]
        %v5705 = vld [vmem:[%s5696 + $0x20] sm:$0xf]
        %v5706 = vld [vmem:[%s5696 + $0x24] sm:$0xf]
        %v5707 = vld [vmem:[%s5696 + $0x28] sm:$0xf]
        %v5708 = vld [vmem:[%s5696 + $0x2c] sm:$0xf]
        %v5709 = vld [vmem:[%s5696 + $0x30] sm:$0xf]
        %v5710 = vld [vmem:[%s5696 + $0x34] sm:$0xf]
        %v5711 = vld [vmem:[%s5696 + $0x38] sm:$0xf]
        %v5712 = vld [vmem:[%s5696 + $0x3c] sm:$0xf]
        %v5729 = vunpack.c.l.b16 %v5697
        %v5730 = vunpack.c.l.b16 %v5698
        %v5731 = vunpack.c.l.b16 %v5699
        %v5732 = vunpack.c.l.b16 %v5700
        %v5733 = vunpack.c.l.b16 %v5701
        %v5734 = vunpack.c.l.b16 %v5702
        %v5735 = vunpack.c.l.b16 %v5703
        %v5736 = vunpack.c.l.b16 %v5704
        %v5737 = vunpack.c.l.b16 %v5705
        %v5738 = vunpack.c.l.b16 %v5706
        %v5739 = vunpack.c.l.b16 %v5707
        %v5740 = vunpack.c.l.b16 %v5708
        %v5741 = vunpack.c.l.b16 %v5709
        %v5742 = vunpack.c.l.b16 %v5710
        %v5743 = vunpack.c.l.b16 %v5711
        %v5744 = vunpack.c.l.b16 %v5712
        %v5745 = vpack.c.b16 %v5730, %v5729
        %v5746 = vpack.c.b16 %v5732, %v5731
        %v5747 = vpack.c.b16 %v5734, %v5733
        %v5748 = vpack.c.b16 %v5736, %v5735
        %v5749 = vpack.c.b16 %v5738, %v5737
        %v5750 = vpack.c.b16 %v5740, %v5739
        %v5751 = vpack.c.b16 %v5742, %v5741
        %v5752 = vpack.c.b16 %v5744, %v5743
        %5761 = vmatprep.subr.bf16.mxu0 0
        %5762 = vmatpush1.bf16.msra.mxu0 %v5745
        %5763 = vmatprep.subr.bf16.mxu0 0
        %5764 = vmatpush1.bf16.msra.mxu0 %v5746
        %5765 = vmatprep.subr.bf16.mxu0 0
        %5766 = vmatpush1.bf16.msra.mxu0 %v5747
        %5767 = vmatprep.subr.bf16.mxu0 0
        %5768 = vmatpush1.bf16.msra.mxu0 %v5748
        %5769 = vmatprep.subr.bf16.mxu0 0
        %5770 = vmatpush1.bf16.msra.mxu0 %v5749
        %5771 = vmatprep.subr.bf16.mxu0 0
        %5772 = vmatpush1.bf16.msra.mxu0 %v5750
        %5773 = vmatprep.subr.bf16.mxu0 0
        %5774 = vmatpush1.bf16.msra.mxu0 %v5751
        %5775 = vmatprep.subr.bf16.mxu0 0
        %5776 = vmatpush1.bf16.msra.mxu0 %v5752
        %5777 = vmatprep.subr.bf16.mxu0 0
        %5778 = vmatpush1.bf16.msra.mxu0 0
        %5779 = vmatprep.subr.bf16.mxu0 0
        %5780 = vmatpush1.bf16.msra.mxu0 0
        %5781 = vmatprep.subr.bf16.mxu0 0
        %5782 = vmatpush1.bf16.msra.mxu0 0
        %5783 = vmatprep.subr.bf16.mxu0 0
        %5784 = vmatpush1.bf16.msra.mxu0 0
        %5785 = vmatprep.subr.bf16.mxu0 0
        %5786 = vmatpush1.bf16.msra.mxu0 0
        %5787 = vmatprep.subr.bf16.mxu0 0
        %5788 = vmatpush1.bf16.msra.mxu0 0
        %5789 = vmatprep.subr.bf16.mxu0 0
        %5790 = vmatpush1.bf16.msra.mxu0 0
        %5791 = vmatprep.subr.bf16.mxu0 0
        %5792 = vmatpush1.bf16.msra.mxu0 0
        %5793 = vmatprep.mubr.bf16.mxu0 0
        %5794 = vmatmul.mubr.bf16.gmra.mrb[0].mxu0 %v5695
        %v5795 = vpop.f32.mrb[0].mxu0
        %v5796 = vadd.f32 0.0, %v5795
        %v5797 = vpop.f32.mrb[0].mxu0
        %v5798 = vpop.f32.mrb[0].mxu0
        %v5799 = vpop.f32.mrb[0].mxu0
        %5800 = vdwg.mxu0
        %v5801 = vadd.f32 %v5684, %v5796
        %s5802 = scalar_lea.vmem [#allocation6], 6
        %v5803 = vld [vmem:[%s5802] ss:$12 sm:$0xff]
        %s5804 = scalar_lea.vmem [#allocation6], 7
        %v5805 = vld [vmem:[%s5804] ss:$12 sm:$0xff]
        %v5806 = vmax.f32 %v5803, %v5805
        %v5807 = vmax.f32 %v5806, 0.0
        %v5808 = vpack.c.bf16 %v5807, %v5807
        %s5809 = scalar_lea.vmem [#allocation10], 192
        %v5810 = vld [vmem:[%s5809] sm:$0xf]
        %v5811 = vld [vmem:[%s5809 + $0x4] sm:$0xf]
        %v5812 = vld [vmem:[%s5809 + $0x8] sm:$0xf]
        %v5813 = vld [vmem:[%s5809 + $0xc] sm:$0xf]
        %v5814 = vld [vmem:[%s5809 + $0x10] sm:$0xf]
        %v5815 = vld [vmem:[%s5809 + $0x14] sm:$0xf]
        %v5816 = vld [vmem:[%s5809 + $0x18] sm:$0xf]
        %v5817 = vld [vmem:[%s5809 + $0x1c] sm:$0xf]
        %v5818 = vld [vmem:[%s5809 + $0x20] sm:$0xf]
        %v5819 = vld [vmem:[%s5809 + $0x24] sm:$0xf]
        %v5820 = vld [vmem:[%s5809 + $0x28] sm:$0xf]
        %v5821 = vld [vmem:[%s5809 + $0x2c] sm:$0xf]
        %v5822 = vld [vmem:[%s5809 + $0x30] sm:$0xf]
        %v5823 = vld [vmem:[%s5809 + $0x34] sm:$0xf]
        %v5824 = vld [vmem:[%s5809 + $0x38] sm:$0xf]
        %v5825 = vld [vmem:[%s5809 + $0x3c] sm:$0xf]
        %v5842 = vunpack.c.l.b16 %v5810
        %v5843 = vunpack.c.l.b16 %v5811
        %v5844 = vunpack.c.l.b16 %v5812
        %v5845 = vunpack.c.l.b16 %v5813
        %v5846 = vunpack.c.l.b16 %v5814
        %v5847 = vunpack.c.l.b16 %v5815
        %v5848 = vunpack.c.l.b16 %v5816
        %v5849 = vunpack.c.l.b16 %v5817
        %v5850 = vunpack.c.l.b16 %v5818
        %v5851 = vunpack.c.l.b16 %v5819
        %v5852 = vunpack.c.l.b16 %v5820
        %v5853 = vunpack.c.l.b16 %v5821
        %v5854 = vunpack.c.l.b16 %v5822
        %v5855 = vunpack.c.l.b16 %v5823
        %v5856 = vunpack.c.l.b16 %v5824
        %v5857 = vunpack.c.l.b16 %v5825
        %v5858 = vpack.c.b16 %v5843, %v5842
        %v5859 = vpack.c.b16 %v5845, %v5844
        %v5860 = vpack.c.b16 %v5847, %v5846
        %v5861 = vpack.c.b16 %v5849, %v5848
        %v5862 = vpack.c.b16 %v5851, %v5850
        %v5863 = vpack.c.b16 %v5853, %v5852
        %v5864 = vpack.c.b16 %v5855, %v5854
        %v5865 = vpack.c.b16 %v5857, %v5856
        %5874 = vmatprep.subr.bf16.mxu0 0
        %5875 = vmatpush1.bf16.msra.mxu0 %v5858
        %5876 = vmatprep.subr.bf16.mxu0 0
        %5877 = vmatpush1.bf16.msra.mxu0 %v5859
        %5878 = vmatprep.subr.bf16.mxu0 0
        %5879 = vmatpush1.bf16.msra.mxu0 %v5860
        %5880 = vmatprep.subr.bf16.mxu0 0
        %5881 = vmatpush1.bf16.msra.mxu0 %v5861
        %5882 = vmatprep.subr.bf16.mxu0 0
        %5883 = vmatpush1.bf16.msra.mxu0 %v5862
        %5884 = vmatprep.subr.bf16.mxu0 0
        %5885 = vmatpush1.bf16.msra.mxu0 %v5863
        %5886 = vmatprep.subr.bf16.mxu0 0
        %5887 = vmatpush1.bf16.msra.mxu0 %v5864
        %5888 = vmatprep.subr.bf16.mxu0 0
        %5889 = vmatpush1.bf16.msra.mxu0 %v5865
        %5890 = vmatprep.subr.bf16.mxu0 0
        %5891 = vmatpush1.bf16.msra.mxu0 0
        %5892 = vmatprep.subr.bf16.mxu0 0
        %5893 = vmatpush1.bf16.msra.mxu0 0
        %5894 = vmatprep.subr.bf16.mxu0 0
        %5895 = vmatpush1.bf16.msra.mxu0 0
        %5896 = vmatprep.subr.bf16.mxu0 0
        %5897 = vmatpush1.bf16.msra.mxu0 0
        %5898 = vmatprep.subr.bf16.mxu0 0
        %5899 = vmatpush1.bf16.msra.mxu0 0
        %5900 = vmatprep.subr.bf16.mxu0 0
        %5901 = vmatpush1.bf16.msra.mxu0 0
        %5902 = vmatprep.subr.bf16.mxu0 0
        %5903 = vmatpush1.bf16.msra.mxu0 0
        %5904 = vmatprep.subr.bf16.mxu0 0
        %5905 = vmatpush1.bf16.msra.mxu0 0
        %5906 = vmatprep.mubr.bf16.mxu0 0
        %5907 = vmatmul.mubr.bf16.gmra.mrb[0].mxu0 %v5808
        %v5908 = vpop.f32.mrb[0].mxu0
        %v5909 = vadd.f32 0.0, %v5908
        %v5910 = vpop.f32.mrb[0].mxu0
        %v5911 = vpop.f32.mrb[0].mxu0
        %v5912 = vpop.f32.mrb[0].mxu0
        %5913 = vdwg.mxu0
        %v5914 = vadd.f32 %v5801, %v5909
        %v5915 = vld [vmem:[%s6] sm:$0x1]
        %v5917 = vlaneseq
        %v5918 = vshrl.u32 %v5917, 7
        %v5919 = vsub.s32 0, %v5918
        %v5920 = vrot.slane %v5915, %v5919
        %v5922 = vadd.f32 %v5914, %v5920
        %v5923 = vmax.f32 %v5922, 0.0
        %v5924 = vld [vmem:[#allocation12] sm:$0xff]
        %v5925 = vld [vmem:[#allocation12 + $0x8] sm:$0xff]
        %v5926 = vld [vmem:[#allocation12 + $0x10] sm:$0xff]
        %v5927 = vld [vmem:[#allocation12 + $0x18] sm:$0xff]
        %v5928 = vld [vmem:[#allocation12 + $0x20] sm:$0xff]
        %v5929 = vld [vmem:[#allocation12 + $0x28] sm:$0xff]
        %v5930 = vld [vmem:[#allocation12 + $0x30] sm:$0xff]
        %v5931 = vld [vmem:[#allocation12 + $0x38] sm:$0xff]
        %v5932 = vld [vmem:[#allocation12 + $0x40] sm:$0xff]
        %v5933 = vld [vmem:[#allocation12 + $0x48] sm:$0xff]
        %v5934 = vld [vmem:[#allocation12 + $0x50] sm:$0xff]
        %v5935 = vld [vmem:[#allocation12 + $0x58] sm:$0xff]
        %v5936 = vld [vmem:[#allocation12 + $0x60] sm:$0xff]
        %v5937 = vld [vmem:[#allocation12 + $0x68] sm:$0xff]
        %v5938 = vld [vmem:[#allocation12 + $0x70] sm:$0xff]
        %v5939 = vld [vmem:[#allocation12 + $0x78] sm:$0xff]
        %v5940 = vld [vmem:[%s8] sm:$0x1]
        %v5942 = vlaneseq
        %v5943 = vshrl.u32 %v5942, 7
        %v5944 = vsub.s32 0, %v5943
        %v5945 = vrot.slane %v5940, %v5944
        %5947 = vmatprep.subr.mxu0 0.0
        %5948 = vmatpush1.msra.mxu0 %v5924
        %5949 = vmatprep.subr.mxu0 0.0
        %5950 = vmatpush1.msra.mxu0 %v5925
        %5951 = vmatprep.subr.mxu0 0.0
        %5952 = vmatpush1.msra.mxu0 %v5926
        %5953 = vmatprep.subr.mxu0 0.0
        %5954 = vmatpush1.msra.mxu0 %v5927
        %5955 = vmatprep.subr.mxu0 0.0
        %5956 = vmatpush1.msra.mxu0 %v5928
        %5957 = vmatprep.subr.mxu0 0.0
        %5958 = vmatpush1.msra.mxu0 %v5929
        %5959 = vmatprep.subr.mxu0 0.0
        %5960 = vmatpush1.msra.mxu0 %v5930
        %5961 = vmatprep.subr.mxu0 0.0
        %5962 = vmatpush1.msra.mxu0 %v5931
        %5963 = vmatprep.subr.mxu0 0.0
        %5964 = vmatpush1.msra.mxu0 %v5932
        %5965 = vmatprep.subr.mxu0 0.0
        %5966 = vmatpush1.msra.mxu0 %v5933
        %5967 = vmatprep.subr.mxu0 0.0
        %5968 = vmatpush1.msra.mxu0 %v5934
        %5969 = vmatprep.subr.mxu0 0.0
        %5970 = vmatpush1.msra.mxu0 %v5935
        %5971 = vmatprep.subr.mxu0 0.0
        %5972 = vmatpush1.msra.mxu0 %v5936
        %5973 = vmatprep.subr.mxu0 0.0
        %5974 = vmatpush1.msra.mxu0 %v5937
        %5975 = vmatprep.subr.mxu0 0.0
        %5976 = vmatpush1.msra.mxu0 %v5938
        %5977 = vmatprep.subr.mxu0 0.0
        %5978 = vmatpush1.msra.mxu0 %v5939
        %5979 = vmatprep.subr.mxu0 0.0
        %5980 = vmatpush1.msra.mxu0 0.0
        %5981 = vmatprep.subr.mxu0 0.0
        %5982 = vmatpush1.msra.mxu0 0.0
        %5983 = vmatprep.subr.mxu0 0.0
        %5984 = vmatpush1.msra.mxu0 0.0
        %5985 = vmatprep.subr.mxu0 0.0
        %5986 = vmatpush1.msra.mxu0 0.0
        %5987 = vmatprep.subr.mxu0 0.0
        %5988 = vmatpush1.msra.mxu0 0.0
        %5989 = vmatprep.subr.mxu0 0.0
        %5990 = vmatpush1.msra.mxu0 0.0
        %5991 = vmatprep.subr.mxu0 0.0
        %5992 = vmatpush1.msra.mxu0 0.0
        %5993 = vmatprep.subr.mxu0 0.0
        %5994 = vmatpush1.msra.mxu0 0.0
        %5995 = vmatprep.subr.mxu0 0.0
        %5996 = vmatpush1.msra.mxu0 0.0
        %5997 = vmatprep.subr.mxu0 0.0
        %5998 = vmatpush1.msra.mxu0 0.0
        %5999 = vmatprep.subr.mxu0 0.0
        %6000 = vmatpush1.msra.mxu0 0.0
        %6001 = vmatprep.subr.mxu0 0.0
        %6002 = vmatpush1.msra.mxu0 0.0
        %6003 = vmatprep.subr.mxu0 0.0
        %6004 = vmatpush1.msra.mxu0 0.0
        %6005 = vmatprep.subr.mxu0 0.0
        %6006 = vmatpush1.msra.mxu0 0.0
        %6007 = vmatprep.subr.mxu0 0.0
        %6008 = vmatpush1.msra.mxu0 0.0
        %6009 = vmatprep.subr.mxu0 0.0
        %6010 = vmatpush1.msra.mxu0 0.0
        %6011 = vmatprep.mubr.f32.mxu0 0.0
        %6012 = vmatmul.mubr.f32.gmra.mrb[0].mxu0 %v5923
        %v6013 = vpop.f32.mrb[0].mxu0
        %v6014 = vadd.f32 %v5945, %v6013
        %v6015 = vpop.f32.mrb[0].mxu0
        %6016 = vdwg.mxu0
        %6017 = vmax.xlane.f32.xlu0 %v6014
        %v6018 = vpop.xlane.xlu0 %6017
        %v6019 = vsub.f32 %v6014, %v6018
        %v6020 = vmul.f32 %v6019, 1.442695
        %v6021 = vpow.pop %v6020
        %6022 = vadd.xlane.f32.xlu0 %v6021
        %v6023 = vpop.xlane.xlu0 %6022
        %v6024 = vlog2.pop %v6023
        %v6025 = vmul.f32 %v6024, 0.6931472
        %v6026 = vsub.f32 %v6019, %v6025
        %6027 = vst [vmem:[%s372] sm:$0xff] %v6026
        %s6028 = sand.u32 %s227, 1
        %s6029 = scalar_lea.sflag [#allocation9], %s6028
        %s6030 = sand.u32 %s227, 1
        %s6031 = smul.addr %s6030, 8
        %s6032 = scalar_lea.vmem [#allocation13], %s6031
        // Predicated region
        $region69: #{_lambda_.1} parent=55 // pred_check
          %p6033 = pneg %p237
        $region70: #{_lambda_.1} parent=55 // pred_check_branch
          %6035 = sbr.rel (%p6033) target = $region72
        $region71: #{_lambda_.1} parent=55 // pred_region
          %s6037 = ssub.s32 128, 128
          %6038 = vsyncadd %s6029, %s6037
          %s6039 = smul.addr %s25, 128
          %s6040 = scalar_lea.hbm %s9, %s6039
          %s6042 = sshll.u32 %s6032, 4
          %s6043 = int_to_ptr.vmem [resolvable:$true] %s6042
          %6045 = dma.vmem_to_hbm [thread:$0]  %s6043, 128, %s6040, %s6029
        $region72: #{_lambda_.1} parent=55 // pred_fallthru
          _
      $region56: #{_lambda_.1} parent=5 // pred_fallthru
        _
      %p6046 = scmp.le.s32.totalorder 2, %s20
      // Predicated region
      $region73: #{_lambda_.1} parent=5 // pred_check
        %p6047 = pneg %p6046
      $region74: #{_lambda_.1} parent=5 // pred_check_branch
        %6049 = sbr.rel (%p6047) target = $region76
      $region75: #{_lambda_.1} parent=5 // pred_region
        %s6050 = ssub.s32 %s20, 2
        // Predicated region
        $region77: #{_lambda_.1} parent=75 // pred_check
          %p6051 = pneg %p243
        $region78: #{_lambda_.1} parent=75 // pred_check_branch
          %6053 = sbr.rel (%p6051) target = $region80
        $region79: #{_lambda_.1} parent=75 // pred_region
          %s6054 = sand.u32 %s228, 1
          %s6055 = scalar_lea.sflag [#allocation9], %s6054
          %s6056 = sand.u32 %s228, 1
          %s6057 = smul.addr %s6056, 8
          %s6058 = scalar_lea.vmem [#allocation13], %s6057
          %6059 = dma.done %s6055, 128
        $region80: #{_lambda_.1} parent=75 // pred_fallthru
          _
      $region76: #{_lambda_.1} parent=5 // pred_fallthru
        _
    $region6: #{_lambda_.1} parent=1 // loop_footer
      %s24 = sadd.s32 1, %s20
    $region7: #{_lambda_.1} parent=1 // loop_footer_branch
      %19 = sbr.rel target = $region3
    $region8: #{_lambda_.1} parent=1 // loop_exit
      _
    %6060 = vsyncpa [#allocation8], 1
    %s6061 = scalar_lea.sflag [#allocation8], 1
    %6062 = vsyncpa %s6061, 1
    %6063 = vsyncpa [#allocation11], 1
    %6064 = vsyncpa [#allocation9], 1
    %s6065 = scalar_lea.sflag [#allocation9], 1
    %6066 = vsyncpa %s6065, 1

</llo_original>
